<compile_context>
chip_gen: v5e
topology: v5e:2x2
jax: 0.10.0
libtpu: 0.0.40
codegen_flags: <defaults>
</compile_context>

<pallas_src>
import functools

import jax
import jax.numpy as jnp
from jax.experimental import pallas as pl
from jax.experimental.pallas import tpu as pltpu


# ------------------------------- fused Pallas kernel -------------------------------
def arc_block_kernel(x_ref, w1_ref, b1_ref, w2_ref, b2_ref, o_ref,
                     xp_ref, p1_ref, y1p_ref, p2_ref, *, add, th, h, w):
    # x_ref : (1, H, W, C1)        input image (NHWC), full image for this batch element
    # w1_ref: (9*C1, C2) bf16      cv1 weights (BN folded), K index = (kh*3+kw)*C1 + ci
    # b1_ref: (1, C2)  f32         cv1 bias (BN folded); w2_ref / b2_ref analogous for cv2
    # o_ref : (1, C2, TH*W)        output rows [r*TH,(r+1)*TH) stored channel-first (lane-dense)
    # xp_ref : VMEM (H+4, W+2, C1)   bf16 zero-padded input (staged once per batch element)
    # p1_ref : VMEM ((TH+2)*W, 9*C1) bf16 cv1 im2col patch slab
    # y1p_ref: VMEM (TH+2, W+2, C2)  bf16 zero-padded cv1 activations for this row tile
    # p2_ref : VMEM (TH*W, 9*C2)     bf16 cv2 im2col patch slab
    c1 = x_ref.shape[-1]
    c2 = o_ref.shape[1]
    cdt = w1_ref.dtype                     # MXU compute dtype (bf16)
    r = pl.program_id(1)
    nr = pl.num_programs(1)
    ro = pl.multiple_of(r * th, th)        # first output row of this tile
    m1 = (th + 2) * w                      # cv1 rows computed (1-row halo each side)
    m2 = th * w

    # -- stage the zero-padded input ONCE per batch element; zero only the halo.
    #    (requires the r axis to be "arbitrary": this scratch persists across row tiles)
    @pl.when(r == 0)
    def _stage():
        zr = jnp.zeros((2, w + 2, c1), cdt)
        xp_ref[pl.ds(0, 2), :, :] = zr                        # top 2 halo rows
        xp_ref[pl.ds(h + 2, 2), :, :] = zr                    # bottom 2 halo rows
        zc = jnp.zeros((h, 1, c1), cdt)
        xp_ref[pl.ds(2, h), pl.ds(0, 1), :] = zc              # left halo column
        xp_ref[pl.ds(2, h), pl.ds(w + 1, 1), :] = zc          # right halo column
        xp_ref[pl.ds(2, h), pl.ds(1, w), :] = x_ref[...].reshape(h, w, c1).astype(cdt)
        # y1's column halo is never touched by the per-tile interior stores -> zero it once
        zy = jnp.zeros((th + 2, 1, c2), cdt)
        y1p_ref[:, pl.ds(0, 1), :] = zy
        y1p_ref[:, pl.ds(w + 1, 1), :] = zy

    # -- cv1: build the (m1, 9*C1) im2col slab once, then ONE MXU matmul (f32 accumulation)
    for kh in range(3):
        for kw in range(3):
            tap = kh * 3 + kw
            win = xp_ref[pl.ds(ro + kh, th + 2), pl.ds(kw, w), :]     # (TH+2, W, C1) bf16
            p1_ref[:, pl.ds(tap * c1, c1)] = win.reshape(m1, c1)
    y1 = jnp.dot(p1_ref[...], w1_ref[...], preferred_element_type=jnp.float32) + b1_ref[...]
    y1 = y1 * jax.nn.sigmoid(y1)                                      # SiLU (EUP slot)
    # keep y1 (plus its halo) entirely in VMEM; it never touches HBM
    y1p_ref[:, pl.ds(1, w), :] = y1.reshape(th + 2, w, c2).astype(cdt)

    # halo rows outside the image are cv2's zero padding: at most one row, edge tiles only
    @pl.when(r == 0)
    def _zero_top():
        y1p_ref[pl.ds(0, 1), pl.ds(1, w), :] = jnp.zeros((1, w, c2), cdt)

    @pl.when(r == nr - 1)
    def _zero_bottom():
        y1p_ref[pl.ds(th + 1, 1), pl.ds(1, w), :] = jnp.zeros((1, w, c2), cdt)

    # -- cv2: same im2col scheme over the VMEM-resident y1
    for kh in range(3):
        for kw in range(3):
            tap = kh * 3 + kw
            win = y1p_ref[pl.ds(kh, th), pl.ds(kw, w), :]             # (TH, W, C2) bf16
            p2_ref[:, pl.ds(tap * c2, c2)] = win.reshape(m2, c2)
    y2 = jnp.dot(p2_ref[...], w2_ref[...], preferred_element_type=jnp.float32) + b2_ref[...]
    y2 = y2 * jax.nn.sigmoid(y2)
    if add:                                                           # static residual flag
        y2 = y2 + x_ref[:, pl.ds(ro, th), :, :].reshape(m2, c1)       # residual read in f32
    # store channel-first: lane axis = TH*W (dense, unmasked); this IS NCHW-flat layout
    o_ref[...] = jnp.transpose(y2, (1, 0)).reshape(1, c2, m2).astype(o_ref.dtype)


# --------------------------------- Pallas wrapper ----------------------------------
def _pick_tile_h(h, w, target):
    """Largest divisor of h that is <= target, preferring tiles whose output lane width
    th*w is a multiple of 128 (unmasked, lane-dense stores). No silent full-image fallback."""
    divs = [d for d in range(1, h + 1) if h % d == 0 and d <= max(1, target)]
    lane_dense = [d for d in divs if (d * w) % 128 == 0]
    return max(lane_dense) if lane_dense else max(divs)


def _vmem_limit_bytes():
    """Scoped-VMEM budget derived from the actual chip (v7x: 64 MiB; v5e/v6e: 128 MiB)."""
    try:
        cap = int(pltpu.get_tpu_info().vmem_capacity_bytes)
    except Exception:
        cap = 64 * 1024 * 1024
    return min((cap * 3) // 4, 112 * 1024 * 1024)


def arc_block(x_nchw, params, shortcut=True, compute_dtype=jnp.bfloat16, tile_h=8,
              out_dtype=None):
    """ARCBlock.forward: x + cv2(cv1(x)) if (shortcut and c1 == c2) else cv2(cv1(x))."""
    n, c1, h, w = x_nchw.shape
    w1, b1 = params["cv1"]              # (9*c1, c2), (1, c2)  -- BN folded
    w2, b2 = params["cv2"]              # (9*c2, c2), (1, c2)
    c2 = w1.shape[-1]
    add = bool(shortcut and c1 == c2)
    out_dtype = x_nchw.dtype if out_dtype is None else out_dtype   # bf16 here halves HBM writes
    th = _pick_tile_h(h, w, tile_h)

    x_nhwc = jnp.transpose(x_nchw, (0, 2, 3, 1))     # layout conversion at the boundary only

    kernel = functools.partial(arc_block_kernel, add=add, th=th, h=h, w=w)
    out_flat = pl.pallas_call(
        kernel,
        out_shape=jax.ShapeDtypeStruct((n, c2, h * w), out_dtype),
        grid=(n, h // th),
        in_specs=[
            pl.BlockSpec((1, h, w, c1), lambda i, r: (i, 0, 0, 0)),   # same block across r
            pl.BlockSpec((9 * c1, c2), lambda i, r: (0, 0)),
            pl.BlockSpec((1, c2), lambda i, r: (0, 0)),
            pl.BlockSpec((9 * c2, c2), lambda i, r: (0, 0)),
            pl.BlockSpec((1, c2), lambda i, r: (0, 0)),
        ],
        out_specs=pl.BlockSpec((1, c2, th * w), lambda i, r: (i, 0, r)),
        scratch_shapes=[
            pltpu.VMEM((h + 4, w + 2, c1), compute_dtype),        # padded input (staged once)
            pltpu.VMEM(((th + 2) * w, 9 * c1), compute_dtype),    # cv1 im2col slab
            pltpu.VMEM((th + 2, w + 2, c2), compute_dtype),       # padded cv1 activations
            pltpu.VMEM((th * w, 9 * c2), compute_dtype),          # cv2 im2col slab
        ],
        compiler_params=pltpu.CompilerParams(
            # r reuses the once-per-image staged scratch -> must stay on one core, in order
            dimension_semantics=("parallel", "arbitrary"),
            vmem_limit_bytes=_vmem_limit_bytes(),
        ),
    )(x_nhwc, w1.astype(compute_dtype), b1, w2.astype(compute_dtype), b2)
    return out_flat.reshape(n, c2, h, w)              # already NCHW; reshape is free


# ----------------------------- parameter construction -------------------------------
def init_arc_block_params(key, c1, c2, eps=1e-3):
    """Deterministic synthetic params; BN folded into conv weight/bias (eval semantics)."""
    def conv_bn(k, cin, cout):
        kw_, kg, kb, km, kv = jax.random.split(k, 5)
        wt = jax.random.normal(kw_, (cout, cin, 3, 3), jnp.float32) * 0.1   # PyTorch layout
        gamma = jax.random.uniform(kg, (cout,), jnp.float32, 0.5, 1.5)
        beta = jax.random.normal(kb, (cout,), jnp.float32) * 0.1
        mean = jax.random.normal(km, (cout,), jnp.float32) * 0.1
        var = jax.random.uniform(kv, (cout,), jnp.float32, 0.5, 1.5)
        scale = gamma / jnp.sqrt(var + eps)
        w_f = wt * scale[:, None, None, None]
        b_f = beta - mean * scale
        # (Cout,Cin,kh,kw) -> (kh,kw,Cin,Cout) -> (9*Cin, Cout);  K index = (kh*3+kw)*Cin + ci
        w_k = jnp.transpose(w_f, (2, 3, 1, 0)).reshape(9 * cin, cout)
        return w_k, b_f.reshape(1, cout)

    k1, k2 = jax.random.split(key)
    return {"cv1": conv_bn(k1, c1, c2), "cv2": conv_bn(k2, c2, c2)}


# ------------------------------- pure-JAX reference ---------------------------------
def _conv_ref(x_nhwc, w_k, b):
    n, h, w, cin = x_nhwc.shape
    cout = w_k.shape[-1]
    w4 = w_k.reshape(3, 3, cin, cout)
    xp = jnp.pad(x_nhwc, ((0, 0), (1, 1), (1, 1), (0, 0)))
    acc = jnp.zeros((n, h, w, cout), jnp.float32)
    for kh in range(3):
        for kw in range(3):
            acc += jnp.einsum("nhwc,cd->nhwd", xp[:, kh:kh + h, kw:kw + w, :], w4[kh, kw],
                              precision=jax.lax.Precision.HIGHEST)
    y = acc + b
    return y * jax.nn.sigmoid(y)


def arc_block_ref(x_nchw, params, shortcut=True):
    x = jnp.transpose(x_nchw, (0, 2, 3, 1))
    y1 = _conv_ref(x, *params["cv1"])
    y2 = _conv_ref(y1, *params["cv2"])
    if shortcut and x.shape[-1] == y2.shape[-1]:
        y2 = y2 + x
    return jnp.transpose(y2, (0, 3, 1, 2))


# -------------------------------------- main ----------------------------------------
if __name__ == "__main__":
    key = jax.random.PRNGKey(0)
    kx, kp = jax.random.split(key)
    N, C, H, W = 2, 4, 16, 16                      # c1 = c2 = 4 -> residual path active
    x = jax.random.normal(kx, (N, C, H, W), jnp.float32)
    params = init_arc_block_params(kp, C, C)

    out = jax.block_until_ready(arc_block(x, params, shortcut=True))
    ref = arc_block_ref(x, params, shortcut=True)

    assert out.shape == (N, C, H, W), out.shape
    err = float(jnp.max(jnp.abs(out - ref)))
    # bf16 MXU operands vs f32 HIGHEST reference -> slightly looser tolerance
    assert jnp.allclose(out, ref, atol=2e-2, rtol=2e-2), err
    print("KERNEL_OK")
</pallas_src>

<mosaic_0001>
module attributes {stable_mosaic.version = 11 : i64} {
  func.func @arc_block_kernel(%arg0: i32, %arg1: i32, %arg2: memref<1x16x16x4xf32, #tpu.memory_space<vmem>>, %arg3: memref<36x4xbf16, #tpu.memory_space<vmem>>, %arg4: memref<1x4xf32, #tpu.memory_space<vmem>>, %arg5: memref<36x4xbf16, #tpu.memory_space<vmem>>, %arg6: memref<1x4xf32, #tpu.memory_space<vmem>>, %arg7: memref<1x4x128xf32, #tpu.memory_space<vmem>>, %arg8: memref<20x18x4xbf16, #tpu.memory_space<vmem>>, %arg9: memref<160x36xbf16, #tpu.memory_space<vmem>>, %arg10: memref<10x18x4xbf16, #tpu.memory_space<vmem>>, %arg11: memref<128x36xbf16, #tpu.memory_space<vmem>>) attributes {dimension_semantics = [#tpu.dimension_semantics<parallel>, #tpu.dimension_semantics<arbitrary>], iteration_bounds = array<i64: 2, 2>, scalar_prefetch = 0 : i64, scratch_operands = 4 : i64, tpu.core_type = #tpu.core_type<tc>, window_params = [{transform_indices = @transform_0, window_bounds = array<i64: 1, 16, 16, 4>}, {pipeline_mode = #tpu.pipeline_mode<synchronous>, transform_indices = @transform_1, window_bounds = array<i64: 36, 4>}, {pipeline_mode = #tpu.pipeline_mode<synchronous>, transform_indices = @transform_2, window_bounds = array<i64: 1, 4>}, {pipeline_mode = #tpu.pipeline_mode<synchronous>, transform_indices = @transform_3, window_bounds = array<i64: 36, 4>}, {pipeline_mode = #tpu.pipeline_mode<synchronous>, transform_indices = @transform_4, window_bounds = array<i64: 1, 4>}, {transform_indices = @transform_5, window_bounds = array<i64: 1, 4, 128>}]} {
    %c8_i32 = arith.constant 8 : i32
    %0 = arith.muli %arg1, %c8_i32 : i32
    %1 = tpu.assume_multiple %0, 8 : i32
    %c0_i32 = arith.constant 0 : i32
    %2 = arith.cmpi eq, %arg1, %c0_i32 : i32
    %3 = arith.extui %2 : i1 to i32
    %c0_i32_0 = arith.constant 0 : i32
    %4 = arith.cmpi ne, %3, %c0_i32_0 : i32
    scf.if %4 {
      %cst_106 = arith.constant 0.000000e+00 : bf16
      %117 = vector.broadcast %cst_106 : bf16 to vector<2x18x4xbf16>
      %c0_107 = arith.constant 0 : index
      %c0_108 = arith.constant 0 : index
      %c0_109 = arith.constant 0 : index
      %118 = vector.load %arg8[%c0_107, %c0_108, %c0_109] : memref<20x18x4xbf16, #tpu.memory_space<vmem>>, vector<2x18x4xbf16>
      tpu.vector_store %arg8[%c0_107, %c0_108, %c0_109], %117 {strides = array<i32>} : memref<20x18x4xbf16, #tpu.memory_space<vmem>>, vector<2x18x4xbf16>,
      %c18 = arith.constant 18 : index
      %c0_110 = arith.constant 0 : index
      %c0_111 = arith.constant 0 : index
      %119 = vector.load %arg8[%c18, %c0_110, %c0_111] : memref<20x18x4xbf16, #tpu.memory_space<vmem>>, vector<2x18x4xbf16>
      tpu.vector_store %arg8[%c18, %c0_110, %c0_111], %117 {strides = array<i32>} : memref<20x18x4xbf16, #tpu.memory_space<vmem>>, vector<2x18x4xbf16>,
      %cst_112 = arith.constant 0.000000e+00 : bf16
      %120 = vector.broadcast %cst_112 : bf16 to vector<16x1x4xbf16>
      %c2_113 = arith.constant 2 : index
      %c0_114 = arith.constant 0 : index
      %c0_115 = arith.constant 0 : index
      %121 = vector.load %arg8[%c2_113, %c0_114, %c0_115] : memref<20x18x4xbf16, #tpu.memory_space<vmem>>, vector<16x1x4xbf16>
      tpu.vector_store %arg8[%c2_113, %c0_114, %c0_115], %120 {strides = array<i32>} : memref<20x18x4xbf16, #tpu.memory_space<vmem>>, vector<16x1x4xbf16>,
      %c2_116 = arith.constant 2 : index
      %c17 = arith.constant 17 : index
      %c0_117 = arith.constant 0 : index
      %122 = vector.load %arg8[%c2_116, %c17, %c0_117] : memref<20x18x4xbf16, #tpu.memory_space<vmem>>, vector<16x1x4xbf16>
      tpu.vector_store %arg8[%c2_116, %c17, %c0_117], %120 {strides = array<i32>} : memref<20x18x4xbf16, #tpu.memory_space<vmem>>, vector<16x1x4xbf16>,
      %c0_118 = arith.constant 0 : index
      %c0_119 = arith.constant 0 : index
      %c0_120 = arith.constant 0 : index
      %c0_121 = arith.constant 0 : index
      %123 = vector.load %arg2[%c0_118, %c0_119, %c0_120, %c0_121] : memref<1x16x16x4xf32, #tpu.memory_space<vmem>>, vector<1x16x16x4xf32>
      %124 = vector.shape_cast %123 : vector<1x16x16x4xf32> to vector<16x16x4xf32>
      %125 = arith.truncf %124 : vector<16x16x4xf32> to vector<16x16x4xbf16>
      %c2_122 = arith.constant 2 : index
      %c1_123 = arith.constant 1 : index
      %c0_124 = arith.constant 0 : index
      %126 = vector.load %arg8[%c2_122, %c1_123, %c0_124] : memref<20x18x4xbf16, #tpu.memory_space<vmem>>, vector<16x16x4xbf16>
      tpu.vector_store %arg8[%c2_122, %c1_123, %c0_124], %125 {strides = array<i32>} : memref<20x18x4xbf16, #tpu.memory_space<vmem>>, vector<16x16x4xbf16>,
      %cst_125 = arith.constant 0.000000e+00 : bf16
      %127 = vector.broadcast %cst_125 : bf16 to vector<10x1x4xbf16>
      %c0_126 = arith.constant 0 : index
      %c0_127 = arith.constant 0 : index
      %c0_128 = arith.constant 0 : index
      %128 = vector.load %arg10[%c0_126, %c0_127, %c0_128] : memref<10x18x4xbf16, #tpu.memory_space<vmem>>, vector<10x1x4xbf16>
      tpu.vector_store %arg10[%c0_126, %c0_127, %c0_128], %127 {strides = array<i32>} : memref<10x18x4xbf16, #tpu.memory_space<vmem>>, vector<10x1x4xbf16>,
      %c0_129 = arith.constant 0 : index
      %c17_130 = arith.constant 17 : index
      %c0_131 = arith.constant 0 : index
      %129 = vector.load %arg10[%c0_129, %c17_130, %c0_131] : memref<10x18x4xbf16, #tpu.memory_space<vmem>>, vector<10x1x4xbf16>
      tpu.vector_store %arg10[%c0_129, %c17_130, %c0_131], %127 {strides = array<i32>} : memref<10x18x4xbf16, #tpu.memory_space<vmem>>, vector<10x1x4xbf16>,
    } else {
    }
    %c0_i32_1 = arith.constant 0 : i32
    %5 = arith.addi %1, %c0_i32_1 : i32
    %6 = arith.index_cast %5 : i32 to index
    %c0 = arith.constant 0 : index
    %c0_2 = arith.constant 0 : index
    %7 = vector.load %arg8[%6, %c0, %c0_2] : memref<20x18x4xbf16, #tpu.memory_space<vmem>>, vector<10x16x4xbf16>
    %8 = vector.shape_cast %7 : vector<10x16x4xbf16> to vector<160x4xbf16>
    %c0_3 = arith.constant 0 : index
    %c0_4 = arith.constant 0 : index
    %9 = vector.load %arg9[%c0_3, %c0_4] : memref<160x36xbf16, #tpu.memory_space<vmem>>, vector<160x4xbf16>
    tpu.vector_store %arg9[%c0_3, %c0_4], %8 {strides = array<i32>} : memref<160x36xbf16, #tpu.memory_space<vmem>>, vector<160x4xbf16>,
    %c0_i32_5 = arith.constant 0 : i32
    %10 = arith.addi %1, %c0_i32_5 : i32
    %11 = arith.index_cast %10 : i32 to index
    %c1 = arith.constant 1 : index
    %c0_6 = arith.constant 0 : index
    %12 = vector.load %arg8[%11, %c1, %c0_6] : memref<20x18x4xbf16, #tpu.memory_space<vmem>>, vector<10x16x4xbf16>
    %13 = vector.shape_cast %12 : vector<10x16x4xbf16> to vector<160x4xbf16>
    %c0_7 = arith.constant 0 : index
    %c4 = arith.constant 4 : index
    %14 = vector.load %arg9[%c0_7, %c4] : memref<160x36xbf16, #tpu.memory_space<vmem>>, vector<160x4xbf16>
    tpu.vector_store %arg9[%c0_7, %c4], %13 {strides = array<i32>} : memref<160x36xbf16, #tpu.memory_space<vmem>>, vector<160x4xbf16>,
    %c0_i32_8 = arith.constant 0 : i32
    %15 = arith.addi %1, %c0_i32_8 : i32
    %16 = arith.index_cast %15 : i32 to index
    %c2 = arith.constant 2 : index
    %c0_9 = arith.constant 0 : index
    %17 = vector.load %arg8[%16, %c2, %c0_9] : memref<20x18x4xbf16, #tpu.memory_space<vmem>>, vector<10x16x4xbf16>
    %18 = vector.shape_cast %17 : vector<10x16x4xbf16> to vector<160x4xbf16>
    %c0_10 = arith.constant 0 : index
    %c8 = arith.constant 8 : index
    %19 = vector.load %arg9[%c0_10, %c8] : memref<160x36xbf16, #tpu.memory_space<vmem>>, vector<160x4xbf16>
    tpu.vector_store %arg9[%c0_10, %c8], %18 {strides = array<i32>} : memref<160x36xbf16, #tpu.memory_space<vmem>>, vector<160x4xbf16>,
    %c1_i32 = arith.constant 1 : i32
    %20 = arith.addi %1, %c1_i32 : i32
    %21 = arith.index_cast %20 : i32 to index
    %c0_11 = arith.constant 0 : index
    %c0_12 = arith.constant 0 : index
    %22 = vector.load %arg8[%21, %c0_11, %c0_12] : memref<20x18x4xbf16, #tpu.memory_space<vmem>>, vector<10x16x4xbf16>
    %23 = vector.shape_cast %22 : vector<10x16x4xbf16> to vector<160x4xbf16>
    %c0_13 = arith.constant 0 : index
    %c12 = arith.constant 12 : index
    %24 = vector.load %arg9[%c0_13, %c12] : memref<160x36xbf16, #tpu.memory_space<vmem>>, vector<160x4xbf16>
    tpu.vector_store %arg9[%c0_13, %c12], %23 {strides = array<i32>} : memref<160x36xbf16, #tpu.memory_space<vmem>>, vector<160x4xbf16>,
    %c1_i32_14 = arith.constant 1 : i32
    %25 = arith.addi %1, %c1_i32_14 : i32
    %26 = arith.index_cast %25 : i32 to index
    %c1_15 = arith.constant 1 : index
    %c0_16 = arith.constant 0 : index
    %27 = vector.load %arg8[%26, %c1_15, %c0_16] : memref<20x18x4xbf16, #tpu.memory_space<vmem>>, vector<10x16x4xbf16>
    %28 = vector.shape_cast %27 : vector<10x16x4xbf16> to vector<160x4xbf16>
    %c0_17 = arith.constant 0 : index
    %c16 = arith.constant 16 : index
    %29 = vector.load %arg9[%c0_17, %c16] : memref<160x36xbf16, #tpu.memory_space<vmem>>, vector<160x4xbf16>
    tpu.vector_store %arg9[%c0_17, %c16], %28 {strides = array<i32>} : memref<160x36xbf16, #tpu.memory_space<vmem>>, vector<160x4xbf16>,
    %c1_i32_18 = arith.constant 1 : i32
    %30 = arith.addi %1, %c1_i32_18 : i32
    %31 = arith.index_cast %30 : i32 to index
    %c2_19 = arith.constant 2 : index
    %c0_20 = arith.constant 0 : index
    %32 = vector.load %arg8[%31, %c2_19, %c0_20] : memref<20x18x4xbf16, #tpu.memory_space<vmem>>, vector<10x16x4xbf16>
    %33 = vector.shape_cast %32 : vector<10x16x4xbf16> to vector<160x4xbf16>
    %c0_21 = arith.constant 0 : index
    %c20 = arith.constant 20 : index
    %34 = vector.load %arg9[%c0_21, %c20] : memref<160x36xbf16, #tpu.memory_space<vmem>>, vector<160x4xbf16>
    tpu.vector_store %arg9[%c0_21, %c20], %33 {strides = array<i32>} : memref<160x36xbf16, #tpu.memory_space<vmem>>, vector<160x4xbf16>,
    %c2_i32 = arith.constant 2 : i32
    %35 = arith.addi %1, %c2_i32 : i32
    %36 = arith.index_cast %35 : i32 to index
    %c0_22 = arith.constant 0 : index
    %c0_23 = arith.constant 0 : index
    %37 = vector.load %arg8[%36, %c0_22, %c0_23] : memref<20x18x4xbf16, #tpu.memory_space<vmem>>, vector<10x16x4xbf16>
    %38 = vector.shape_cast %37 : vector<10x16x4xbf16> to vector<160x4xbf16>
    %c0_24 = arith.constant 0 : index
    %c24 = arith.constant 24 : index
    %39 = vector.load %arg9[%c0_24, %c24] : memref<160x36xbf16, #tpu.memory_space<vmem>>, vector<160x4xbf16>
    tpu.vector_store %arg9[%c0_24, %c24], %38 {strides = array<i32>} : memref<160x36xbf16, #tpu.memory_space<vmem>>, vector<160x4xbf16>,
    %c2_i32_25 = arith.constant 2 : i32
    %40 = arith.addi %1, %c2_i32_25 : i32
    %41 = arith.index_cast %40 : i32 to index
    %c1_26 = arith.constant 1 : index
    %c0_27 = arith.constant 0 : index
    %42 = vector.load %arg8[%41, %c1_26, %c0_27] : memref<20x18x4xbf16, #tpu.memory_space<vmem>>, vector<10x16x4xbf16>
    %43 = vector.shape_cast %42 : vector<10x16x4xbf16> to vector<160x4xbf16>
    %c0_28 = arith.constant 0 : index
    %c28 = arith.constant 28 : index
    %44 = vector.load %arg9[%c0_28, %c28] : memref<160x36xbf16, #tpu.memory_space<vmem>>, vector<160x4xbf16>
    tpu.vector_store %arg9[%c0_28, %c28], %43 {strides = array<i32>} : memref<160x36xbf16, #tpu.memory_space<vmem>>, vector<160x4xbf16>,
    %c2_i32_29 = arith.constant 2 : i32
    %45 = arith.addi %1, %c2_i32_29 : i32
    %46 = arith.index_cast %45 : i32 to index
    %c2_30 = arith.constant 2 : index
    %c0_31 = arith.constant 0 : index
    %47 = vector.load %arg8[%46, %c2_30, %c0_31] : memref<20x18x4xbf16, #tpu.memory_space<vmem>>, vector<10x16x4xbf16>
    %48 = vector.shape_cast %47 : vector<10x16x4xbf16> to vector<160x4xbf16>
    %c0_32 = arith.constant 0 : index
    %c32 = arith.constant 32 : index
    %49 = vector.load %arg9[%c0_32, %c32] : memref<160x36xbf16, #tpu.memory_space<vmem>>, vector<160x4xbf16>
    tpu.vector_store %arg9[%c0_32, %c32], %48 {strides = array<i32>} : memref<160x36xbf16, #tpu.memory_space<vmem>>, vector<160x4xbf16>,
    %c0_33 = arith.constant 0 : index
    %c0_34 = arith.constant 0 : index
    %50 = vector.load %arg9[%c0_33, %c0_34] : memref<160x36xbf16, #tpu.memory_space<vmem>>, vector<160x36xbf16>
    %c0_35 = arith.constant 0 : index
    %c0_36 = arith.constant 0 : index
    %51 = vector.load %arg3[%c0_35, %c0_36] : memref<36x4xbf16, #tpu.memory_space<vmem>>, vector<36x4xbf16>
    %cst = arith.constant dense<0.000000e+00> : vector<160x4xf32>
    %52 = tpu.matmul %50, %51, %cst {dimension_numbers = #tpu.dot_dimension_numbers<[1], [0], [0], [1], [0, 0, 1, 1], [], []>} : vector<160x36xbf16>, vector<36x4xbf16>, vector<160x4xf32> -> vector<160x4xf32>
    %c0_37 = arith.constant 0 : index
    %c0_38 = arith.constant 0 : index
    %53 = vector.load %arg4[%c0_37, %c0_38] : memref<1x4xf32, #tpu.memory_space<vmem>>, vector<1x4xf32>
    %54 = vector.broadcast %53 : vector<1x4xf32> to vector<160x4xf32>
    %55 = arith.addf %52, %54 : vector<160x4xf32>
    %56 = arith.negf %55 : vector<160x4xf32>
    %57 = math.exp %56 : vector<160x4xf32>
    %cst_39 = arith.constant 1.000000e+00 : f32
    %58 = vector.broadcast %cst_39 : f32 to vector<160x4xf32>
    %59 = arith.addf %58, %57 : vector<160x4xf32>
    %60 = arith.divf %58, %59 : vector<160x4xf32>
    %61 = arith.mulf %55, %60 : vector<160x4xf32>
    %62 = vector.shape_cast %61 : vector<160x4xf32> to vector<10x16x4xf32>
    %63 = arith.truncf %62 : vector<10x16x4xf32> to vector<10x16x4xbf16>
    %c0_40 = arith.constant 0 : index
    %c1_41 = arith.constant 1 : index
    %c0_42 = arith.constant 0 : index
    %64 = vector.load %arg10[%c0_40, %c1_41, %c0_42] : memref<10x18x4xbf16, #tpu.memory_space<vmem>>, vector<10x16x4xbf16>
    tpu.vector_store %arg10[%c0_40, %c1_41, %c0_42], %63 {strides = array<i32>} : memref<10x18x4xbf16, #tpu.memory_space<vmem>>, vector<10x16x4xbf16>,
    %c0_i32_43 = arith.constant 0 : i32
    %65 = arith.cmpi eq, %arg1, %c0_i32_43 : i32
    %66 = arith.extui %65 : i1 to i32
    %c0_i32_44 = arith.constant 0 : i32
    %67 = arith.cmpi ne, %66, %c0_i32_44 : i32
    scf.if %67 {
      %cst_106 = arith.constant 0.000000e+00 : bf16
      %117 = vector.broadcast %cst_106 : bf16 to vector<1x16x4xbf16>
      %c0_107 = arith.constant 0 : index
      %c1_108 = arith.constant 1 : index
      %c0_109 = arith.constant 0 : index
      %118 = vector.load %arg10[%c0_107, %c1_108, %c0_109] : memref<10x18x4xbf16, #tpu.memory_space<vmem>>, vector<1x16x4xbf16>
      tpu.vector_store %arg10[%c0_107, %c1_108, %c0_109], %117 {strides = array<i32>} : memref<10x18x4xbf16, #tpu.memory_space<vmem>>, vector<1x16x4xbf16>,
    } else {
    }
    %c1_i32_45 = arith.constant 1 : i32
    %68 = arith.cmpi eq, %arg1, %c1_i32_45 : i32
    %69 = arith.extui %68 : i1 to i32
    %c0_i32_46 = arith.constant 0 : i32
    %70 = arith.cmpi ne, %69, %c0_i32_46 : i32
    scf.if %70 {
      %cst_106 = arith.constant 0.000000e+00 : bf16
      %117 = vector.broadcast %cst_106 : bf16 to vector<1x16x4xbf16>
      %c9 = arith.constant 9 : index
      %c1_107 = arith.constant 1 : index
      %c0_108 = arith.constant 0 : index
      %118 = vector.load %arg10[%c9, %c1_107, %c0_108] : memref<10x18x4xbf16, #tpu.memory_space<vmem>>, vector<1x16x4xbf16>
      tpu.vector_store %arg10[%c9, %c1_107, %c0_108], %117 {strides = array<i32>} : memref<10x18x4xbf16, #tpu.memory_space<vmem>>, vector<1x16x4xbf16>,
    } else {
    }
    %c0_47 = arith.constant 0 : index
    %c0_48 = arith.constant 0 : index
    %c0_49 = arith.constant 0 : index
    %71 = vector.load %arg10[%c0_47, %c0_48, %c0_49] : memref<10x18x4xbf16, #tpu.memory_space<vmem>>, vector<8x16x4xbf16>
    %72 = vector.shape_cast %71 : vector<8x16x4xbf16> to vector<128x4xbf16>
    %c0_50 = arith.constant 0 : index
    %c0_51 = arith.constant 0 : index
    %73 = vector.load %arg11[%c0_50, %c0_51] : memref<128x36xbf16, #tpu.memory_space<vmem>>, vector<128x4xbf16>
    tpu.vector_store %arg11[%c0_50, %c0_51], %72 {strides = array<i32>} : memref<128x36xbf16, #tpu.memory_space<vmem>>, vector<128x4xbf16>,
    %c0_52 = arith.constant 0 : index
    %c1_53 = arith.constant 1 : index
    %c0_54 = arith.constant 0 : index
    %74 = vector.load %arg10[%c0_52, %c1_53, %c0_54] : memref<10x18x4xbf16, #tpu.memory_space<vmem>>, vector<8x16x4xbf16>
    %75 = vector.shape_cast %74 : vector<8x16x4xbf16> to vector<128x4xbf16>
    %c0_55 = arith.constant 0 : index
    %c4_56 = arith.constant 4 : index
    %76 = vector.load %arg11[%c0_55, %c4_56] : memref<128x36xbf16, #tpu.memory_space<vmem>>, vector<128x4xbf16>
    tpu.vector_store %arg11[%c0_55, %c4_56], %75 {strides = array<i32>} : memref<128x36xbf16, #tpu.memory_space<vmem>>, vector<128x4xbf16>,
    %c0_57 = arith.constant 0 : index
    %c2_58 = arith.constant 2 : index
    %c0_59 = arith.constant 0 : index
    %77 = vector.load %arg10[%c0_57, %c2_58, %c0_59] : memref<10x18x4xbf16, #tpu.memory_space<vmem>>, vector<8x16x4xbf16>
    %78 = vector.shape_cast %77 : vector<8x16x4xbf16> to vector<128x4xbf16>
    %c0_60 = arith.constant 0 : index
    %c8_61 = arith.constant 8 : index
    %79 = vector.load %arg11[%c0_60, %c8_61] : memref<128x36xbf16, #tpu.memory_space<vmem>>, vector<128x4xbf16>
    tpu.vector_store %arg11[%c0_60, %c8_61], %78 {strides = array<i32>} : memref<128x36xbf16, #tpu.memory_space<vmem>>, vector<128x4xbf16>,
    %c1_62 = arith.constant 1 : index
    %c0_63 = arith.constant 0 : index
    %c0_64 = arith.constant 0 : index
    %80 = vector.load %arg10[%c1_62, %c0_63, %c0_64] : memref<10x18x4xbf16, #tpu.memory_space<vmem>>, vector<8x16x4xbf16>
    %81 = vector.shape_cast %80 : vector<8x16x4xbf16> to vector<128x4xbf16>
    %c0_65 = arith.constant 0 : index
    %c12_66 = arith.constant 12 : index
    %82 = vector.load %arg11[%c0_65, %c12_66] : memref<128x36xbf16, #tpu.memory_space<vmem>>, vector<128x4xbf16>
    tpu.vector_store %arg11[%c0_65, %c12_66], %81 {strides = array<i32>} : memref<128x36xbf16, #tpu.memory_space<vmem>>, vector<128x4xbf16>,
    %c1_67 = arith.constant 1 : index
    %c1_68 = arith.constant 1 : index
    %c0_69 = arith.constant 0 : index
    %83 = vector.load %arg10[%c1_67, %c1_68, %c0_69] : memref<10x18x4xbf16, #tpu.memory_space<vmem>>, vector<8x16x4xbf16>
    %84 = vector.shape_cast %83 : vector<8x16x4xbf16> to vector<128x4xbf16>
    %c0_70 = arith.constant 0 : index
    %c16_71 = arith.constant 16 : index
    %85 = vector.load %arg11[%c0_70, %c16_71] : memref<128x36xbf16, #tpu.memory_space<vmem>>, vector<128x4xbf16>
    tpu.vector_store %arg11[%c0_70, %c16_71], %84 {strides = array<i32>} : memref<128x36xbf16, #tpu.memory_space<vmem>>, vector<128x4xbf16>,
    %c1_72 = arith.constant 1 : index
    %c2_73 = arith.constant 2 : index
    %c0_74 = arith.constant 0 : index
    %86 = vector.load %arg10[%c1_72, %c2_73, %c0_74] : memref<10x18x4xbf16, #tpu.memory_space<vmem>>, vector<8x16x4xbf16>
    %87 = vector.shape_cast %86 : vector<8x16x4xbf16> to vector<128x4xbf16>
    %c0_75 = arith.constant 0 : index
    %c20_76 = arith.constant 20 : index
    %88 = vector.load %arg11[%c0_75, %c20_76] : memref<128x36xbf16, #tpu.memory_space<vmem>>, vector<128x4xbf16>
    tpu.vector_store %arg11[%c0_75, %c20_76], %87 {strides = array<i32>} : memref<128x36xbf16, #tpu.memory_space<vmem>>, vector<128x4xbf16>,
    %c2_77 = arith.constant 2 : index
    %c0_78 = arith.constant 0 : index
    %c0_79 = arith.constant 0 : index
    %89 = vector.load %arg10[%c2_77, %c0_78, %c0_79] : memref<10x18x4xbf16, #tpu.memory_space<vmem>>, vector<8x16x4xbf16>
    %90 = vector.shape_cast %89 : vector<8x16x4xbf16> to vector<128x4xbf16>
    %c0_80 = arith.constant 0 : index
    %c24_81 = arith.constant 24 : index
    %91 = vector.load %arg11[%c0_80, %c24_81] : memref<128x36xbf16, #tpu.memory_space<vmem>>, vector<128x4xbf16>
    tpu.vector_store %arg11[%c0_80, %c24_81], %90 {strides = array<i32>} : memref<128x36xbf16, #tpu.memory_space<vmem>>, vector<128x4xbf16>,
    %c2_82 = arith.constant 2 : index
    %c1_83 = arith.constant 1 : index
    %c0_84 = arith.constant 0 : index
    %92 = vector.load %arg10[%c2_82, %c1_83, %c0_84] : memref<10x18x4xbf16, #tpu.memory_space<vmem>>, vector<8x16x4xbf16>
    %93 = vector.shape_cast %92 : vector<8x16x4xbf16> to vector<128x4xbf16>
    %c0_85 = arith.constant 0 : index
    %c28_86 = arith.constant 28 : index
    %94 = vector.load %arg11[%c0_85, %c28_86] : memref<128x36xbf16, #tpu.memory_space<vmem>>, vector<128x4xbf16>
    tpu.vector_store %arg11[%c0_85, %c28_86], %93 {strides = array<i32>} : memref<128x36xbf16, #tpu.memory_space<vmem>>, vector<128x4xbf16>,
    %c2_87 = arith.constant 2 : index
    %c2_88 = arith.constant 2 : index
    %c0_89 = arith.constant 0 : index
    %95 = vector.load %arg10[%c2_87, %c2_88, %c0_89] : memref<10x18x4xbf16, #tpu.memory_space<vmem>>, vector<8x16x4xbf16>
    %96 = vector.shape_cast %95 : vector<8x16x4xbf16> to vector<128x4xbf16>
    %c0_90 = arith.constant 0 : index
    %c32_91 = arith.constant 32 : index
    %97 = vector.load %arg11[%c0_90, %c32_91] : memref<128x36xbf16, #tpu.memory_space<vmem>>, vector<128x4xbf16>
    tpu.vector_store %arg11[%c0_90, %c32_91], %96 {strides = array<i32>} : memref<128x36xbf16, #tpu.memory_space<vmem>>, vector<128x4xbf16>,
    %c0_92 = arith.constant 0 : index
    %c0_93 = arith.constant 0 : index
    %98 = vector.load %arg11[%c0_92, %c0_93] : memref<128x36xbf16, #tpu.memory_space<vmem>>, vector<128x36xbf16>
    %c0_94 = arith.constant 0 : index
    %c0_95 = arith.constant 0 : index
    %99 = vector.load %arg5[%c0_94, %c0_95] : memref<36x4xbf16, #tpu.memory_space<vmem>>, vector<36x4xbf16>
    %cst_96 = arith.constant dense<0.000000e+00> : vector<128x4xf32>
    %100 = tpu.matmul %98, %99, %cst_96 {dimension_numbers = #tpu.dot_dimension_numbers<[1], [0], [0], [1], [0, 0, 1, 1], [], []>} : vector<128x36xbf16>, vector<36x4xbf16>, vector<128x4xf32> -> vector<128x4xf32>
    %c0_97 = arith.constant 0 : index
    %c0_98 = arith.constant 0 : index
    %101 = vector.load %arg6[%c0_97, %c0_98] : memref<1x4xf32, #tpu.memory_space<vmem>>, vector<1x4xf32>
    %102 = vector.broadcast %101 : vector<1x4xf32> to vector<128x4xf32>
    %103 = arith.addf %100, %102 : vector<128x4xf32>
    %104 = arith.negf %103 : vector<128x4xf32>
    %105 = math.exp %104 : vector<128x4xf32>
    %cst_99 = arith.constant 1.000000e+00 : f32
    %106 = vector.broadcast %cst_99 : f32 to vector<128x4xf32>
    %107 = arith.addf %106, %105 : vector<128x4xf32>
    %108 = arith.divf %106, %107 : vector<128x4xf32>
    %109 = arith.mulf %103, %108 : vector<128x4xf32>
    %c0_100 = arith.constant 0 : index
    %110 = arith.index_cast %1 : i32 to index
    %c0_101 = arith.constant 0 : index
    %c0_102 = arith.constant 0 : index
    %111 = vector.load %arg2[%c0_100, %110, %c0_101, %c0_102] : memref<1x16x16x4xf32, #tpu.memory_space<vmem>>, vector<1x8x16x4xf32>
    %112 = vector.shape_cast %111 : vector<1x8x16x4xf32> to vector<128x4xf32>
    %113 = arith.addf %109, %112 : vector<128x4xf32>
    %114 = tpu.transpose %113, [1, 0] : vector<128x4xf32> -> vector<4x128xf32>
    %115 = vector.shape_cast %114 : vector<4x128xf32> to vector<1x4x128xf32>
    %c0_103 = arith.constant 0 : index
    %c0_104 = arith.constant 0 : index
    %c0_105 = arith.constant 0 : index
    %116 = vector.load %arg7[%c0_103, %c0_104, %c0_105] : memref<1x4x128xf32, #tpu.memory_space<vmem>>, vector<1x4x128xf32>
    tpu.vector_store %arg7[%c0_103, %c0_104, %c0_105], %115 {strides = array<i32>} : memref<1x4x128xf32, #tpu.memory_space<vmem>>, vector<1x4x128xf32>,
    return
  }
  func.func @transform_0(%arg0: i32, %arg1: i32) -> (i32, i32, i32, i32) {
    %c0_i32 = arith.constant 0 : i32
    %c0_i32_0 = arith.constant 0 : i32
    %c0_i32_1 = arith.constant 0 : i32
    %c0_i32_2 = arith.constant 0 : i32
    return %arg0, %c0_i32, %c0_i32_0, %c0_i32_1 : i32, i32, i32, i32
  }
  func.func @transform_1(%arg0: i32, %arg1: i32) -> (i32, i32) {
    %c0_i32 = arith.constant 0 : i32
    %c0_i32_0 = arith.constant 0 : i32
    %c0_i32_1 = arith.constant 0 : i32
    return %c0_i32, %c0_i32_0 : i32, i32
  }
  func.func @transform_2(%arg0: i32, %arg1: i32) -> (i32, i32) {
    %c0_i32 = arith.constant 0 : i32
    %c0_i32_0 = arith.constant 0 : i32
    %c0_i32_1 = arith.constant 0 : i32
    return %c0_i32, %c0_i32_0 : i32, i32
  }
  func.func @transform_3(%arg0: i32, %arg1: i32) -> (i32, i32) {
    %c0_i32 = arith.constant 0 : i32
    %c0_i32_0 = arith.constant 0 : i32
    %c0_i32_1 = arith.constant 0 : i32
    return %c0_i32, %c0_i32_0 : i32, i32
  }
  func.func @transform_4(%arg0: i32, %arg1: i32) -> (i32, i32) {
    %c0_i32 = arith.constant 0 : i32
    %c0_i32_0 = arith.constant 0 : i32
    %c0_i32_1 = arith.constant 0 : i32
    return %c0_i32, %c0_i32_0 : i32, i32
  }
  func.func @transform_5(%arg0: i32, %arg1: i32) -> (i32, i32, i32) {
    %c0_i32 = arith.constant 0 : i32
    %c0_i32_0 = arith.constant 0 : i32
    return %arg0, %c0_i32, %arg1 : i32, i32, i32
  }
}

</mosaic_0001>

<llo_original>
// kernel: tpu_custom_call.1
$region0: #{tpu_custom_call.1}
  #allocation0 [shape = 'u32[]', space=smem, size = 0x4, offset = 0x4, fixed_abs, tag = 'smem constant byte address 0x4 - core index']
  #allocation1 [shape = 'u32[72,128]{1,0:T(1,128)}', space=vmem, size = 0x9000, scoped, tag = 'internal scratch']
  #allocation2 [shape = 'bf16[20,18,4]{2,1,0:T(8,128)(2,1)}', space=vmem, size = 0x1e000, scoped, tag = 'scratch operand']
  #allocation3 [shape = 'bf16[160,36]{1,0:T(8,128)(2,1)}', space=vmem, size = 0xa000, scoped, tag = 'scratch operand']
  #allocation4 [shape = 'bf16[10,18,4]{2,1,0:T(8,128)(2,1)}', space=vmem, size = 0xf000, scoped, tag = 'scratch operand']
  #allocation5 [shape = 'bf16[128,36]{1,0:T(8,128)(2,1)}', space=vmem, size = 0x8000, scoped, tag = 'scratch operand']
  %s0 = inlined_call_operand.vmem [shape: f32[2,16,16,4], index: 0, kind: input, shape index: {}]
  %s1 = inlined_call_operand.vmem [shape: bf16[36,4], index: 1, kind: input, shape index: {}]
  %s2 = inlined_call_operand.vmem [shape: f32[1,4], index: 2, kind: input, shape index: {}]
  %s3 = inlined_call_operand.vmem [shape: bf16[36,4], index: 3, kind: input, shape index: {}]
  %s4 = inlined_call_operand.vmem [shape: f32[1,4], index: 4, kind: input, shape index: {}]
  %s5 = inlined_call_operand.hbm [shape: f32[2,4,256], index: 5, kind: output, shape index: {}]
  %s6 = sld [smem:[#allocation0]]
  $region65: #{tpu_custom_call.1} parent=0
    _
  %s8 = ssub.s32 1, %s6
  %s9 = scalar_select 0, %s8, %s6
  $region1: #{tpu_custom_call.1} parent=0
    #allocation6 [shape = 'u8[4096]{0}', space=vmem, size = 0x1000, scoped, tag = 'output window, operand 0']
    #allocation7 [shape = 's32[2]{0}', space=sflag, size = 0x8, scoped, tag = 'scoped memory for tpu_custom_call.1']
    %10 = vsyncpa [#allocation7], 0
    %s11 = scalar_lea.sflag [#allocation7], 1
    %12 = vsyncpa %s11, 0
    loop: start=0, step=1, limit=6
    $region2: #{tpu_custom_call.1} parent=1 // loop_pre_header
      _
    $region3: #{tpu_custom_call.1} parent=1 // loop_header
      %s14 = sphi 0, %s18
      %p15 = scmp.ge.s32.totalorder %s14, 6
      %s21 = sphi 0, %s33
      %s22 = sphi 0, %s29
      %s23 = sphi 0, %s21
      %s24 = sphi 0, %s22
      %s25 = sphi 0, %s23
      %s26 = sphi 0, %s24
      %s36 = sphi 0, %s38
      %s39 = sphi 0, %s36
      %s40 = sphi 0, %s39
      %s56 = sphi 0, %s40
      %s60 = sphi 0, %s60
      %s62 = sphi 0, %s60
      %s63 = sphi 0, %s62
      %s77 = sphi 0, %s63
      %s81 = sphi 0, %s81
      %s83 = sphi 0, %s81
      %s84 = sphi 0, %s83
      %s98 = sphi 0, %s84
      %s102 = sphi 0, %s102
      %s104 = sphi 0, %s102
      %s105 = sphi 0, %s104
      %s119 = sphi 0, %s105
      %s123 = sphi 0, %s123
      %s125 = sphi 0, %s123
      %s126 = sphi 0, %s125
      %s140 = sphi 0, %s126
      %s148 = sphi 0, %s150
      %s151 = sphi 0, %s148
      %s152 = sphi 0, %s151
      %s168 = sphi 0, %s152
    $region4: #{tpu_custom_call.1} parent=1 // loop_header_branch
      %17 = sbr.rel (%p15) target = $region8
    $region5: #{tpu_custom_call.1} parent=1 // loop_body
      %s19 = ssub.s32 %s14, 1
      %s20 = ssub.s32 %s14, 2
      %s27 = sadd.s32 1, %s22
      %p28 = scmp.ge.s32.totalorder %s27, 2
      %s29 = scalar_select %p28, 0, %s27
      %s30 = sadd.s32 1, %s21
      %s31 = scalar_select %p28, %s30, %s21
      %p32 = scmp.ge.s32.totalorder %s31, 2
      %s33 = scalar_select %p32, 0, %s31
      %s34 = ssub.s32 %s21, %s33
      %p35 = scmp.eq.s32.totalorder %s34, 0
      %s37 = sadd.s32 %s36, 1
      %s38 = scalar_select %p35, %s36, %s37
      %p41 = pneg %p35
      %p42 = scmp.eq.s32.totalorder %s14, 3
      %p43 = por %p41, %p42
      %p44 = scmp.ne.s32.totalorder %s36, %s39
      %p45 = scmp.eq.s32.totalorder %s14, 0
      %p46 = por %p44, %p45
      %p47 = scmp.ne.s32.totalorder %s36, %s39
      %p48 = scmp.eq.s32.totalorder %s19, 3
      %p49 = por %p47, %p48
      %p50 = scmp.ne.s32.totalorder %s39, %s40
      %p51 = scmp.eq.s32.totalorder %s19, 0
      %p52 = por %p50, %p51
      %p53 = scmp.ne.s32.totalorder %s39, %s40
      %p54 = scmp.eq.s32.totalorder %s20, 3
      %p55 = por %p53, %p54
      %p57 = scmp.ne.s32.totalorder %s40, %s56
      %p58 = scmp.eq.s32.totalorder %s20, 0
      %p59 = por %p57, %p58
      %s61 = sadd.s32 %s60, 1
      %p64 = scmp.eq.s32.totalorder %s14, 3
      %p65 = scmp.ne.s32.totalorder %s60, %s62
      %p66 = scmp.eq.s32.totalorder %s14, 0
      %p67 = por %p65, %p66
      %p68 = scmp.ne.s32.totalorder %s60, %s62
      %p69 = scmp.eq.s32.totalorder %s19, 3
      %p70 = por %p68, %p69
      %p71 = scmp.ne.s32.totalorder %s62, %s63
      %p72 = scmp.eq.s32.totalorder %s19, 0
      %p73 = por %p71, %p72
      %p74 = scmp.ne.s32.totalorder %s62, %s63
      %p75 = scmp.eq.s32.totalorder %s20, 3
      %p76 = por %p74, %p75
      %p78 = scmp.ne.s32.totalorder %s63, %s77
      %p79 = scmp.eq.s32.totalorder %s20, 0
      %p80 = por %p78, %p79
      %s82 = sadd.s32 %s81, 1
      %p85 = scmp.eq.s32.totalorder %s14, 3
      %p86 = scmp.ne.s32.totalorder %s81, %s83
      %p87 = scmp.eq.s32.totalorder %s14, 0
      %p88 = por %p86, %p87
      %p89 = scmp.ne.s32.totalorder %s81, %s83
      %p90 = scmp.eq.s32.totalorder %s19, 3
      %p91 = por %p89, %p90
      %p92 = scmp.ne.s32.totalorder %s83, %s84
      %p93 = scmp.eq.s32.totalorder %s19, 0
      %p94 = por %p92, %p93
      %p95 = scmp.ne.s32.totalorder %s83, %s84
      %p96 = scmp.eq.s32.totalorder %s20, 3
      %p97 = por %p95, %p96
      %p99 = scmp.ne.s32.totalorder %s84, %s98
      %p100 = scmp.eq.s32.totalorder %s20, 0
      %p101 = por %p99, %p100
      %s103 = sadd.s32 %s102, 1
      %p106 = scmp.eq.s32.totalorder %s14, 3
      %p107 = scmp.ne.s32.totalorder %s102, %s104
      %p108 = scmp.eq.s32.totalorder %s14, 0
      %p109 = por %p107, %p108
      %p110 = scmp.ne.s32.totalorder %s102, %s104
      %p111 = scmp.eq.s32.totalorder %s19, 3
      %p112 = por %p110, %p111
      %p113 = scmp.ne.s32.totalorder %s104, %s105
      %p114 = scmp.eq.s32.totalorder %s19, 0
      %p115 = por %p113, %p114
      %p116 = scmp.ne.s32.totalorder %s104, %s105
      %p117 = scmp.eq.s32.totalorder %s20, 3
      %p118 = por %p116, %p117
      %p120 = scmp.ne.s32.totalorder %s105, %s119
      %p121 = scmp.eq.s32.totalorder %s20, 0
      %p122 = por %p120, %p121
      %s124 = sadd.s32 %s123, 1
      %p127 = scmp.eq.s32.totalorder %s14, 3
      %p128 = scmp.ne.s32.totalorder %s123, %s125
      %p129 = scmp.eq.s32.totalorder %s14, 0
      %p130 = por %p128, %p129
      %p131 = scmp.ne.s32.totalorder %s123, %s125
      %p132 = scmp.eq.s32.totalorder %s19, 3
      %p133 = por %p131, %p132
      %p134 = scmp.ne.s32.totalorder %s125, %s126
      %p135 = scmp.eq.s32.totalorder %s19, 0
      %p136 = por %p134, %p135
      %p137 = scmp.ne.s32.totalorder %s125, %s126
      %p138 = scmp.eq.s32.totalorder %s20, 3
      %p139 = por %p137, %p138
      %p141 = scmp.ne.s32.totalorder %s126, %s140
      %p142 = scmp.eq.s32.totalorder %s20, 0
      %p143 = por %p141, %p142
      %s144 = ssub.s32 %s21, %s33
      %s145 = ssub.s32 %s22, %s29
      %s146 = sor.u32 %s144, %s145
      %p147 = scmp.eq.s32.totalorder %s146, 0
      %s149 = sadd.s32 %s148, 1
      %s150 = scalar_select %p147, %s148, %s149
      %p153 = pneg %p147
      %p154 = scmp.eq.s32.totalorder %s14, 3
      %p155 = por %p153, %p154
      %p156 = scmp.ne.s32.totalorder %s148, %s151
      %p157 = scmp.eq.s32.totalorder %s14, 0
      %p158 = por %p156, %p157
      %p159 = scmp.ne.s32.totalorder %s148, %s151
      %p160 = scmp.eq.s32.totalorder %s19, 3
      %p161 = por %p159, %p160
      %p162 = scmp.ne.s32.totalorder %s151, %s152
      %p163 = scmp.eq.s32.totalorder %s19, 0
      %p164 = por %p162, %p163
      %p165 = scmp.ne.s32.totalorder %s151, %s152
      %p166 = scmp.eq.s32.totalorder %s20, 3
      %p167 = por %p165, %p166
      %p169 = scmp.ne.s32.totalorder %s152, %s168
      %p170 = scmp.eq.s32.totalorder %s20, 0
      %p171 = por %p169, %p170
      %p172 = scmp.le.s32.totalorder 1, %s14
      %p173 = scmp.lt.s32.totalorder %s14, 5
      %p174 = pnand %p172, %p173
      %p175 = pneg %p174
      // Predicated region
      $region9: #{tpu_custom_call.1} parent=5 // pred_check
        _
      $region10: #{tpu_custom_call.1} parent=5 // pred_check_branch
        %177 = sbr.rel (%p174) target = $region12
      $region11: #{tpu_custom_call.1} parent=5 // pred_region
        %s178 = ssub.s32 %s14, 1
        // Predicated region
        $region13: #{tpu_custom_call.1} parent=11 // pred_check
          %p179 = pneg %p73
        $region14: #{tpu_custom_call.1} parent=11 // pred_check_branch
          %181 = sbr.rel (%p179) target = $region16
        $region15: #{tpu_custom_call.1} parent=11 // pred_region
          _
        $region16: #{tpu_custom_call.1} parent=11 // pred_fallthru
          _
        // Predicated region
        $region17: #{tpu_custom_call.1} parent=11 // pred_check
          %p182 = pneg %p94
        $region18: #{tpu_custom_call.1} parent=11 // pred_check_branch
          %184 = sbr.rel (%p182) target = $region20
        $region19: #{tpu_custom_call.1} parent=11 // pred_region
          _
        $region20: #{tpu_custom_call.1} parent=11 // pred_fallthru
          _
        // Predicated region
        $region21: #{tpu_custom_call.1} parent=11 // pred_check
          %p185 = pneg %p115
        $region22: #{tpu_custom_call.1} parent=11 // pred_check_branch
          %187 = sbr.rel (%p185) target = $region24
        $region23: #{tpu_custom_call.1} parent=11 // pred_region
          _
        $region24: #{tpu_custom_call.1} parent=11 // pred_fallthru
          _
        // Predicated region
        $region25: #{tpu_custom_call.1} parent=11 // pred_check
          %p188 = pneg %p136
        $region26: #{tpu_custom_call.1} parent=11 // pred_check_branch
          %190 = sbr.rel (%p188) target = $region28
        $region27: #{tpu_custom_call.1} parent=11 // pred_region
          _
        $region28: #{tpu_custom_call.1} parent=11 // pred_fallthru
          _
      $region12: #{tpu_custom_call.1} parent=5 // pred_fallthru
        _
      %p191 = scmp.lt.s32.totalorder %s14, 4
      // Predicated region
      $region29: #{tpu_custom_call.1} parent=5 // pred_check
        %p192 = pneg %p191
      $region30: #{tpu_custom_call.1} parent=5 // pred_check_branch
        %194 = sbr.rel (%p192) target = $region32
      $region31: #{tpu_custom_call.1} parent=5 // pred_region
        // Predicated region
        $region33: #{tpu_custom_call.1} parent=31 // pred_check
          %p195 = pneg %p46
        $region34: #{tpu_custom_call.1} parent=31 // pred_check_branch
          %197 = sbr.rel (%p195) target = $region36
        $region35: #{tpu_custom_call.1} parent=31 // pred_region
          %p198 = scmp.lt.s32.totalorder %s21, 1
          %s199 = scalar_select %p198, %s21, 1
          %s200 = smul.addr %s199, 32
          %s201 = smul.addr %s200, 8
          %s202 = scalar_lea.vmem %s0, %s201
        $region36: #{tpu_custom_call.1} parent=31 // pred_fallthru
          _
      $region32: #{tpu_custom_call.1} parent=5 // pred_fallthru
        _
      %p203 = scmp.le.s32.totalorder 1, %s14
      %p204 = scmp.lt.s32.totalorder %s14, 5
      %p205 = pnand %p203, %p204
      %p206 = pneg %p205
      // Predicated region
      $region37: #{tpu_custom_call.1} parent=5 // pred_check
        _
      $region38: #{tpu_custom_call.1} parent=5 // pred_check_branch
        %208 = sbr.rel (%p205) target = $region40
      $region39: #{tpu_custom_call.1} parent=5 // pred_region
        %s209 = ssub.s32 %s14, 1
        %p210 = scmp.lt.s32.totalorder %s23, 1
        %s211 = scalar_select %p210, %s23, 1
        %s212 = smul.addr %s211, 32
        %s213 = smul.addr %s212, 8
        %s214 = scalar_lea.vmem %s0, %s213
        %p215 = pneg %p52
        %p216 = pneg %p49
        %p217 = pneg %p73
        %p218 = pneg %p70
        %p219 = pneg %p94
        %p220 = pneg %p91
        %p221 = pneg %p115
        %p222 = pneg %p112
        %p223 = pneg %p136
        %p224 = pneg %p133
        %p225 = pneg %p164
        %p226 = pneg %p161
        %s227 = sand.u32 %s151, 1
        %s228 = scalar_lea.sflag [#allocation7], %s227
        %s229 = sand.u32 %s151, 1
        %s230 = smul.addr %s229, 4
        %s231 = scalar_lea.vmem [#allocation6], %s230
        %p232 = scmp.lt.s32.totalorder %s23, 1
        %s233 = scalar_select %p232, %s23, 1
        %s234 = smul.addr %s233, 32
        %s235 = smul.addr %s234, 8
        %s236 = scalar_lea.vmem %s0, %s235
        %s238 = smul.u32 %s24, 8
        %p239 = scmp.eq.s32.totalorder %s24, 0
        // Predicated region
        $region41: #{tpu_custom_call.1} parent=39 // pred_check
          %p240 = pneg %p239
        $region42: #{tpu_custom_call.1} parent=39 // pred_check_branch
          %242 = sbr.rel (%p240) target = $region44
        $region43: #{tpu_custom_call.1} parent=39 // pred_region
          %vm243 = vcmask 27648
          %244 = vst.msk [vmem:[#allocation2] sm:$0xf] %vm243, 0
          %245 = vst.msk [vmem:[#allocation2 + $0x4] sm:$0xf] %vm243, 0
          %vm246 = vcmask 24576
          %247 = vst.msk [vmem:[#allocation2 + $0x8] sm:$0x1] %vm246, 0
          %248 = vst.msk [vmem:[#allocation2 + $0xc] sm:$0xf] %vm243, 0
          %249 = vst.msk [vmem:[#allocation2 + $0x10] sm:$0xf] %vm243, 0
          %250 = vst.msk [vmem:[#allocation2 + $0x14] sm:$0x1] %vm246, 0
          %s251 = scalar_lea.vmem [#allocation2], 216
          %252 = vst.msk [vmem:[%s251] sm:$0xf] %vm243, 0
          %253 = vst.msk [vmem:[%s251 + $0x4] sm:$0xf] %vm243, 0
          %254 = vst.msk [vmem:[%s251 + $0x8] sm:$0x1] %vm246, 0
          %255 = vst.msk [vmem:[%s251 + $0xc] sm:$0xf] %vm243, 0
          %256 = vst.msk [vmem:[%s251 + $0x10] sm:$0xf] %vm243, 0
          %257 = vst.msk [vmem:[%s251 + $0x14] sm:$0x1] %vm246, 0
          %s258 = scalar_lea.vmem [#allocation2], 24
          %vm259 = vcmask 24576
          %vm260 = vsmask.f32 256
          %vm261 = vmand %vm259, %vm260
          %v262 = vld [vmem:[%s258] sm:$0x1]
          %v263 = vsel %vm261, 0, %v262
          %264 = vst [vmem:[%s258] sm:$0x1] %v263
          %v265 = vld [vmem:[%s258 + $0xc] sm:$0x1]
          %v266 = vsel %vm261, 0, %v265
          %267 = vst [vmem:[%s258 + $0xc] sm:$0x1] %v266
          %v268 = vld [vmem:[%s258 + $0x18] sm:$0x1]
          %v269 = vsel %vm261, 0, %v268
          %270 = vst [vmem:[%s258 + $0x18] sm:$0x1] %v269
          %v271 = vld [vmem:[%s258 + $0x24] sm:$0x1]
          %v272 = vsel %vm261, 0, %v271
          %273 = vst [vmem:[%s258 + $0x24] sm:$0x1] %v272
          %v274 = vld [vmem:[%s258 + $0x30] sm:$0x1]
          %v275 = vsel %vm261, 0, %v274
          %276 = vst [vmem:[%s258 + $0x30] sm:$0x1] %v275
          %v277 = vld [vmem:[%s258 + $0x3c] sm:$0x1]
          %v278 = vsel %vm261, 0, %v277
          %279 = vst [vmem:[%s258 + $0x3c] sm:$0x1] %v278
          %v280 = vld [vmem:[%s258 + $0x48] sm:$0x1]
          %v281 = vsel %vm261, 0, %v280
          %282 = vst [vmem:[%s258 + $0x48] sm:$0x1] %v281
          %v283 = vld [vmem:[%s258 + $0x54] sm:$0x1]
          %v284 = vsel %vm261, 0, %v283
          %285 = vst [vmem:[%s258 + $0x54] sm:$0x1] %v284
          %v286 = vld [vmem:[%s258 + $0x60] sm:$0x1]
          %v287 = vsel %vm261, 0, %v286
          %288 = vst [vmem:[%s258 + $0x60] sm:$0x1] %v287
          %v289 = vld [vmem:[%s258 + $0x6c] sm:$0x1]
          %v290 = vsel %vm261, 0, %v289
          %291 = vst [vmem:[%s258 + $0x6c] sm:$0x1] %v290
          %v292 = vld [vmem:[%s258 + $0x78] sm:$0x1]
          %v293 = vsel %vm261, 0, %v292
          %294 = vst [vmem:[%s258 + $0x78] sm:$0x1] %v293
          %v295 = vld [vmem:[%s258 + $0x84] sm:$0x1]
          %v296 = vsel %vm261, 0, %v295
          %297 = vst [vmem:[%s258 + $0x84] sm:$0x1] %v296
          %v298 = vld [vmem:[%s258 + $0x90] sm:$0x1]
          %v299 = vsel %vm261, 0, %v298
          %300 = vst [vmem:[%s258 + $0x90] sm:$0x1] %v299
          %v301 = vld [vmem:[%s258 + $0x9c] sm:$0x1]
          %v302 = vsel %vm261, 0, %v301
          %303 = vst [vmem:[%s258 + $0x9c] sm:$0x1] %v302
          %v304 = vld [vmem:[%s258 + $0xa8] sm:$0x1]
          %v305 = vsel %vm261, 0, %v304
          %306 = vst [vmem:[%s258 + $0xa8] sm:$0x1] %v305
          %v307 = vld [vmem:[%s258 + $0xb4] sm:$0x1]
          %v308 = vsel %vm261, 0, %v307
          %309 = vst [vmem:[%s258 + $0xb4] sm:$0x1] %v308
          %vm310 = vsmask.f32 7938
          %vm311 = vmand %vm259, %vm310
          %v312 = vld [vmem:[%s258 + $0x8] sm:$0x1]
          %v313 = vsel %vm311, 0, %v312
          %314 = vst [vmem:[%s258 + $0x8] sm:$0x1] %v313
          %v315 = vld [vmem:[%s258 + $0x14] sm:$0x1]
          %v316 = vsel %vm311, 0, %v315
          %317 = vst [vmem:[%s258 + $0x14] sm:$0x1] %v316
          %v318 = vld [vmem:[%s258 + $0x20] sm:$0x1]
          %v319 = vsel %vm311, 0, %v318
          %320 = vst [vmem:[%s258 + $0x20] sm:$0x1] %v319
          %v321 = vld [vmem:[%s258 + $0x2c] sm:$0x1]
          %v322 = vsel %vm311, 0, %v321
          %323 = vst [vmem:[%s258 + $0x2c] sm:$0x1] %v322
          %v324 = vld [vmem:[%s258 + $0x38] sm:$0x1]
          %v325 = vsel %vm311, 0, %v324
          %326 = vst [vmem:[%s258 + $0x38] sm:$0x1] %v325
          %v327 = vld [vmem:[%s258 + $0x44] sm:$0x1]
          %v328 = vsel %vm311, 0, %v327
          %329 = vst [vmem:[%s258 + $0x44] sm:$0x1] %v328
          %v330 = vld [vmem:[%s258 + $0x50] sm:$0x1]
          %v331 = vsel %vm311, 0, %v330
          %332 = vst [vmem:[%s258 + $0x50] sm:$0x1] %v331
          %v333 = vld [vmem:[%s258 + $0x5c] sm:$0x1]
          %v334 = vsel %vm311, 0, %v333
          %335 = vst [vmem:[%s258 + $0x5c] sm:$0x1] %v334
          %v336 = vld [vmem:[%s258 + $0x68] sm:$0x1]
          %v337 = vsel %vm311, 0, %v336
          %338 = vst [vmem:[%s258 + $0x68] sm:$0x1] %v337
          %v339 = vld [vmem:[%s258 + $0x74] sm:$0x1]
          %v340 = vsel %vm311, 0, %v339
          %341 = vst [vmem:[%s258 + $0x74] sm:$0x1] %v340
          %v342 = vld [vmem:[%s258 + $0x80] sm:$0x1]
          %v343 = vsel %vm311, 0, %v342
          %344 = vst [vmem:[%s258 + $0x80] sm:$0x1] %v343
          %v345 = vld [vmem:[%s258 + $0x8c] sm:$0x1]
          %v346 = vsel %vm311, 0, %v345
          %347 = vst [vmem:[%s258 + $0x8c] sm:$0x1] %v346
          %v348 = vld [vmem:[%s258 + $0x98] sm:$0x1]
          %v349 = vsel %vm311, 0, %v348
          %350 = vst [vmem:[%s258 + $0x98] sm:$0x1] %v349
          %v351 = vld [vmem:[%s258 + $0xa4] sm:$0x1]
          %v352 = vsel %vm311, 0, %v351
          %353 = vst [vmem:[%s258 + $0xa4] sm:$0x1] %v352
          %v354 = vld [vmem:[%s258 + $0xb0] sm:$0x1]
          %v355 = vsel %vm311, 0, %v354
          %356 = vst [vmem:[%s258 + $0xb0] sm:$0x1] %v355
          %v357 = vld [vmem:[%s258 + $0xbc] sm:$0x1]
          %v358 = vsel %vm311, 0, %v357
          %359 = vst [vmem:[%s258 + $0xbc] sm:$0x1] %v358
          %v360 = vld [vmem:[%s236] sm:$0xff]
          %v361 = vld [vmem:[%s236 + $0x8] sm:$0xff]
          %v362 = vld [vmem:[%s236 + $0x10] sm:$0xff]
          %v363 = vld [vmem:[%s236 + $0x18] sm:$0xff]
          %v364 = vld [vmem:[%s236 + $0x20] sm:$0xff]
          %v365 = vld [vmem:[%s236 + $0x28] sm:$0xff]
          %v366 = vld [vmem:[%s236 + $0x30] sm:$0xff]
          %v367 = vld [vmem:[%s236 + $0x38] sm:$0xff]
          %v368 = vld [vmem:[%s236 + $0x40] sm:$0xff]
          %v369 = vld [vmem:[%s236 + $0x48] sm:$0xff]
          %v370 = vld [vmem:[%s236 + $0x50] sm:$0xff]
          %v371 = vld [vmem:[%s236 + $0x58] sm:$0xff]
          %v372 = vld [vmem:[%s236 + $0x60] sm:$0xff]
          %v373 = vld [vmem:[%s236 + $0x68] sm:$0xff]
          %v374 = vld [vmem:[%s236 + $0x70] sm:$0xff]
          %v375 = vld [vmem:[%s236 + $0x78] sm:$0xff]
          %v376 = vld [vmem:[%s236 + $0x80] sm:$0xff]
          %v377 = vld [vmem:[%s236 + $0x88] sm:$0xff]
          %v378 = vld [vmem:[%s236 + $0x90] sm:$0xff]
          %v379 = vld [vmem:[%s236 + $0x98] sm:$0xff]
          %v380 = vld [vmem:[%s236 + $0xa0] sm:$0xff]
          %v381 = vld [vmem:[%s236 + $0xa8] sm:$0xff]
          %v382 = vld [vmem:[%s236 + $0xb0] sm:$0xff]
          %v383 = vld [vmem:[%s236 + $0xb8] sm:$0xff]
          %v384 = vld [vmem:[%s236 + $0xc0] sm:$0xff]
          %v385 = vld [vmem:[%s236 + $0xc8] sm:$0xff]
          %v386 = vld [vmem:[%s236 + $0xd0] sm:$0xff]
          %v387 = vld [vmem:[%s236 + $0xd8] sm:$0xff]
          %v388 = vld [vmem:[%s236 + $0xe0] sm:$0xff]
          %v389 = vld [vmem:[%s236 + $0xe8] sm:$0xff]
          %v390 = vld [vmem:[%s236 + $0xf0] sm:$0xff]
          %v391 = vld [vmem:[%s236 + $0xf8] sm:$0xff]
          %v392 = vpack.c.bf16 %v360, %v360
          %v393 = vpack.c.bf16 %v361, %v361
          %v394 = vpack.c.bf16 %v362, %v362
          %v395 = vpack.c.bf16 %v363, %v363
          %v396 = vpack.c.bf16 %v364, %v364
          %v397 = vpack.c.bf16 %v365, %v365
          %v398 = vpack.c.bf16 %v366, %v366
          %v399 = vpack.c.bf16 %v367, %v367
          %v400 = vpack.c.bf16 %v368, %v368
          %v401 = vpack.c.bf16 %v369, %v369
          %v402 = vpack.c.bf16 %v370, %v370
          %v403 = vpack.c.bf16 %v371, %v371
          %v404 = vpack.c.bf16 %v372, %v372
          %v405 = vpack.c.bf16 %v373, %v373
          %v406 = vpack.c.bf16 %v374, %v374
          %v407 = vpack.c.bf16 %v375, %v375
          %v408 = vpack.c.bf16 %v376, %v376
          %v409 = vpack.c.bf16 %v377, %v377
          %v410 = vpack.c.bf16 %v378, %v378
          %v411 = vpack.c.bf16 %v379, %v379
          %v412 = vpack.c.bf16 %v380, %v380
          %v413 = vpack.c.bf16 %v381, %v381
          %v414 = vpack.c.bf16 %v382, %v382
          %v415 = vpack.c.bf16 %v383, %v383
          %v416 = vpack.c.bf16 %v384, %v384
          %v417 = vpack.c.bf16 %v385, %v385
          %v418 = vpack.c.bf16 %v386, %v386
          %v419 = vpack.c.bf16 %v387, %v387
          %v420 = vpack.c.bf16 %v388, %v388
          %v421 = vpack.c.bf16 %v389, %v389
          %v422 = vpack.c.bf16 %v390, %v390
          %v423 = vpack.c.bf16 %v391, %v391
          %vm424 = vsmask.f32 4368
          %vm425 = vmor %vm260, %vm424
          %v427 = vshrl.u32 %v392, 16
          %v429 = vrot.slane %v427, 7
          %v430 = vshll.u32 %v392, 16
          %v432 = vor.u32 %v429, %v430
          %v433 = vrot.slane %v429, 4
          %v435 = vshrl.u32 %v393, 16
          %v437 = vrot.slane %v435, 7
          %v438 = vshll.u32 %v393, 16
          %v440 = vor.u32 %v437, %v438
          %v441 = vsel %vm425, %v433, %v440
          %v442 = vrot.slane %v437, 4
          %v444 = vshrl.u32 %v394, 16
          %v446 = vrot.slane %v444, 7
          %v447 = vshll.u32 %v394, 16
          %v449 = vor.u32 %v446, %v447
          %v450 = vrot.slane %v446, 4
          %v452 = vshrl.u32 %v395, 16
          %v454 = vrot.slane %v452, 7
          %v455 = vshll.u32 %v395, 16
          %v457 = vor.u32 %v454, %v455
          %v458 = vsel %vm425, %v450, %v457
          %v459 = vrot.slane %v454, 4
          %v461 = vshrl.u32 %v396, 16
          %v463 = vrot.slane %v461, 7
          %v464 = vshll.u32 %v396, 16
          %v466 = vor.u32 %v463, %v464
          %v467 = vrot.slane %v463, 4
          %v469 = vshrl.u32 %v397, 16
          %v471 = vrot.slane %v469, 7
          %v472 = vshll.u32 %v397, 16
          %v474 = vor.u32 %v471, %v472
          %v475 = vsel %vm425, %v467, %v474
          %v476 = vrot.slane %v471, 4
          %v478 = vshrl.u32 %v398, 16
          %v480 = vrot.slane %v478, 7
          %v481 = vshll.u32 %v398, 16
          %v483 = vor.u32 %v480, %v481
          %v484 = vrot.slane %v480, 4
          %v486 = vshrl.u32 %v399, 16
          %v488 = vrot.slane %v486, 7
          %v489 = vshll.u32 %v399, 16
          %v491 = vor.u32 %v488, %v489
          %v492 = vsel %vm425, %v484, %v491
          %v493 = vrot.slane %v488, 4
          %v495 = vshrl.u32 %v400, 16
          %v497 = vrot.slane %v495, 7
          %v498 = vshll.u32 %v400, 16
          %v500 = vor.u32 %v497, %v498
          %v501 = vrot.slane %v497, 4
          %v503 = vshrl.u32 %v401, 16
          %v505 = vrot.slane %v503, 7
          %v506 = vshll.u32 %v401, 16
          %v508 = vor.u32 %v505, %v506
          %v509 = vsel %vm425, %v501, %v508
          %v510 = vrot.slane %v505, 4
          %v512 = vshrl.u32 %v402, 16
          %v514 = vrot.slane %v512, 7
          %v515 = vshll.u32 %v402, 16
          %v517 = vor.u32 %v514, %v515
          %v518 = vrot.slane %v514, 4
          %v520 = vshrl.u32 %v403, 16
          %v522 = vrot.slane %v520, 7
          %v523 = vshll.u32 %v403, 16
          %v525 = vor.u32 %v522, %v523
          %v526 = vsel %vm425, %v518, %v525
          %v527 = vrot.slane %v522, 4
          %v529 = vshrl.u32 %v404, 16
          %v531 = vrot.slane %v529, 7
          %v532 = vshll.u32 %v404, 16
          %v534 = vor.u32 %v531, %v532
          %v535 = vrot.slane %v531, 4
          %v537 = vshrl.u32 %v405, 16
          %v539 = vrot.slane %v537, 7
          %v540 = vshll.u32 %v405, 16
          %v542 = vor.u32 %v539, %v540
          %v543 = vsel %vm425, %v535, %v542
          %v544 = vrot.slane %v539, 4
          %v546 = vshrl.u32 %v406, 16
          %v548 = vrot.slane %v546, 7
          %v549 = vshll.u32 %v406, 16
          %v551 = vor.u32 %v548, %v549
          %v552 = vrot.slane %v548, 4
          %v554 = vshrl.u32 %v407, 16
          %v556 = vrot.slane %v554, 7
          %v557 = vshll.u32 %v407, 16
          %v559 = vor.u32 %v556, %v557
          %v560 = vsel %vm425, %v552, %v559
          %v561 = vrot.slane %v556, 4
          %v563 = vshrl.u32 %v408, 16
          %v565 = vrot.slane %v563, 7
          %v566 = vshll.u32 %v408, 16
          %v568 = vor.u32 %v565, %v566
          %v569 = vrot.slane %v565, 4
          %v571 = vshrl.u32 %v409, 16
          %v573 = vrot.slane %v571, 7
          %v574 = vshll.u32 %v409, 16
          %v576 = vor.u32 %v573, %v574
          %v577 = vsel %vm425, %v569, %v576
          %v578 = vrot.slane %v573, 4
          %v580 = vshrl.u32 %v410, 16
          %v582 = vrot.slane %v580, 7
          %v583 = vshll.u32 %v410, 16
          %v585 = vor.u32 %v582, %v583
          %v586 = vrot.slane %v582, 4
          %v588 = vshrl.u32 %v411, 16
          %v590 = vrot.slane %v588, 7
          %v591 = vshll.u32 %v411, 16
          %v593 = vor.u32 %v590, %v591
          %v594 = vsel %vm425, %v586, %v593
          %v595 = vrot.slane %v590, 4
          %v597 = vshrl.u32 %v412, 16
          %v599 = vrot.slane %v597, 7
          %v600 = vshll.u32 %v412, 16
          %v602 = vor.u32 %v599, %v600
          %v603 = vrot.slane %v599, 4
          %v605 = vshrl.u32 %v413, 16
          %v607 = vrot.slane %v605, 7
          %v608 = vshll.u32 %v413, 16
          %v610 = vor.u32 %v607, %v608
          %v611 = vsel %vm425, %v603, %v610
          %v612 = vrot.slane %v607, 4
          %v614 = vshrl.u32 %v414, 16
          %v616 = vrot.slane %v614, 7
          %v617 = vshll.u32 %v414, 16
          %v619 = vor.u32 %v616, %v617
          %v620 = vrot.slane %v616, 4
          %v622 = vshrl.u32 %v415, 16
          %v624 = vrot.slane %v622, 7
          %v625 = vshll.u32 %v415, 16
          %v627 = vor.u32 %v624, %v625
          %v628 = vsel %vm425, %v620, %v627
          %v629 = vrot.slane %v624, 4
          %v631 = vshrl.u32 %v416, 16
          %v633 = vrot.slane %v631, 7
          %v634 = vshll.u32 %v416, 16
          %v636 = vor.u32 %v633, %v634
          %v637 = vrot.slane %v633, 4
          %v639 = vshrl.u32 %v417, 16
          %v641 = vrot.slane %v639, 7
          %v642 = vshll.u32 %v417, 16
          %v644 = vor.u32 %v641, %v642
          %v645 = vsel %vm425, %v637, %v644
          %v646 = vrot.slane %v641, 4
          %v648 = vshrl.u32 %v418, 16
          %v650 = vrot.slane %v648, 7
          %v651 = vshll.u32 %v418, 16
          %v653 = vor.u32 %v650, %v651
          %v654 = vrot.slane %v650, 4
          %v656 = vshrl.u32 %v419, 16
          %v658 = vrot.slane %v656, 7
          %v659 = vshll.u32 %v419, 16
          %v661 = vor.u32 %v658, %v659
          %v662 = vsel %vm425, %v654, %v661
          %v663 = vrot.slane %v658, 4
          %v665 = vshrl.u32 %v420, 16
          %v667 = vrot.slane %v665, 7
          %v668 = vshll.u32 %v420, 16
          %v670 = vor.u32 %v667, %v668
          %v671 = vrot.slane %v667, 4
          %v673 = vshrl.u32 %v421, 16
          %v675 = vrot.slane %v673, 7
          %v676 = vshll.u32 %v421, 16
          %v678 = vor.u32 %v675, %v676
          %v679 = vsel %vm425, %v671, %v678
          %v680 = vrot.slane %v675, 4
          %v682 = vshrl.u32 %v422, 16
          %v684 = vrot.slane %v682, 7
          %v685 = vshll.u32 %v422, 16
          %v687 = vor.u32 %v684, %v685
          %v688 = vrot.slane %v684, 4
          %v690 = vshrl.u32 %v423, 16
          %v692 = vrot.slane %v690, 7
          %v693 = vshll.u32 %v423, 16
          %v695 = vor.u32 %v692, %v693
          %v696 = vsel %vm425, %v688, %v695
          %v697 = vrot.slane %v692, 4
          %vm746 = vcmask 27648
          %vm747 = vmand %vm746, %vm310
          %v748 = vld [vmem:[%s258] sm:$0xf]
          %v749 = vsel %vm747, %v432, %v748
          %750 = vst [vmem:[%s258] sm:$0xf] %v749
          %751 = vst.msk [vmem:[%s258 + $0x4] sm:$0xf] %vm243, %v441
          %v752 = vld [vmem:[%s258 + $0x8] sm:$0x1]
          %v753 = vsel %vm261, %v442, %v752
          %754 = vst [vmem:[%s258 + $0x8] sm:$0x1] %v753
          %v755 = vld [vmem:[%s258 + $0xc] sm:$0xf]
          %v756 = vsel %vm747, %v449, %v755
          %757 = vst [vmem:[%s258 + $0xc] sm:$0xf] %v756
          %758 = vst.msk [vmem:[%s258 + $0x10] sm:$0xf] %vm243, %v458
          %v759 = vld [vmem:[%s258 + $0x14] sm:$0x1]
          %v760 = vsel %vm261, %v459, %v759
          %761 = vst [vmem:[%s258 + $0x14] sm:$0x1] %v760
          %v762 = vld [vmem:[%s258 + $0x18] sm:$0xf]
          %v763 = vsel %vm747, %v466, %v762
          %764 = vst [vmem:[%s258 + $0x18] sm:$0xf] %v763
          %765 = vst.msk [vmem:[%s258 + $0x1c] sm:$0xf] %vm243, %v475
          %v766 = vld [vmem:[%s258 + $0x20] sm:$0x1]
          %v767 = vsel %vm261, %v476, %v766
          %768 = vst [vmem:[%s258 + $0x20] sm:$0x1] %v767
          %v769 = vld [vmem:[%s258 + $0x24] sm:$0xf]
          %v770 = vsel %vm747, %v483, %v769
          %771 = vst [vmem:[%s258 + $0x24] sm:$0xf] %v770
          %772 = vst.msk [vmem:[%s258 + $0x28] sm:$0xf] %vm243, %v492
          %v773 = vld [vmem:[%s258 + $0x2c] sm:$0x1]
          %v774 = vsel %vm261, %v493, %v773
          %775 = vst [vmem:[%s258 + $0x2c] sm:$0x1] %v774
          %v776 = vld [vmem:[%s258 + $0x30] sm:$0xf]
          %v777 = vsel %vm747, %v500, %v776
          %778 = vst [vmem:[%s258 + $0x30] sm:$0xf] %v777
          %779 = vst.msk [vmem:[%s258 + $0x34] sm:$0xf] %vm243, %v509
          %v780 = vld [vmem:[%s258 + $0x38] sm:$0x1]
          %v781 = vsel %vm261, %v510, %v780
          %782 = vst [vmem:[%s258 + $0x38] sm:$0x1] %v781
          %v783 = vld [vmem:[%s258 + $0x3c] sm:$0xf]
          %v784 = vsel %vm747, %v517, %v783
          %785 = vst [vmem:[%s258 + $0x3c] sm:$0xf] %v784
          %786 = vst.msk [vmem:[%s258 + $0x40] sm:$0xf] %vm243, %v526
          %v787 = vld [vmem:[%s258 + $0x44] sm:$0x1]
          %v788 = vsel %vm261, %v527, %v787
          %789 = vst [vmem:[%s258 + $0x44] sm:$0x1] %v788
          %v790 = vld [vmem:[%s258 + $0x48] sm:$0xf]
          %v791 = vsel %vm747, %v534, %v790
          %792 = vst [vmem:[%s258 + $0x48] sm:$0xf] %v791
          %793 = vst.msk [vmem:[%s258 + $0x4c] sm:$0xf] %vm243, %v543
          %v794 = vld [vmem:[%s258 + $0x50] sm:$0x1]
          %v795 = vsel %vm261, %v544, %v794
          %796 = vst [vmem:[%s258 + $0x50] sm:$0x1] %v795
          %v797 = vld [vmem:[%s258 + $0x54] sm:$0xf]
          %v798 = vsel %vm747, %v551, %v797
          %799 = vst [vmem:[%s258 + $0x54] sm:$0xf] %v798
          %800 = vst.msk [vmem:[%s258 + $0x58] sm:$0xf] %vm243, %v560
          %v801 = vld [vmem:[%s258 + $0x5c] sm:$0x1]
          %v802 = vsel %vm261, %v561, %v801
          %803 = vst [vmem:[%s258 + $0x5c] sm:$0x1] %v802
          %v804 = vld [vmem:[%s258 + $0x60] sm:$0xf]
          %v805 = vsel %vm747, %v568, %v804
          %806 = vst [vmem:[%s258 + $0x60] sm:$0xf] %v805
          %807 = vst.msk [vmem:[%s258 + $0x64] sm:$0xf] %vm243, %v577
          %v808 = vld [vmem:[%s258 + $0x68] sm:$0x1]
          %v809 = vsel %vm261, %v578, %v808
          %810 = vst [vmem:[%s258 + $0x68] sm:$0x1] %v809
          %v811 = vld [vmem:[%s258 + $0x6c] sm:$0xf]
          %v812 = vsel %vm747, %v585, %v811
          %813 = vst [vmem:[%s258 + $0x6c] sm:$0xf] %v812
          %814 = vst.msk [vmem:[%s258 + $0x70] sm:$0xf] %vm243, %v594
          %v815 = vld [vmem:[%s258 + $0x74] sm:$0x1]
          %v816 = vsel %vm261, %v595, %v815
          %817 = vst [vmem:[%s258 + $0x74] sm:$0x1] %v816
          %v818 = vld [vmem:[%s258 + $0x78] sm:$0xf]
          %v819 = vsel %vm747, %v602, %v818
          %820 = vst [vmem:[%s258 + $0x78] sm:$0xf] %v819
          %821 = vst.msk [vmem:[%s258 + $0x7c] sm:$0xf] %vm243, %v611
          %v822 = vld [vmem:[%s258 + $0x80] sm:$0x1]
          %v823 = vsel %vm261, %v612, %v822
          %824 = vst [vmem:[%s258 + $0x80] sm:$0x1] %v823
          %v825 = vld [vmem:[%s258 + $0x84] sm:$0xf]
          %v826 = vsel %vm747, %v619, %v825
          %827 = vst [vmem:[%s258 + $0x84] sm:$0xf] %v826
          %828 = vst.msk [vmem:[%s258 + $0x88] sm:$0xf] %vm243, %v628
          %v829 = vld [vmem:[%s258 + $0x8c] sm:$0x1]
          %v830 = vsel %vm261, %v629, %v829
          %831 = vst [vmem:[%s258 + $0x8c] sm:$0x1] %v830
          %v832 = vld [vmem:[%s258 + $0x90] sm:$0xf]
          %v833 = vsel %vm747, %v636, %v832
          %834 = vst [vmem:[%s258 + $0x90] sm:$0xf] %v833
          %835 = vst.msk [vmem:[%s258 + $0x94] sm:$0xf] %vm243, %v645
          %v836 = vld [vmem:[%s258 + $0x98] sm:$0x1]
          %v837 = vsel %vm261, %v646, %v836
          %838 = vst [vmem:[%s258 + $0x98] sm:$0x1] %v837
          %v839 = vld [vmem:[%s258 + $0x9c] sm:$0xf]
          %v840 = vsel %vm747, %v653, %v839
          %841 = vst [vmem:[%s258 + $0x9c] sm:$0xf] %v840
          %842 = vst.msk [vmem:[%s258 + $0xa0] sm:$0xf] %vm243, %v662
          %v843 = vld [vmem:[%s258 + $0xa4] sm:$0x1]
          %v844 = vsel %vm261, %v663, %v843
          %845 = vst [vmem:[%s258 + $0xa4] sm:$0x1] %v844
          %v846 = vld [vmem:[%s258 + $0xa8] sm:$0xf]
          %v847 = vsel %vm747, %v670, %v846
          %848 = vst [vmem:[%s258 + $0xa8] sm:$0xf] %v847
          %849 = vst.msk [vmem:[%s258 + $0xac] sm:$0xf] %vm243, %v679
          %v850 = vld [vmem:[%s258 + $0xb0] sm:$0x1]
          %v851 = vsel %vm261, %v680, %v850
          %852 = vst [vmem:[%s258 + $0xb0] sm:$0x1] %v851
          %v853 = vld [vmem:[%s258 + $0xb4] sm:$0xf]
          %v854 = vsel %vm747, %v687, %v853
          %855 = vst [vmem:[%s258 + $0xb4] sm:$0xf] %v854
          %856 = vst.msk [vmem:[%s258 + $0xb8] sm:$0xf] %vm243, %v696
          %v857 = vld [vmem:[%s258 + $0xbc] sm:$0x1]
          %v858 = vsel %vm261, %v697, %v857
          %859 = vst [vmem:[%s258 + $0xbc] sm:$0x1] %v858
          %v860 = vld [vmem:[#allocation4] sm:$0x1]
          %v861 = vsel %vm261, 0, %v860
          %862 = vst [vmem:[#allocation4] sm:$0x1] %v861
          %v863 = vld [vmem:[#allocation4 + $0xc] sm:$0x1]
          %v864 = vsel %vm261, 0, %v863
          %865 = vst [vmem:[#allocation4 + $0xc] sm:$0x1] %v864
          %v866 = vld [vmem:[#allocation4 + $0x18] sm:$0x1]
          %v867 = vsel %vm261, 0, %v866
          %868 = vst [vmem:[#allocation4 + $0x18] sm:$0x1] %v867
          %v869 = vld [vmem:[#allocation4 + $0x24] sm:$0x1]
          %v870 = vsel %vm261, 0, %v869
          %871 = vst [vmem:[#allocation4 + $0x24] sm:$0x1] %v870
          %v872 = vld [vmem:[#allocation4 + $0x30] sm:$0x1]
          %v873 = vsel %vm261, 0, %v872
          %874 = vst [vmem:[#allocation4 + $0x30] sm:$0x1] %v873
          %v875 = vld [vmem:[#allocation4 + $0x3c] sm:$0x1]
          %v876 = vsel %vm261, 0, %v875
          %877 = vst [vmem:[#allocation4 + $0x3c] sm:$0x1] %v876
          %v878 = vld [vmem:[#allocation4 + $0x48] sm:$0x1]
          %v879 = vsel %vm261, 0, %v878
          %880 = vst [vmem:[#allocation4 + $0x48] sm:$0x1] %v879
          %v881 = vld [vmem:[#allocation4 + $0x54] sm:$0x1]
          %v882 = vsel %vm261, 0, %v881
          %883 = vst [vmem:[#allocation4 + $0x54] sm:$0x1] %v882
          %v884 = vld [vmem:[#allocation4 + $0x60] sm:$0x1]
          %v885 = vsel %vm261, 0, %v884
          %886 = vst [vmem:[#allocation4 + $0x60] sm:$0x1] %v885
          %v887 = vld [vmem:[#allocation4 + $0x6c] sm:$0x1]
          %v888 = vsel %vm261, 0, %v887
          %889 = vst [vmem:[#allocation4 + $0x6c] sm:$0x1] %v888
          %v890 = vld [vmem:[#allocation4 + $0x8] sm:$0x1]
          %v891 = vsel %vm311, 0, %v890
          %892 = vst [vmem:[#allocation4 + $0x8] sm:$0x1] %v891
          %v893 = vld [vmem:[#allocation4 + $0x14] sm:$0x1]
          %v894 = vsel %vm311, 0, %v893
          %895 = vst [vmem:[#allocation4 + $0x14] sm:$0x1] %v894
          %v896 = vld [vmem:[#allocation4 + $0x20] sm:$0x1]
          %v897 = vsel %vm311, 0, %v896
          %898 = vst [vmem:[#allocation4 + $0x20] sm:$0x1] %v897
          %v899 = vld [vmem:[#allocation4 + $0x2c] sm:$0x1]
          %v900 = vsel %vm311, 0, %v899
          %901 = vst [vmem:[#allocation4 + $0x2c] sm:$0x1] %v900
          %v902 = vld [vmem:[#allocation4 + $0x38] sm:$0x1]
          %v903 = vsel %vm311, 0, %v902
          %904 = vst [vmem:[#allocation4 + $0x38] sm:$0x1] %v903
          %v905 = vld [vmem:[#allocation4 + $0x44] sm:$0x1]
          %v906 = vsel %vm311, 0, %v905
          %907 = vst [vmem:[#allocation4 + $0x44] sm:$0x1] %v906
          %v908 = vld [vmem:[#allocation4 + $0x50] sm:$0x1]
          %v909 = vsel %vm311, 0, %v908
          %910 = vst [vmem:[#allocation4 + $0x50] sm:$0x1] %v909
          %v911 = vld [vmem:[#allocation4 + $0x5c] sm:$0x1]
          %v912 = vsel %vm311, 0, %v911
          %913 = vst [vmem:[#allocation4 + $0x5c] sm:$0x1] %v912
          %v914 = vld [vmem:[#allocation4 + $0x68] sm:$0x1]
          %v915 = vsel %vm311, 0, %v914
          %916 = vst [vmem:[#allocation4 + $0x68] sm:$0x1] %v915
          %v917 = vld [vmem:[#allocation4 + $0x74] sm:$0x1]
          %v918 = vsel %vm311, 0, %v917
          %919 = vst [vmem:[#allocation4 + $0x74] sm:$0x1] %v918
        $region44: #{tpu_custom_call.1} parent=39 // pred_fallthru
          _
        %s920 = smul.u32 %s238, 3
        %s921 = smul.addr %s920, 4
        %s922 = scalar_lea.vmem [#allocation2], %s921
        %v923 = vld [vmem:[%s922] sm:$0xf]
        %v924 = vld [vmem:[%s922 + $0x4] sm:$0xf]
        %v925 = vld [vmem:[%s922 + $0xc] sm:$0xf]
        %v926 = vld [vmem:[%s922 + $0x10] sm:$0xf]
        %v927 = vld [vmem:[%s922 + $0x18] sm:$0xf]
        %v928 = vld [vmem:[%s922 + $0x1c] sm:$0xf]
        %v929 = vld [vmem:[%s922 + $0x24] sm:$0xf]
        %v930 = vld [vmem:[%s922 + $0x28] sm:$0xf]
        %v931 = vld [vmem:[%s922 + $0x30] sm:$0xf]
        %v932 = vld [vmem:[%s922 + $0x34] sm:$0xf]
        %v933 = vld [vmem:[%s922 + $0x3c] sm:$0xf]
        %v934 = vld [vmem:[%s922 + $0x40] sm:$0xf]
        %v935 = vld [vmem:[%s922 + $0x48] sm:$0xf]
        %v936 = vld [vmem:[%s922 + $0x4c] sm:$0xf]
        %v937 = vld [vmem:[%s922 + $0x54] sm:$0xf]
        %v938 = vld [vmem:[%s922 + $0x58] sm:$0xf]
        %v939 = vld [vmem:[%s922 + $0x60] sm:$0xf]
        %v940 = vld [vmem:[%s922 + $0x64] sm:$0xf]
        %v941 = vld [vmem:[%s922 + $0x6c] sm:$0xf]
        %v942 = vld [vmem:[%s922 + $0x70] sm:$0xf]
        %vm943 = vcmask 27648
        %944 = vst.msk [vmem:[#allocation3] sm:$0xf] %vm943, %v923
        %945 = vst.msk [vmem:[#allocation3 + $0x4] sm:$0xf] %vm943, %v924
        %946 = vst.msk [vmem:[#allocation3 + $0x8] sm:$0xf] %vm943, %v925
        %947 = vst.msk [vmem:[#allocation3 + $0xc] sm:$0xf] %vm943, %v926
        %948 = vst.msk [vmem:[#allocation3 + $0x10] sm:$0xf] %vm943, %v927
        %949 = vst.msk [vmem:[#allocation3 + $0x14] sm:$0xf] %vm943, %v928
        %950 = vst.msk [vmem:[#allocation3 + $0x18] sm:$0xf] %vm943, %v929
        %951 = vst.msk [vmem:[#allocation3 + $0x1c] sm:$0xf] %vm943, %v930
        %952 = vst.msk [vmem:[#allocation3 + $0x20] sm:$0xf] %vm943, %v931
        %953 = vst.msk [vmem:[#allocation3 + $0x24] sm:$0xf] %vm943, %v932
        %954 = vst.msk [vmem:[#allocation3 + $0x28] sm:$0xf] %vm943, %v933
        %955 = vst.msk [vmem:[#allocation3 + $0x2c] sm:$0xf] %vm943, %v934
        %956 = vst.msk [vmem:[#allocation3 + $0x30] sm:$0xf] %vm943, %v935
        %957 = vst.msk [vmem:[#allocation3 + $0x34] sm:$0xf] %vm943, %v936
        %958 = vst.msk [vmem:[#allocation3 + $0x38] sm:$0xf] %vm943, %v937
        %959 = vst.msk [vmem:[#allocation3 + $0x3c] sm:$0xf] %vm943, %v938
        %960 = vst.msk [vmem:[#allocation3 + $0x40] sm:$0xf] %vm943, %v939
        %961 = vst.msk [vmem:[#allocation3 + $0x44] sm:$0xf] %vm943, %v940
        %962 = vst.msk [vmem:[#allocation3 + $0x48] sm:$0xf] %vm943, %v941
        %963 = vst.msk [vmem:[#allocation3 + $0x4c] sm:$0xf] %vm943, %v942
        %v964 = vld [vmem:[%s922] sm:$0xf]
        %v965 = vld [vmem:[%s922 + $0x4] sm:$0xf]
        %v966 = vld [vmem:[%s922 + $0x8] sm:$0x1]
        %v967 = vld [vmem:[%s922 + $0xc] sm:$0xf]
        %v968 = vld [vmem:[%s922 + $0x10] sm:$0xf]
        %v969 = vld [vmem:[%s922 + $0x14] sm:$0x1]
        %v970 = vld [vmem:[%s922 + $0x18] sm:$0xf]
        %v971 = vld [vmem:[%s922 + $0x1c] sm:$0xf]
        %v972 = vld [vmem:[%s922 + $0x20] sm:$0x1]
        %v973 = vld [vmem:[%s922 + $0x24] sm:$0xf]
        %v974 = vld [vmem:[%s922 + $0x28] sm:$0xf]
        %v975 = vld [vmem:[%s922 + $0x2c] sm:$0x1]
        %v976 = vld [vmem:[%s922 + $0x30] sm:$0xf]
        %v977 = vld [vmem:[%s922 + $0x34] sm:$0xf]
        %v978 = vld [vmem:[%s922 + $0x38] sm:$0x1]
        %v979 = vld [vmem:[%s922 + $0x3c] sm:$0xf]
        %v980 = vld [vmem:[%s922 + $0x40] sm:$0xf]
        %v981 = vld [vmem:[%s922 + $0x44] sm:$0x1]
        %v982 = vld [vmem:[%s922 + $0x48] sm:$0xf]
        %v983 = vld [vmem:[%s922 + $0x4c] sm:$0xf]
        %v984 = vld [vmem:[%s922 + $0x50] sm:$0x1]
        %v985 = vld [vmem:[%s922 + $0x54] sm:$0xf]
        %v986 = vld [vmem:[%s922 + $0x58] sm:$0xf]
        %v987 = vld [vmem:[%s922 + $0x5c] sm:$0x1]
        %v988 = vld [vmem:[%s922 + $0x60] sm:$0xf]
        %v989 = vld [vmem:[%s922 + $0x64] sm:$0xf]
        %v990 = vld [vmem:[%s922 + $0x68] sm:$0x1]
        %v991 = vld [vmem:[%s922 + $0x6c] sm:$0xf]
        %v992 = vld [vmem:[%s922 + $0x70] sm:$0xf]
        %v993 = vld [vmem:[%s922 + $0x74] sm:$0x1]
        %vm994 = vsmask.f32 3328
        %vm995 = vsmask.f32 7440
        %vm996 = vmor %vm994, %vm995
        %v998 = vshrl.u32 %v964, 16
        %v1000 = vrot.slane %v998, 4
        %v1001 = vshll.u32 %v964, 16
        %v1003 = vrot.slane %v1001, 5
        %v1004 = vor.u32 %v1000, %v1003
        %v1005 = vrot.slane %v1004, 4
        %v1007 = vshll.u32 %v965, 16
        %v1009 = vrot.slane %v1007, 5
        %v1010 = vsel %vm996, %v1005, %v1009
        %v1011 = vshrl.u32 %v965, 16
        %v1013 = vrot.slane %v1011, 4
        %v1014 = vor.u32 %v1013, %v1009
        %v1015 = vrot.slane %v1014, 4
        %v1017 = vshll.u32 %v966, 16
        %v1019 = vrot.slane %v1017, 5
        %v1020 = vsel %vm996, %v1015, %v1019
        %v1022 = vshrl.u32 %v967, 16
        %v1024 = vrot.slane %v1022, 4
        %v1025 = vshll.u32 %v967, 16
        %v1027 = vrot.slane %v1025, 5
        %v1028 = vor.u32 %v1024, %v1027
        %v1029 = vrot.slane %v1028, 4
        %v1031 = vshll.u32 %v968, 16
        %v1033 = vrot.slane %v1031, 5
        %v1034 = vsel %vm996, %v1029, %v1033
        %v1035 = vshrl.u32 %v968, 16
        %v1037 = vrot.slane %v1035, 4
        %v1038 = vor.u32 %v1037, %v1033
        %v1039 = vrot.slane %v1038, 4
        %v1041 = vshll.u32 %v969, 16
        %v1043 = vrot.slane %v1041, 5
        %v1044 = vsel %vm996, %v1039, %v1043
        %v1046 = vshrl.u32 %v970, 16
        %v1048 = vrot.slane %v1046, 4
        %v1049 = vshll.u32 %v970, 16
        %v1051 = vrot.slane %v1049, 5
        %v1052 = vor.u32 %v1048, %v1051
        %v1053 = vrot.slane %v1052, 4
        %v1055 = vshll.u32 %v971, 16
        %v1057 = vrot.slane %v1055, 5
        %v1058 = vsel %vm996, %v1053, %v1057
        %v1059 = vshrl.u32 %v971, 16
        %v1061 = vrot.slane %v1059, 4
        %v1062 = vor.u32 %v1061, %v1057
        %v1063 = vrot.slane %v1062, 4
        %v1065 = vshll.u32 %v972, 16
        %v1067 = vrot.slane %v1065, 5
        %v1068 = vsel %vm996, %v1063, %v1067
        %v1070 = vshrl.u32 %v973, 16
        %v1072 = vrot.slane %v1070, 4
        %v1073 = vshll.u32 %v973, 16
        %v1075 = vrot.slane %v1073, 5
        %v1076 = vor.u32 %v1072, %v1075
        %v1077 = vrot.slane %v1076, 4
        %v1079 = vshll.u32 %v974, 16
        %v1081 = vrot.slane %v1079, 5
        %v1082 = vsel %vm996, %v1077, %v1081
        %v1083 = vshrl.u32 %v974, 16
        %v1085 = vrot.slane %v1083, 4
        %v1086 = vor.u32 %v1085, %v1081
        %v1087 = vrot.slane %v1086, 4
        %v1089 = vshll.u32 %v975, 16
        %v1091 = vrot.slane %v1089, 5
        %v1092 = vsel %vm996, %v1087, %v1091
        %v1094 = vshrl.u32 %v976, 16
        %v1096 = vrot.slane %v1094, 4
        %v1097 = vshll.u32 %v976, 16
        %v1099 = vrot.slane %v1097, 5
        %v1100 = vor.u32 %v1096, %v1099
        %v1101 = vrot.slane %v1100, 4
        %v1103 = vshll.u32 %v977, 16
        %v1105 = vrot.slane %v1103, 5
        %v1106 = vsel %vm996, %v1101, %v1105
        %v1107 = vshrl.u32 %v977, 16
        %v1109 = vrot.slane %v1107, 4
        %v1110 = vor.u32 %v1109, %v1105
        %v1111 = vrot.slane %v1110, 4
        %v1113 = vshll.u32 %v978, 16
        %v1115 = vrot.slane %v1113, 5
        %v1116 = vsel %vm996, %v1111, %v1115
        %v1118 = vshrl.u32 %v979, 16
        %v1120 = vrot.slane %v1118, 4
        %v1121 = vshll.u32 %v979, 16
        %v1123 = vrot.slane %v1121, 5
        %v1124 = vor.u32 %v1120, %v1123
        %v1125 = vrot.slane %v1124, 4
        %v1127 = vshll.u32 %v980, 16
        %v1129 = vrot.slane %v1127, 5
        %v1130 = vsel %vm996, %v1125, %v1129
        %v1131 = vshrl.u32 %v980, 16
        %v1133 = vrot.slane %v1131, 4
        %v1134 = vor.u32 %v1133, %v1129
        %v1135 = vrot.slane %v1134, 4
        %v1137 = vshll.u32 %v981, 16
        %v1139 = vrot.slane %v1137, 5
        %v1140 = vsel %vm996, %v1135, %v1139
        %v1142 = vshrl.u32 %v982, 16
        %v1144 = vrot.slane %v1142, 4
        %v1145 = vshll.u32 %v982, 16
        %v1147 = vrot.slane %v1145, 5
        %v1148 = vor.u32 %v1144, %v1147
        %v1149 = vrot.slane %v1148, 4
        %v1151 = vshll.u32 %v983, 16
        %v1153 = vrot.slane %v1151, 5
        %v1154 = vsel %vm996, %v1149, %v1153
        %v1155 = vshrl.u32 %v983, 16
        %v1157 = vrot.slane %v1155, 4
        %v1158 = vor.u32 %v1157, %v1153
        %v1159 = vrot.slane %v1158, 4
        %v1161 = vshll.u32 %v984, 16
        %v1163 = vrot.slane %v1161, 5
        %v1164 = vsel %vm996, %v1159, %v1163
        %v1166 = vshrl.u32 %v985, 16
        %v1168 = vrot.slane %v1166, 4
        %v1169 = vshll.u32 %v985, 16
        %v1171 = vrot.slane %v1169, 5
        %v1172 = vor.u32 %v1168, %v1171
        %v1173 = vrot.slane %v1172, 4
        %v1175 = vshll.u32 %v986, 16
        %v1177 = vrot.slane %v1175, 5
        %v1178 = vsel %vm996, %v1173, %v1177
        %v1179 = vshrl.u32 %v986, 16
        %v1181 = vrot.slane %v1179, 4
        %v1182 = vor.u32 %v1181, %v1177
        %v1183 = vrot.slane %v1182, 4
        %v1185 = vshll.u32 %v987, 16
        %v1187 = vrot.slane %v1185, 5
        %v1188 = vsel %vm996, %v1183, %v1187
        %v1190 = vshrl.u32 %v988, 16
        %v1192 = vrot.slane %v1190, 4
        %v1193 = vshll.u32 %v988, 16
        %v1195 = vrot.slane %v1193, 5
        %v1196 = vor.u32 %v1192, %v1195
        %v1197 = vrot.slane %v1196, 4
        %v1199 = vshll.u32 %v989, 16
        %v1201 = vrot.slane %v1199, 5
        %v1202 = vsel %vm996, %v1197, %v1201
        %v1203 = vshrl.u32 %v989, 16
        %v1205 = vrot.slane %v1203, 4
        %v1206 = vor.u32 %v1205, %v1201
        %v1207 = vrot.slane %v1206, 4
        %v1209 = vshll.u32 %v990, 16
        %v1211 = vrot.slane %v1209, 5
        %v1212 = vsel %vm996, %v1207, %v1211
        %v1214 = vshrl.u32 %v991, 16
        %v1216 = vrot.slane %v1214, 4
        %v1217 = vshll.u32 %v991, 16
        %v1219 = vrot.slane %v1217, 5
        %v1220 = vor.u32 %v1216, %v1219
        %v1221 = vrot.slane %v1220, 4
        %v1223 = vshll.u32 %v992, 16
        %v1225 = vrot.slane %v1223, 5
        %v1226 = vsel %vm996, %v1221, %v1225
        %v1227 = vshrl.u32 %v992, 16
        %v1229 = vrot.slane %v1227, 4
        %v1230 = vor.u32 %v1229, %v1225
        %v1231 = vrot.slane %v1230, 4
        %v1233 = vshll.u32 %v993, 16
        %v1235 = vrot.slane %v1233, 5
        %v1236 = vsel %vm996, %v1231, %v1235
        %1237 = vrot.lane.b32.xlu0 %v1010, 4
        %v1238 = vpop.permute.xlu0 %1237
        %1239 = vrot.lane.b32.xlu0 %v1020, 4
        %v1240 = vpop.permute.xlu0 %1239
        %1241 = vrot.lane.b32.xlu0 %v1034, 4
        %v1242 = vpop.permute.xlu0 %1241
        %1243 = vrot.lane.b32.xlu0 %v1044, 4
        %v1244 = vpop.permute.xlu0 %1243
        %1245 = vrot.lane.b32.xlu0 %v1058, 4
        %v1246 = vpop.permute.xlu0 %1245
        %1247 = vrot.lane.b32.xlu0 %v1068, 4
        %v1248 = vpop.permute.xlu0 %1247
        %1249 = vrot.lane.b32.xlu0 %v1082, 4
        %v1250 = vpop.permute.xlu0 %1249
        %1251 = vrot.lane.b32.xlu0 %v1092, 4
        %v1252 = vpop.permute.xlu0 %1251
        %1253 = vrot.lane.b32.xlu0 %v1106, 4
        %v1254 = vpop.permute.xlu0 %1253
        %1255 = vrot.lane.b32.xlu0 %v1116, 4
        %v1256 = vpop.permute.xlu0 %1255
        %1257 = vrot.lane.b32.xlu0 %v1130, 4
        %v1258 = vpop.permute.xlu0 %1257
        %1259 = vrot.lane.b32.xlu0 %v1140, 4
        %v1260 = vpop.permute.xlu0 %1259
        %1261 = vrot.lane.b32.xlu0 %v1154, 4
        %v1262 = vpop.permute.xlu0 %1261
        %1263 = vrot.lane.b32.xlu0 %v1164, 4
        %v1264 = vpop.permute.xlu0 %1263
        %1265 = vrot.lane.b32.xlu0 %v1178, 4
        %v1266 = vpop.permute.xlu0 %1265
        %1267 = vrot.lane.b32.xlu0 %v1188, 4
        %v1268 = vpop.permute.xlu0 %1267
        %1269 = vrot.lane.b32.xlu0 %v1202, 4
        %v1270 = vpop.permute.xlu0 %1269
        %1271 = vrot.lane.b32.xlu0 %v1212, 4
        %v1272 = vpop.permute.xlu0 %1271
        %1273 = vrot.lane.b32.xlu0 %v1226, 4
        %v1274 = vpop.permute.xlu0 %1273
        %1275 = vrot.lane.b32.xlu0 %v1236, 4
        %v1276 = vpop.permute.xlu0 %1275
        %vm1297 = vcmask 60448
        %1298 = vst.msk [vmem:[#allocation3] sm:$0xf] %vm1297, %v1238
        %1299 = vst.msk [vmem:[#allocation3 + $0x4] sm:$0xf] %vm1297, %v1240
        %1300 = vst.msk [vmem:[#allocation3 + $0x8] sm:$0xf] %vm1297, %v1242
        %1301 = vst.msk [vmem:[#allocation3 + $0xc] sm:$0xf] %vm1297, %v1244
        %1302 = vst.msk [vmem:[#allocation3 + $0x10] sm:$0xf] %vm1297, %v1246
        %1303 = vst.msk [vmem:[#allocation3 + $0x14] sm:$0xf] %vm1297, %v1248
        %1304 = vst.msk [vmem:[#allocation3 + $0x18] sm:$0xf] %vm1297, %v1250
        %1305 = vst.msk [vmem:[#allocation3 + $0x1c] sm:$0xf] %vm1297, %v1252
        %1306 = vst.msk [vmem:[#allocation3 + $0x20] sm:$0xf] %vm1297, %v1254
        %1307 = vst.msk [vmem:[#allocation3 + $0x24] sm:$0xf] %vm1297, %v1256
        %1308 = vst.msk [vmem:[#allocation3 + $0x28] sm:$0xf] %vm1297, %v1258
        %1309 = vst.msk [vmem:[#allocation3 + $0x2c] sm:$0xf] %vm1297, %v1260
        %1310 = vst.msk [vmem:[#allocation3 + $0x30] sm:$0xf] %vm1297, %v1262
        %1311 = vst.msk [vmem:[#allocation3 + $0x34] sm:$0xf] %vm1297, %v1264
        %1312 = vst.msk [vmem:[#allocation3 + $0x38] sm:$0xf] %vm1297, %v1266
        %1313 = vst.msk [vmem:[#allocation3 + $0x3c] sm:$0xf] %vm1297, %v1268
        %1314 = vst.msk [vmem:[#allocation3 + $0x40] sm:$0xf] %vm1297, %v1270
        %1315 = vst.msk [vmem:[#allocation3 + $0x44] sm:$0xf] %vm1297, %v1272
        %1316 = vst.msk [vmem:[#allocation3 + $0x48] sm:$0xf] %vm1297, %v1274
        %1317 = vst.msk [vmem:[#allocation3 + $0x4c] sm:$0xf] %vm1297, %v1276
        %v1318 = vld [vmem:[%s922] sm:$0xe]
        %v1319 = vld [vmem:[%s922 + $0x4] sm:$0xf]
        %v1320 = vld [vmem:[%s922 + $0x8] sm:$0x1]
        %v1321 = vld [vmem:[%s922 + $0xc] sm:$0xe]
        %v1322 = vld [vmem:[%s922 + $0x10] sm:$0xf]
        %v1323 = vld [vmem:[%s922 + $0x14] sm:$0x1]
        %v1324 = vld [vmem:[%s922 + $0x18] sm:$0xe]
        %v1325 = vld [vmem:[%s922 + $0x1c] sm:$0xf]
        %v1326 = vld [vmem:[%s922 + $0x20] sm:$0x1]
        %v1327 = vld [vmem:[%s922 + $0x24] sm:$0xe]
        %v1328 = vld [vmem:[%s922 + $0x28] sm:$0xf]
        %v1329 = vld [vmem:[%s922 + $0x2c] sm:$0x1]
        %v1330 = vld [vmem:[%s922 + $0x30] sm:$0xe]
        %v1331 = vld [vmem:[%s922 + $0x34] sm:$0xf]
        %v1332 = vld [vmem:[%s922 + $0x38] sm:$0x1]
        %v1333 = vld [vmem:[%s922 + $0x3c] sm:$0xe]
        %v1334 = vld [vmem:[%s922 + $0x40] sm:$0xf]
        %v1335 = vld [vmem:[%s922 + $0x44] sm:$0x1]
        %v1336 = vld [vmem:[%s922 + $0x48] sm:$0xe]
        %v1337 = vld [vmem:[%s922 + $0x4c] sm:$0xf]
        %v1338 = vld [vmem:[%s922 + $0x50] sm:$0x1]
        %v1339 = vld [vmem:[%s922 + $0x54] sm:$0xe]
        %v1340 = vld [vmem:[%s922 + $0x58] sm:$0xf]
        %v1341 = vld [vmem:[%s922 + $0x5c] sm:$0x1]
        %v1342 = vld [vmem:[%s922 + $0x60] sm:$0xe]
        %v1343 = vld [vmem:[%s922 + $0x64] sm:$0xf]
        %v1344 = vld [vmem:[%s922 + $0x68] sm:$0x1]
        %v1345 = vld [vmem:[%s922 + $0x6c] sm:$0xe]
        %v1346 = vld [vmem:[%s922 + $0x70] sm:$0xf]
        %v1347 = vld [vmem:[%s922 + $0x74] sm:$0x1]
        %vm1378 = vcmask 1042432
        %vm1379 = vcmask 1046532
        %vm1380 = vmor %vm1378, %vm1379
        %v1381 = vrot.slane %v1318, 5
        %v1382 = vrot.slane %v1381, 4
        %v1383 = vrot.slane %v1319, 5
        %v1384 = vsel %vm1380, %v1382, %v1383
        %v1385 = vrot.slane %v1383, 4
        %v1386 = vrot.slane %v1320, 5
        %v1387 = vsel %vm1380, %v1385, %v1386
        %v1388 = vrot.slane %v1321, 5
        %v1389 = vrot.slane %v1388, 4
        %v1390 = vrot.slane %v1322, 5
        %v1391 = vsel %vm1380, %v1389, %v1390
        %v1392 = vrot.slane %v1390, 4
        %v1393 = vrot.slane %v1323, 5
        %v1394 = vsel %vm1380, %v1392, %v1393
        %v1395 = vrot.slane %v1324, 5
        %v1396 = vrot.slane %v1395, 4
        %v1397 = vrot.slane %v1325, 5
        %v1398 = vsel %vm1380, %v1396, %v1397
        %v1399 = vrot.slane %v1397, 4
        %v1400 = vrot.slane %v1326, 5
        %v1401 = vsel %vm1380, %v1399, %v1400
        %v1402 = vrot.slane %v1327, 5
        %v1403 = vrot.slane %v1402, 4
        %v1404 = vrot.slane %v1328, 5
        %v1405 = vsel %vm1380, %v1403, %v1404
        %v1406 = vrot.slane %v1404, 4
        %v1407 = vrot.slane %v1329, 5
        %v1408 = vsel %vm1380, %v1406, %v1407
        %v1409 = vrot.slane %v1330, 5
        %v1410 = vrot.slane %v1409, 4
        %v1411 = vrot.slane %v1331, 5
        %v1412 = vsel %vm1380, %v1410, %v1411
        %v1413 = vrot.slane %v1411, 4
        %v1414 = vrot.slane %v1332, 5
        %v1415 = vsel %vm1380, %v1413, %v1414
        %v1416 = vrot.slane %v1333, 5
        %v1417 = vrot.slane %v1416, 4
        %v1418 = vrot.slane %v1334, 5
        %v1419 = vsel %vm1380, %v1417, %v1418
        %v1420 = vrot.slane %v1418, 4
        %v1421 = vrot.slane %v1335, 5
        %v1422 = vsel %vm1380, %v1420, %v1421
        %v1423 = vrot.slane %v1336, 5
        %v1424 = vrot.slane %v1423, 4
        %v1425 = vrot.slane %v1337, 5
        %v1426 = vsel %vm1380, %v1424, %v1425
        %v1427 = vrot.slane %v1425, 4
        %v1428 = vrot.slane %v1338, 5
        %v1429 = vsel %vm1380, %v1427, %v1428
        %v1430 = vrot.slane %v1339, 5
        %v1431 = vrot.slane %v1430, 4
        %v1432 = vrot.slane %v1340, 5
        %v1433 = vsel %vm1380, %v1431, %v1432
        %v1434 = vrot.slane %v1432, 4
        %v1435 = vrot.slane %v1341, 5
        %v1436 = vsel %vm1380, %v1434, %v1435
        %v1437 = vrot.slane %v1342, 5
        %v1438 = vrot.slane %v1437, 4
        %v1439 = vrot.slane %v1343, 5
        %v1440 = vsel %vm1380, %v1438, %v1439
        %v1441 = vrot.slane %v1439, 4
        %v1442 = vrot.slane %v1344, 5
        %v1443 = vsel %vm1380, %v1441, %v1442
        %v1444 = vrot.slane %v1345, 5
        %v1445 = vrot.slane %v1444, 4
        %v1446 = vrot.slane %v1346, 5
        %v1447 = vsel %vm1380, %v1445, %v1446
        %v1448 = vrot.slane %v1446, 4
        %v1449 = vrot.slane %v1347, 5
        %v1450 = vsel %vm1380, %v1448, %v1449
        %1451 = vrot.lane.b32.xlu0 %v1384, 8
        %v1452 = vpop.permute.xlu0 %1451
        %1453 = vrot.lane.b32.xlu0 %v1387, 8
        %v1454 = vpop.permute.xlu0 %1453
        %1455 = vrot.lane.b32.xlu0 %v1391, 8
        %v1456 = vpop.permute.xlu0 %1455
        %1457 = vrot.lane.b32.xlu0 %v1394, 8
        %v1458 = vpop.permute.xlu0 %1457
        %1459 = vrot.lane.b32.xlu0 %v1398, 8
        %v1460 = vpop.permute.xlu0 %1459
        %1461 = vrot.lane.b32.xlu0 %v1401, 8
        %v1462 = vpop.permute.xlu0 %1461
        %1463 = vrot.lane.b32.xlu0 %v1405, 8
        %v1464 = vpop.permute.xlu0 %1463
        %1465 = vrot.lane.b32.xlu0 %v1408, 8
        %v1466 = vpop.permute.xlu0 %1465
        %1467 = vrot.lane.b32.xlu0 %v1412, 8
        %v1468 = vpop.permute.xlu0 %1467
        %1469 = vrot.lane.b32.xlu0 %v1415, 8
        %v1470 = vpop.permute.xlu0 %1469
        %1471 = vrot.lane.b32.xlu0 %v1419, 8
        %v1472 = vpop.permute.xlu0 %1471
        %1473 = vrot.lane.b32.xlu0 %v1422, 8
        %v1474 = vpop.permute.xlu0 %1473
        %1475 = vrot.lane.b32.xlu0 %v1426, 8
        %v1476 = vpop.permute.xlu0 %1475
        %1477 = vrot.lane.b32.xlu0 %v1429, 8
        %v1478 = vpop.permute.xlu0 %1477
        %1479 = vrot.lane.b32.xlu0 %v1433, 8
        %v1480 = vpop.permute.xlu0 %1479
        %1481 = vrot.lane.b32.xlu0 %v1436, 8
        %v1482 = vpop.permute.xlu0 %1481
        %1483 = vrot.lane.b32.xlu0 %v1440, 8
        %v1484 = vpop.permute.xlu0 %1483
        %1485 = vrot.lane.b32.xlu0 %v1443, 8
        %v1486 = vpop.permute.xlu0 %1485
        %1487 = vrot.lane.b32.xlu0 %v1447, 8
        %v1488 = vpop.permute.xlu0 %1487
        %1489 = vrot.lane.b32.xlu0 %v1450, 8
        %v1490 = vpop.permute.xlu0 %1489
        %vm1511 = vcmask 93248
        %1512 = vst.msk [vmem:[#allocation3] sm:$0xf] %vm1511, %v1452
        %1513 = vst.msk [vmem:[#allocation3 + $0x4] sm:$0xf] %vm1511, %v1454
        %1514 = vst.msk [vmem:[#allocation3 + $0x8] sm:$0xf] %vm1511, %v1456
        %1515 = vst.msk [vmem:[#allocation3 + $0xc] sm:$0xf] %vm1511, %v1458
        %1516 = vst.msk [vmem:[#allocation3 + $0x10] sm:$0xf] %vm1511, %v1460
        %1517 = vst.msk [vmem:[#allocation3 + $0x14] sm:$0xf] %vm1511, %v1462
        %1518 = vst.msk [vmem:[#allocation3 + $0x18] sm:$0xf] %vm1511, %v1464
        %1519 = vst.msk [vmem:[#allocation3 + $0x1c] sm:$0xf] %vm1511, %v1466
        %1520 = vst.msk [vmem:[#allocation3 + $0x20] sm:$0xf] %vm1511, %v1468
        %1521 = vst.msk [vmem:[#allocation3 + $0x24] sm:$0xf] %vm1511, %v1470
        %1522 = vst.msk [vmem:[#allocation3 + $0x28] sm:$0xf] %vm1511, %v1472
        %1523 = vst.msk [vmem:[#allocation3 + $0x2c] sm:$0xf] %vm1511, %v1474
        %1524 = vst.msk [vmem:[#allocation3 + $0x30] sm:$0xf] %vm1511, %v1476
        %1525 = vst.msk [vmem:[#allocation3 + $0x34] sm:$0xf] %vm1511, %v1478
        %1526 = vst.msk [vmem:[#allocation3 + $0x38] sm:$0xf] %vm1511, %v1480
        %1527 = vst.msk [vmem:[#allocation3 + $0x3c] sm:$0xf] %vm1511, %v1482
        %1528 = vst.msk [vmem:[#allocation3 + $0x40] sm:$0xf] %vm1511, %v1484
        %1529 = vst.msk [vmem:[#allocation3 + $0x44] sm:$0xf] %vm1511, %v1486
        %1530 = vst.msk [vmem:[#allocation3 + $0x48] sm:$0xf] %vm1511, %v1488
        %1531 = vst.msk [vmem:[#allocation3 + $0x4c] sm:$0xf] %vm1511, %v1490
        %s1532 = sadd.s32 %s238, 1
        %s1533 = smul.u32 %s1532, 3
        %s1534 = smul.addr %s1533, 4
        %s1535 = scalar_lea.vmem [#allocation2], %s1534
        %v1536 = vld [vmem:[%s1535] sm:$0xf]
        %v1537 = vld [vmem:[%s1535 + $0x4] sm:$0xf]
        %v1538 = vld [vmem:[%s1535 + $0xc] sm:$0xf]
        %v1539 = vld [vmem:[%s1535 + $0x10] sm:$0xf]
        %v1540 = vld [vmem:[%s1535 + $0x18] sm:$0xf]
        %v1541 = vld [vmem:[%s1535 + $0x1c] sm:$0xf]
        %v1542 = vld [vmem:[%s1535 + $0x24] sm:$0xf]
        %v1543 = vld [vmem:[%s1535 + $0x28] sm:$0xf]
        %v1544 = vld [vmem:[%s1535 + $0x30] sm:$0xf]
        %v1545 = vld [vmem:[%s1535 + $0x34] sm:$0xf]
        %v1546 = vld [vmem:[%s1535 + $0x3c] sm:$0xf]
        %v1547 = vld [vmem:[%s1535 + $0x40] sm:$0xf]
        %v1548 = vld [vmem:[%s1535 + $0x48] sm:$0xf]
        %v1549 = vld [vmem:[%s1535 + $0x4c] sm:$0xf]
        %v1550 = vld [vmem:[%s1535 + $0x54] sm:$0xf]
        %v1551 = vld [vmem:[%s1535 + $0x58] sm:$0xf]
        %v1552 = vld [vmem:[%s1535 + $0x60] sm:$0xf]
        %v1553 = vld [vmem:[%s1535 + $0x64] sm:$0xf]
        %v1554 = vld [vmem:[%s1535 + $0x6c] sm:$0xf]
        %v1555 = vld [vmem:[%s1535 + $0x70] sm:$0xf]
        %1576 = vrot.lane.b32.xlu0 %v1536, 12
        %v1577 = vpop.permute.xlu0 %1576
        %1578 = vrot.lane.b32.xlu0 %v1537, 12
        %v1579 = vpop.permute.xlu0 %1578
        %1580 = vrot.lane.b32.xlu0 %v1538, 12
        %v1581 = vpop.permute.xlu0 %1580
        %1582 = vrot.lane.b32.xlu0 %v1539, 12
        %v1583 = vpop.permute.xlu0 %1582
        %1584 = vrot.lane.b32.xlu0 %v1540, 12
        %v1585 = vpop.permute.xlu0 %1584
        %1586 = vrot.lane.b32.xlu0 %v1541, 12
        %v1587 = vpop.permute.xlu0 %1586
        %1588 = vrot.lane.b32.xlu0 %v1542, 12
        %v1589 = vpop.permute.xlu0 %1588
        %1590 = vrot.lane.b32.xlu0 %v1543, 12
        %v1591 = vpop.permute.xlu0 %1590
        %1592 = vrot.lane.b32.xlu0 %v1544, 12
        %v1593 = vpop.permute.xlu0 %1592
        %1594 = vrot.lane.b32.xlu0 %v1545, 12
        %v1595 = vpop.permute.xlu0 %1594
        %1596 = vrot.lane.b32.xlu0 %v1546, 12
        %v1597 = vpop.permute.xlu0 %1596
        %1598 = vrot.lane.b32.xlu0 %v1547, 12
        %v1599 = vpop.permute.xlu0 %1598
        %1600 = vrot.lane.b32.xlu0 %v1548, 12
        %v1601 = vpop.permute.xlu0 %1600
        %1602 = vrot.lane.b32.xlu0 %v1549, 12
        %v1603 = vpop.permute.xlu0 %1602
        %1604 = vrot.lane.b32.xlu0 %v1550, 12
        %v1605 = vpop.permute.xlu0 %1604
        %1606 = vrot.lane.b32.xlu0 %v1551, 12
        %v1607 = vpop.permute.xlu0 %1606
        %1608 = vrot.lane.b32.xlu0 %v1552, 12
        %v1609 = vpop.permute.xlu0 %1608
        %1610 = vrot.lane.b32.xlu0 %v1553, 12
        %v1611 = vpop.permute.xlu0 %1610
        %1612 = vrot.lane.b32.xlu0 %v1554, 12
        %v1613 = vpop.permute.xlu0 %1612
        %1614 = vrot.lane.b32.xlu0 %v1555, 12
        %v1615 = vpop.permute.xlu0 %1614
        %vm1636 = vcmask 126048
        %1637 = vst.msk [vmem:[#allocation3] sm:$0xf] %vm1636, %v1577
        %1638 = vst.msk [vmem:[#allocation3 + $0x4] sm:$0xf] %vm1636, %v1579
        %1639 = vst.msk [vmem:[#allocation3 + $0x8] sm:$0xf] %vm1636, %v1581
        %1640 = vst.msk [vmem:[#allocation3 + $0xc] sm:$0xf] %vm1636, %v1583
        %1641 = vst.msk [vmem:[#allocation3 + $0x10] sm:$0xf] %vm1636, %v1585
        %1642 = vst.msk [vmem:[#allocation3 + $0x14] sm:$0xf] %vm1636, %v1587
        %1643 = vst.msk [vmem:[#allocation3 + $0x18] sm:$0xf] %vm1636, %v1589
        %1644 = vst.msk [vmem:[#allocation3 + $0x1c] sm:$0xf] %vm1636, %v1591
        %1645 = vst.msk [vmem:[#allocation3 + $0x20] sm:$0xf] %vm1636, %v1593
        %1646 = vst.msk [vmem:[#allocation3 + $0x24] sm:$0xf] %vm1636, %v1595
        %1647 = vst.msk [vmem:[#allocation3 + $0x28] sm:$0xf] %vm1636, %v1597
        %1648 = vst.msk [vmem:[#allocation3 + $0x2c] sm:$0xf] %vm1636, %v1599
        %1649 = vst.msk [vmem:[#allocation3 + $0x30] sm:$0xf] %vm1636, %v1601
        %1650 = vst.msk [vmem:[#allocation3 + $0x34] sm:$0xf] %vm1636, %v1603
        %1651 = vst.msk [vmem:[#allocation3 + $0x38] sm:$0xf] %vm1636, %v1605
        %1652 = vst.msk [vmem:[#allocation3 + $0x3c] sm:$0xf] %vm1636, %v1607
        %1653 = vst.msk [vmem:[#allocation3 + $0x40] sm:$0xf] %vm1636, %v1609
        %1654 = vst.msk [vmem:[#allocation3 + $0x44] sm:$0xf] %vm1636, %v1611
        %1655 = vst.msk [vmem:[#allocation3 + $0x48] sm:$0xf] %vm1636, %v1613
        %1656 = vst.msk [vmem:[#allocation3 + $0x4c] sm:$0xf] %vm1636, %v1615
        %v1657 = vld [vmem:[%s1535] sm:$0xf]
        %v1658 = vld [vmem:[%s1535 + $0x4] sm:$0xf]
        %v1659 = vld [vmem:[%s1535 + $0x8] sm:$0x1]
        %v1660 = vld [vmem:[%s1535 + $0xc] sm:$0xf]
        %v1661 = vld [vmem:[%s1535 + $0x10] sm:$0xf]
        %v1662 = vld [vmem:[%s1535 + $0x14] sm:$0x1]
        %v1663 = vld [vmem:[%s1535 + $0x18] sm:$0xf]
        %v1664 = vld [vmem:[%s1535 + $0x1c] sm:$0xf]
        %v1665 = vld [vmem:[%s1535 + $0x20] sm:$0x1]
        %v1666 = vld [vmem:[%s1535 + $0x24] sm:$0xf]
        %v1667 = vld [vmem:[%s1535 + $0x28] sm:$0xf]
        %v1668 = vld [vmem:[%s1535 + $0x2c] sm:$0x1]
        %v1669 = vld [vmem:[%s1535 + $0x30] sm:$0xf]
        %v1670 = vld [vmem:[%s1535 + $0x34] sm:$0xf]
        %v1671 = vld [vmem:[%s1535 + $0x38] sm:$0x1]
        %v1672 = vld [vmem:[%s1535 + $0x3c] sm:$0xf]
        %v1673 = vld [vmem:[%s1535 + $0x40] sm:$0xf]
        %v1674 = vld [vmem:[%s1535 + $0x44] sm:$0x1]
        %v1675 = vld [vmem:[%s1535 + $0x48] sm:$0xf]
        %v1676 = vld [vmem:[%s1535 + $0x4c] sm:$0xf]
        %v1677 = vld [vmem:[%s1535 + $0x50] sm:$0x1]
        %v1678 = vld [vmem:[%s1535 + $0x54] sm:$0xf]
        %v1679 = vld [vmem:[%s1535 + $0x58] sm:$0xf]
        %v1680 = vld [vmem:[%s1535 + $0x5c] sm:$0x1]
        %v1681 = vld [vmem:[%s1535 + $0x60] sm:$0xf]
        %v1682 = vld [vmem:[%s1535 + $0x64] sm:$0xf]
        %v1683 = vld [vmem:[%s1535 + $0x68] sm:$0x1]
        %v1684 = vld [vmem:[%s1535 + $0x6c] sm:$0xf]
        %v1685 = vld [vmem:[%s1535 + $0x70] sm:$0xf]
        %v1686 = vld [vmem:[%s1535 + $0x74] sm:$0x1]
        %v1688 = vshrl.u32 %v1657, 16
        %v1690 = vrot.slane %v1688, 4
        %v1691 = vshll.u32 %v1657, 16
        %v1693 = vrot.slane %v1691, 5
        %v1694 = vor.u32 %v1690, %v1693
        %v1695 = vrot.slane %v1694, 4
        %v1697 = vshll.u32 %v1658, 16
        %v1699 = vrot.slane %v1697, 5
        %v1700 = vsel %vm996, %v1695, %v1699
        %v1701 = vshrl.u32 %v1658, 16
        %v1703 = vrot.slane %v1701, 4
        %v1704 = vor.u32 %v1703, %v1699
        %v1705 = vrot.slane %v1704, 4
        %v1707 = vshll.u32 %v1659, 16
        %v1709 = vrot.slane %v1707, 5
        %v1710 = vsel %vm996, %v1705, %v1709
        %v1712 = vshrl.u32 %v1660, 16
        %v1714 = vrot.slane %v1712, 4
        %v1715 = vshll.u32 %v1660, 16
        %v1717 = vrot.slane %v1715, 5
        %v1718 = vor.u32 %v1714, %v1717
        %v1719 = vrot.slane %v1718, 4
        %v1721 = vshll.u32 %v1661, 16
        %v1723 = vrot.slane %v1721, 5
        %v1724 = vsel %vm996, %v1719, %v1723
        %v1725 = vshrl.u32 %v1661, 16
        %v1727 = vrot.slane %v1725, 4
        %v1728 = vor.u32 %v1727, %v1723
        %v1729 = vrot.slane %v1728, 4
        %v1731 = vshll.u32 %v1662, 16
        %v1733 = vrot.slane %v1731, 5
        %v1734 = vsel %vm996, %v1729, %v1733
        %v1736 = vshrl.u32 %v1663, 16
        %v1738 = vrot.slane %v1736, 4
        %v1739 = vshll.u32 %v1663, 16
        %v1741 = vrot.slane %v1739, 5
        %v1742 = vor.u32 %v1738, %v1741
        %v1743 = vrot.slane %v1742, 4
        %v1745 = vshll.u32 %v1664, 16
        %v1747 = vrot.slane %v1745, 5
        %v1748 = vsel %vm996, %v1743, %v1747
        %v1749 = vshrl.u32 %v1664, 16
        %v1751 = vrot.slane %v1749, 4
        %v1752 = vor.u32 %v1751, %v1747
        %v1753 = vrot.slane %v1752, 4
        %v1755 = vshll.u32 %v1665, 16
        %v1757 = vrot.slane %v1755, 5
        %v1758 = vsel %vm996, %v1753, %v1757
        %v1760 = vshrl.u32 %v1666, 16
        %v1762 = vrot.slane %v1760, 4
        %v1763 = vshll.u32 %v1666, 16
        %v1765 = vrot.slane %v1763, 5
        %v1766 = vor.u32 %v1762, %v1765
        %v1767 = vrot.slane %v1766, 4
        %v1769 = vshll.u32 %v1667, 16
        %v1771 = vrot.slane %v1769, 5
        %v1772 = vsel %vm996, %v1767, %v1771
        %v1773 = vshrl.u32 %v1667, 16
        %v1775 = vrot.slane %v1773, 4
        %v1776 = vor.u32 %v1775, %v1771
        %v1777 = vrot.slane %v1776, 4
        %v1779 = vshll.u32 %v1668, 16
        %v1781 = vrot.slane %v1779, 5
        %v1782 = vsel %vm996, %v1777, %v1781
        %v1784 = vshrl.u32 %v1669, 16
        %v1786 = vrot.slane %v1784, 4
        %v1787 = vshll.u32 %v1669, 16
        %v1789 = vrot.slane %v1787, 5
        %v1790 = vor.u32 %v1786, %v1789
        %v1791 = vrot.slane %v1790, 4
        %v1793 = vshll.u32 %v1670, 16
        %v1795 = vrot.slane %v1793, 5
        %v1796 = vsel %vm996, %v1791, %v1795
        %v1797 = vshrl.u32 %v1670, 16
        %v1799 = vrot.slane %v1797, 4
        %v1800 = vor.u32 %v1799, %v1795
        %v1801 = vrot.slane %v1800, 4
        %v1803 = vshll.u32 %v1671, 16
        %v1805 = vrot.slane %v1803, 5
        %v1806 = vsel %vm996, %v1801, %v1805
        %v1808 = vshrl.u32 %v1672, 16
        %v1810 = vrot.slane %v1808, 4
        %v1811 = vshll.u32 %v1672, 16
        %v1813 = vrot.slane %v1811, 5
        %v1814 = vor.u32 %v1810, %v1813
        %v1815 = vrot.slane %v1814, 4
        %v1817 = vshll.u32 %v1673, 16
        %v1819 = vrot.slane %v1817, 5
        %v1820 = vsel %vm996, %v1815, %v1819
        %v1821 = vshrl.u32 %v1673, 16
        %v1823 = vrot.slane %v1821, 4
        %v1824 = vor.u32 %v1823, %v1819
        %v1825 = vrot.slane %v1824, 4
        %v1827 = vshll.u32 %v1674, 16
        %v1829 = vrot.slane %v1827, 5
        %v1830 = vsel %vm996, %v1825, %v1829
        %v1832 = vshrl.u32 %v1675, 16
        %v1834 = vrot.slane %v1832, 4
        %v1835 = vshll.u32 %v1675, 16
        %v1837 = vrot.slane %v1835, 5
        %v1838 = vor.u32 %v1834, %v1837
        %v1839 = vrot.slane %v1838, 4
        %v1841 = vshll.u32 %v1676, 16
        %v1843 = vrot.slane %v1841, 5
        %v1844 = vsel %vm996, %v1839, %v1843
        %v1845 = vshrl.u32 %v1676, 16
        %v1847 = vrot.slane %v1845, 4
        %v1848 = vor.u32 %v1847, %v1843
        %v1849 = vrot.slane %v1848, 4
        %v1851 = vshll.u32 %v1677, 16
        %v1853 = vrot.slane %v1851, 5
        %v1854 = vsel %vm996, %v1849, %v1853
        %v1856 = vshrl.u32 %v1678, 16
        %v1858 = vrot.slane %v1856, 4
        %v1859 = vshll.u32 %v1678, 16
        %v1861 = vrot.slane %v1859, 5
        %v1862 = vor.u32 %v1858, %v1861
        %v1863 = vrot.slane %v1862, 4
        %v1865 = vshll.u32 %v1679, 16
        %v1867 = vrot.slane %v1865, 5
        %v1868 = vsel %vm996, %v1863, %v1867
        %v1869 = vshrl.u32 %v1679, 16
        %v1871 = vrot.slane %v1869, 4
        %v1872 = vor.u32 %v1871, %v1867
        %v1873 = vrot.slane %v1872, 4
        %v1875 = vshll.u32 %v1680, 16
        %v1877 = vrot.slane %v1875, 5
        %v1878 = vsel %vm996, %v1873, %v1877
        %v1880 = vshrl.u32 %v1681, 16
        %v1882 = vrot.slane %v1880, 4
        %v1883 = vshll.u32 %v1681, 16
        %v1885 = vrot.slane %v1883, 5
        %v1886 = vor.u32 %v1882, %v1885
        %v1887 = vrot.slane %v1886, 4
        %v1889 = vshll.u32 %v1682, 16
        %v1891 = vrot.slane %v1889, 5
        %v1892 = vsel %vm996, %v1887, %v1891
        %v1893 = vshrl.u32 %v1682, 16
        %v1895 = vrot.slane %v1893, 4
        %v1896 = vor.u32 %v1895, %v1891
        %v1897 = vrot.slane %v1896, 4
        %v1899 = vshll.u32 %v1683, 16
        %v1901 = vrot.slane %v1899, 5
        %v1902 = vsel %vm996, %v1897, %v1901
        %v1904 = vshrl.u32 %v1684, 16
        %v1906 = vrot.slane %v1904, 4
        %v1907 = vshll.u32 %v1684, 16
        %v1909 = vrot.slane %v1907, 5
        %v1910 = vor.u32 %v1906, %v1909
        %v1911 = vrot.slane %v1910, 4
        %v1913 = vshll.u32 %v1685, 16
        %v1915 = vrot.slane %v1913, 5
        %v1916 = vsel %vm996, %v1911, %v1915
        %v1917 = vshrl.u32 %v1685, 16
        %v1919 = vrot.slane %v1917, 4
        %v1920 = vor.u32 %v1919, %v1915
        %v1921 = vrot.slane %v1920, 4
        %v1923 = vshll.u32 %v1686, 16
        %v1925 = vrot.slane %v1923, 5
        %v1926 = vsel %vm996, %v1921, %v1925
        %1927 = vrot.lane.b32.xlu0 %v1700, 16
        %v1928 = vpop.permute.xlu0 %1927
        %1929 = vrot.lane.b32.xlu0 %v1710, 16
        %v1930 = vpop.permute.xlu0 %1929
        %1931 = vrot.lane.b32.xlu0 %v1724, 16
        %v1932 = vpop.permute.xlu0 %1931
        %1933 = vrot.lane.b32.xlu0 %v1734, 16
        %v1934 = vpop.permute.xlu0 %1933
        %1935 = vrot.lane.b32.xlu0 %v1748, 16
        %v1936 = vpop.permute.xlu0 %1935
        %1937 = vrot.lane.b32.xlu0 %v1758, 16
        %v1938 = vpop.permute.xlu0 %1937
        %1939 = vrot.lane.b32.xlu0 %v1772, 16
        %v1940 = vpop.permute.xlu0 %1939
        %1941 = vrot.lane.b32.xlu0 %v1782, 16
        %v1942 = vpop.permute.xlu0 %1941
        %1943 = vrot.lane.b32.xlu0 %v1796, 16
        %v1944 = vpop.permute.xlu0 %1943
        %1945 = vrot.lane.b32.xlu0 %v1806, 16
        %v1946 = vpop.permute.xlu0 %1945
        %1947 = vrot.lane.b32.xlu0 %v1820, 16
        %v1948 = vpop.permute.xlu0 %1947
        %1949 = vrot.lane.b32.xlu0 %v1830, 16
        %v1950 = vpop.permute.xlu0 %1949
        %1951 = vrot.lane.b32.xlu0 %v1844, 16
        %v1952 = vpop.permute.xlu0 %1951
        %1953 = vrot.lane.b32.xlu0 %v1854, 16
        %v1954 = vpop.permute.xlu0 %1953
        %1955 = vrot.lane.b32.xlu0 %v1868, 16
        %v1956 = vpop.permute.xlu0 %1955
        %1957 = vrot.lane.b32.xlu0 %v1878, 16
        %v1958 = vpop.permute.xlu0 %1957
        %1959 = vrot.lane.b32.xlu0 %v1892, 16
        %v1960 = vpop.permute.xlu0 %1959
        %1961 = vrot.lane.b32.xlu0 %v1902, 16
        %v1962 = vpop.permute.xlu0 %1961
        %1963 = vrot.lane.b32.xlu0 %v1916, 16
        %v1964 = vpop.permute.xlu0 %1963
        %1965 = vrot.lane.b32.xlu0 %v1926, 16
        %v1966 = vpop.permute.xlu0 %1965
        %vm1987 = vcmask 158848
        %1988 = vst.msk [vmem:[#allocation3] sm:$0xf] %vm1987, %v1928
        %1989 = vst.msk [vmem:[#allocation3 + $0x4] sm:$0xf] %vm1987, %v1930
        %1990 = vst.msk [vmem:[#allocation3 + $0x8] sm:$0xf] %vm1987, %v1932
        %1991 = vst.msk [vmem:[#allocation3 + $0xc] sm:$0xf] %vm1987, %v1934
        %1992 = vst.msk [vmem:[#allocation3 + $0x10] sm:$0xf] %vm1987, %v1936
        %1993 = vst.msk [vmem:[#allocation3 + $0x14] sm:$0xf] %vm1987, %v1938
        %1994 = vst.msk [vmem:[#allocation3 + $0x18] sm:$0xf] %vm1987, %v1940
        %1995 = vst.msk [vmem:[#allocation3 + $0x1c] sm:$0xf] %vm1987, %v1942
        %1996 = vst.msk [vmem:[#allocation3 + $0x20] sm:$0xf] %vm1987, %v1944
        %1997 = vst.msk [vmem:[#allocation3 + $0x24] sm:$0xf] %vm1987, %v1946
        %1998 = vst.msk [vmem:[#allocation3 + $0x28] sm:$0xf] %vm1987, %v1948
        %1999 = vst.msk [vmem:[#allocation3 + $0x2c] sm:$0xf] %vm1987, %v1950
        %2000 = vst.msk [vmem:[#allocation3 + $0x30] sm:$0xf] %vm1987, %v1952
        %2001 = vst.msk [vmem:[#allocation3 + $0x34] sm:$0xf] %vm1987, %v1954
        %2002 = vst.msk [vmem:[#allocation3 + $0x38] sm:$0xf] %vm1987, %v1956
        %2003 = vst.msk [vmem:[#allocation3 + $0x3c] sm:$0xf] %vm1987, %v1958
        %2004 = vst.msk [vmem:[#allocation3 + $0x40] sm:$0xf] %vm1987, %v1960
        %2005 = vst.msk [vmem:[#allocation3 + $0x44] sm:$0xf] %vm1987, %v1962
        %2006 = vst.msk [vmem:[#allocation3 + $0x48] sm:$0xf] %vm1987, %v1964
        %2007 = vst.msk [vmem:[#allocation3 + $0x4c] sm:$0xf] %vm1987, %v1966
        %v2008 = vld [vmem:[%s1535] sm:$0xe]
        %v2009 = vld [vmem:[%s1535 + $0x4] sm:$0xf]
        %v2010 = vld [vmem:[%s1535 + $0x8] sm:$0x1]
        %v2011 = vld [vmem:[%s1535 + $0xc] sm:$0xe]
        %v2012 = vld [vmem:[%s1535 + $0x10] sm:$0xf]
        %v2013 = vld [vmem:[%s1535 + $0x14] sm:$0x1]
        %v2014 = vld [vmem:[%s1535 + $0x18] sm:$0xe]
        %v2015 = vld [vmem:[%s1535 + $0x1c] sm:$0xf]
        %v2016 = vld [vmem:[%s1535 + $0x20] sm:$0x1]
        %v2017 = vld [vmem:[%s1535 + $0x24] sm:$0xe]
        %v2018 = vld [vmem:[%s1535 + $0x28] sm:$0xf]
        %v2019 = vld [vmem:[%s1535 + $0x2c] sm:$0x1]
        %v2020 = vld [vmem:[%s1535 + $0x30] sm:$0xe]
        %v2021 = vld [vmem:[%s1535 + $0x34] sm:$0xf]
        %v2022 = vld [vmem:[%s1535 + $0x38] sm:$0x1]
        %v2023 = vld [vmem:[%s1535 + $0x3c] sm:$0xe]
        %v2024 = vld [vmem:[%s1535 + $0x40] sm:$0xf]
        %v2025 = vld [vmem:[%s1535 + $0x44] sm:$0x1]
        %v2026 = vld [vmem:[%s1535 + $0x48] sm:$0xe]
        %v2027 = vld [vmem:[%s1535 + $0x4c] sm:$0xf]
        %v2028 = vld [vmem:[%s1535 + $0x50] sm:$0x1]
        %v2029 = vld [vmem:[%s1535 + $0x54] sm:$0xe]
        %v2030 = vld [vmem:[%s1535 + $0x58] sm:$0xf]
        %v2031 = vld [vmem:[%s1535 + $0x5c] sm:$0x1]
        %v2032 = vld [vmem:[%s1535 + $0x60] sm:$0xe]
        %v2033 = vld [vmem:[%s1535 + $0x64] sm:$0xf]
        %v2034 = vld [vmem:[%s1535 + $0x68] sm:$0x1]
        %v2035 = vld [vmem:[%s1535 + $0x6c] sm:$0xe]
        %v2036 = vld [vmem:[%s1535 + $0x70] sm:$0xf]
        %v2037 = vld [vmem:[%s1535 + $0x74] sm:$0x1]
        %v2068 = vrot.slane %v2008, 5
        %v2069 = vrot.slane %v2068, 4
        %v2070 = vrot.slane %v2009, 5
        %v2071 = vsel %vm1380, %v2069, %v2070
        %v2072 = vrot.slane %v2070, 4
        %v2073 = vrot.slane %v2010, 5
        %v2074 = vsel %vm1380, %v2072, %v2073
        %v2075 = vrot.slane %v2011, 5
        %v2076 = vrot.slane %v2075, 4
        %v2077 = vrot.slane %v2012, 5
        %v2078 = vsel %vm1380, %v2076, %v2077
        %v2079 = vrot.slane %v2077, 4
        %v2080 = vrot.slane %v2013, 5
        %v2081 = vsel %vm1380, %v2079, %v2080
        %v2082 = vrot.slane %v2014, 5
        %v2083 = vrot.slane %v2082, 4
        %v2084 = vrot.slane %v2015, 5
        %v2085 = vsel %vm1380, %v2083, %v2084
        %v2086 = vrot.slane %v2084, 4
        %v2087 = vrot.slane %v2016, 5
        %v2088 = vsel %vm1380, %v2086, %v2087
        %v2089 = vrot.slane %v2017, 5
        %v2090 = vrot.slane %v2089, 4
        %v2091 = vrot.slane %v2018, 5
        %v2092 = vsel %vm1380, %v2090, %v2091
        %v2093 = vrot.slane %v2091, 4
        %v2094 = vrot.slane %v2019, 5
        %v2095 = vsel %vm1380, %v2093, %v2094
        %v2096 = vrot.slane %v2020, 5
        %v2097 = vrot.slane %v2096, 4
        %v2098 = vrot.slane %v2021, 5
        %v2099 = vsel %vm1380, %v2097, %v2098
        %v2100 = vrot.slane %v2098, 4
        %v2101 = vrot.slane %v2022, 5
        %v2102 = vsel %vm1380, %v2100, %v2101
        %v2103 = vrot.slane %v2023, 5
        %v2104 = vrot.slane %v2103, 4
        %v2105 = vrot.slane %v2024, 5
        %v2106 = vsel %vm1380, %v2104, %v2105
        %v2107 = vrot.slane %v2105, 4
        %v2108 = vrot.slane %v2025, 5
        %v2109 = vsel %vm1380, %v2107, %v2108
        %v2110 = vrot.slane %v2026, 5
        %v2111 = vrot.slane %v2110, 4
        %v2112 = vrot.slane %v2027, 5
        %v2113 = vsel %vm1380, %v2111, %v2112
        %v2114 = vrot.slane %v2112, 4
        %v2115 = vrot.slane %v2028, 5
        %v2116 = vsel %vm1380, %v2114, %v2115
        %v2117 = vrot.slane %v2029, 5
        %v2118 = vrot.slane %v2117, 4
        %v2119 = vrot.slane %v2030, 5
        %v2120 = vsel %vm1380, %v2118, %v2119
        %v2121 = vrot.slane %v2119, 4
        %v2122 = vrot.slane %v2031, 5
        %v2123 = vsel %vm1380, %v2121, %v2122
        %v2124 = vrot.slane %v2032, 5
        %v2125 = vrot.slane %v2124, 4
        %v2126 = vrot.slane %v2033, 5
        %v2127 = vsel %vm1380, %v2125, %v2126
        %v2128 = vrot.slane %v2126, 4
        %v2129 = vrot.slane %v2034, 5
        %v2130 = vsel %vm1380, %v2128, %v2129
        %v2131 = vrot.slane %v2035, 5
        %v2132 = vrot.slane %v2131, 4
        %v2133 = vrot.slane %v2036, 5
        %v2134 = vsel %vm1380, %v2132, %v2133
        %v2135 = vrot.slane %v2133, 4
        %v2136 = vrot.slane %v2037, 5
        %v2137 = vsel %vm1380, %v2135, %v2136
        %2138 = vrot.lane.b32.xlu0 %v2071, 20
        %v2139 = vpop.permute.xlu0 %2138
        %2140 = vrot.lane.b32.xlu0 %v2074, 20
        %v2141 = vpop.permute.xlu0 %2140
        %2142 = vrot.lane.b32.xlu0 %v2078, 20
        %v2143 = vpop.permute.xlu0 %2142
        %2144 = vrot.lane.b32.xlu0 %v2081, 20
        %v2145 = vpop.permute.xlu0 %2144
        %2146 = vrot.lane.b32.xlu0 %v2085, 20
        %v2147 = vpop.permute.xlu0 %2146
        %2148 = vrot.lane.b32.xlu0 %v2088, 20
        %v2149 = vpop.permute.xlu0 %2148
        %2150 = vrot.lane.b32.xlu0 %v2092, 20
        %v2151 = vpop.permute.xlu0 %2150
        %2152 = vrot.lane.b32.xlu0 %v2095, 20
        %v2153 = vpop.permute.xlu0 %2152
        %2154 = vrot.lane.b32.xlu0 %v2099, 20
        %v2155 = vpop.permute.xlu0 %2154
        %2156 = vrot.lane.b32.xlu0 %v2102, 20
        %v2157 = vpop.permute.xlu0 %2156
        %2158 = vrot.lane.b32.xlu0 %v2106, 20
        %v2159 = vpop.permute.xlu0 %2158
        %2160 = vrot.lane.b32.xlu0 %v2109, 20
        %v2161 = vpop.permute.xlu0 %2160
        %2162 = vrot.lane.b32.xlu0 %v2113, 20
        %v2163 = vpop.permute.xlu0 %2162
        %2164 = vrot.lane.b32.xlu0 %v2116, 20
        %v2165 = vpop.permute.xlu0 %2164
        %2166 = vrot.lane.b32.xlu0 %v2120, 20
        %v2167 = vpop.permute.xlu0 %2166
        %2168 = vrot.lane.b32.xlu0 %v2123, 20
        %v2169 = vpop.permute.xlu0 %2168
        %2170 = vrot.lane.b32.xlu0 %v2127, 20
        %v2171 = vpop.permute.xlu0 %2170
        %2172 = vrot.lane.b32.xlu0 %v2130, 20
        %v2173 = vpop.permute.xlu0 %2172
        %2174 = vrot.lane.b32.xlu0 %v2134, 20
        %v2175 = vpop.permute.xlu0 %2174
        %2176 = vrot.lane.b32.xlu0 %v2137, 20
        %v2177 = vpop.permute.xlu0 %2176
        %vm2198 = vcmask 191648
        %2199 = vst.msk [vmem:[#allocation3] sm:$0xf] %vm2198, %v2139
        %2200 = vst.msk [vmem:[#allocation3 + $0x4] sm:$0xf] %vm2198, %v2141
        %2201 = vst.msk [vmem:[#allocation3 + $0x8] sm:$0xf] %vm2198, %v2143
        %2202 = vst.msk [vmem:[#allocation3 + $0xc] sm:$0xf] %vm2198, %v2145
        %2203 = vst.msk [vmem:[#allocation3 + $0x10] sm:$0xf] %vm2198, %v2147
        %2204 = vst.msk [vmem:[#allocation3 + $0x14] sm:$0xf] %vm2198, %v2149
        %2205 = vst.msk [vmem:[#allocation3 + $0x18] sm:$0xf] %vm2198, %v2151
        %2206 = vst.msk [vmem:[#allocation3 + $0x1c] sm:$0xf] %vm2198, %v2153
        %2207 = vst.msk [vmem:[#allocation3 + $0x20] sm:$0xf] %vm2198, %v2155
        %2208 = vst.msk [vmem:[#allocation3 + $0x24] sm:$0xf] %vm2198, %v2157
        %2209 = vst.msk [vmem:[#allocation3 + $0x28] sm:$0xf] %vm2198, %v2159
        %2210 = vst.msk [vmem:[#allocation3 + $0x2c] sm:$0xf] %vm2198, %v2161
        %2211 = vst.msk [vmem:[#allocation3 + $0x30] sm:$0xf] %vm2198, %v2163
        %2212 = vst.msk [vmem:[#allocation3 + $0x34] sm:$0xf] %vm2198, %v2165
        %2213 = vst.msk [vmem:[#allocation3 + $0x38] sm:$0xf] %vm2198, %v2167
        %2214 = vst.msk [vmem:[#allocation3 + $0x3c] sm:$0xf] %vm2198, %v2169
        %2215 = vst.msk [vmem:[#allocation3 + $0x40] sm:$0xf] %vm2198, %v2171
        %2216 = vst.msk [vmem:[#allocation3 + $0x44] sm:$0xf] %vm2198, %v2173
        %2217 = vst.msk [vmem:[#allocation3 + $0x48] sm:$0xf] %vm2198, %v2175
        %2218 = vst.msk [vmem:[#allocation3 + $0x4c] sm:$0xf] %vm2198, %v2177
        %s2219 = sadd.s32 %s238, 2
        %s2220 = smul.u32 %s2219, 3
        %s2221 = smul.addr %s2220, 4
        %s2222 = scalar_lea.vmem [#allocation2], %s2221
        %v2223 = vld [vmem:[%s2222] sm:$0xf]
        %v2224 = vld [vmem:[%s2222 + $0x4] sm:$0xf]
        %v2225 = vld [vmem:[%s2222 + $0xc] sm:$0xf]
        %v2226 = vld [vmem:[%s2222 + $0x10] sm:$0xf]
        %v2227 = vld [vmem:[%s2222 + $0x18] sm:$0xf]
        %v2228 = vld [vmem:[%s2222 + $0x1c] sm:$0xf]
        %v2229 = vld [vmem:[%s2222 + $0x24] sm:$0xf]
        %v2230 = vld [vmem:[%s2222 + $0x28] sm:$0xf]
        %v2231 = vld [vmem:[%s2222 + $0x30] sm:$0xf]
        %v2232 = vld [vmem:[%s2222 + $0x34] sm:$0xf]
        %v2233 = vld [vmem:[%s2222 + $0x3c] sm:$0xf]
        %v2234 = vld [vmem:[%s2222 + $0x40] sm:$0xf]
        %v2235 = vld [vmem:[%s2222 + $0x48] sm:$0xf]
        %v2236 = vld [vmem:[%s2222 + $0x4c] sm:$0xf]
        %v2237 = vld [vmem:[%s2222 + $0x54] sm:$0xf]
        %v2238 = vld [vmem:[%s2222 + $0x58] sm:$0xf]
        %v2239 = vld [vmem:[%s2222 + $0x60] sm:$0xf]
        %v2240 = vld [vmem:[%s2222 + $0x64] sm:$0xf]
        %v2241 = vld [vmem:[%s2222 + $0x6c] sm:$0xf]
        %v2242 = vld [vmem:[%s2222 + $0x70] sm:$0xf]
        %2263 = vrot.lane.b32.xlu0 %v2223, 24
        %v2264 = vpop.permute.xlu0 %2263
        %2265 = vrot.lane.b32.xlu0 %v2224, 24
        %v2266 = vpop.permute.xlu0 %2265
        %2267 = vrot.lane.b32.xlu0 %v2225, 24
        %v2268 = vpop.permute.xlu0 %2267
        %2269 = vrot.lane.b32.xlu0 %v2226, 24
        %v2270 = vpop.permute.xlu0 %2269
        %2271 = vrot.lane.b32.xlu0 %v2227, 24
        %v2272 = vpop.permute.xlu0 %2271
        %2273 = vrot.lane.b32.xlu0 %v2228, 24
        %v2274 = vpop.permute.xlu0 %2273
        %2275 = vrot.lane.b32.xlu0 %v2229, 24
        %v2276 = vpop.permute.xlu0 %2275
        %2277 = vrot.lane.b32.xlu0 %v2230, 24
        %v2278 = vpop.permute.xlu0 %2277
        %2279 = vrot.lane.b32.xlu0 %v2231, 24
        %v2280 = vpop.permute.xlu0 %2279
        %2281 = vrot.lane.b32.xlu0 %v2232, 24
        %v2282 = vpop.permute.xlu0 %2281
        %2283 = vrot.lane.b32.xlu0 %v2233, 24
        %v2284 = vpop.permute.xlu0 %2283
        %2285 = vrot.lane.b32.xlu0 %v2234, 24
        %v2286 = vpop.permute.xlu0 %2285
        %2287 = vrot.lane.b32.xlu0 %v2235, 24
        %v2288 = vpop.permute.xlu0 %2287
        %2289 = vrot.lane.b32.xlu0 %v2236, 24
        %v2290 = vpop.permute.xlu0 %2289
        %2291 = vrot.lane.b32.xlu0 %v2237, 24
        %v2292 = vpop.permute.xlu0 %2291
        %2293 = vrot.lane.b32.xlu0 %v2238, 24
        %v2294 = vpop.permute.xlu0 %2293
        %2295 = vrot.lane.b32.xlu0 %v2239, 24
        %v2296 = vpop.permute.xlu0 %2295
        %2297 = vrot.lane.b32.xlu0 %v2240, 24
        %v2298 = vpop.permute.xlu0 %2297
        %2299 = vrot.lane.b32.xlu0 %v2241, 24
        %v2300 = vpop.permute.xlu0 %2299
        %2301 = vrot.lane.b32.xlu0 %v2242, 24
        %v2302 = vpop.permute.xlu0 %2301
        %vm2323 = vcmask 224448
        %2324 = vst.msk [vmem:[#allocation3] sm:$0xf] %vm2323, %v2264
        %2325 = vst.msk [vmem:[#allocation3 + $0x4] sm:$0xf] %vm2323, %v2266
        %2326 = vst.msk [vmem:[#allocation3 + $0x8] sm:$0xf] %vm2323, %v2268
        %2327 = vst.msk [vmem:[#allocation3 + $0xc] sm:$0xf] %vm2323, %v2270
        %2328 = vst.msk [vmem:[#allocation3 + $0x10] sm:$0xf] %vm2323, %v2272
        %2329 = vst.msk [vmem:[#allocation3 + $0x14] sm:$0xf] %vm2323, %v2274
        %2330 = vst.msk [vmem:[#allocation3 + $0x18] sm:$0xf] %vm2323, %v2276
        %2331 = vst.msk [vmem:[#allocation3 + $0x1c] sm:$0xf] %vm2323, %v2278
        %2332 = vst.msk [vmem:[#allocation3 + $0x20] sm:$0xf] %vm2323, %v2280
        %2333 = vst.msk [vmem:[#allocation3 + $0x24] sm:$0xf] %vm2323, %v2282
        %2334 = vst.msk [vmem:[#allocation3 + $0x28] sm:$0xf] %vm2323, %v2284
        %2335 = vst.msk [vmem:[#allocation3 + $0x2c] sm:$0xf] %vm2323, %v2286
        %2336 = vst.msk [vmem:[#allocation3 + $0x30] sm:$0xf] %vm2323, %v2288
        %2337 = vst.msk [vmem:[#allocation3 + $0x34] sm:$0xf] %vm2323, %v2290
        %2338 = vst.msk [vmem:[#allocation3 + $0x38] sm:$0xf] %vm2323, %v2292
        %2339 = vst.msk [vmem:[#allocation3 + $0x3c] sm:$0xf] %vm2323, %v2294
        %2340 = vst.msk [vmem:[#allocation3 + $0x40] sm:$0xf] %vm2323, %v2296
        %2341 = vst.msk [vmem:[#allocation3 + $0x44] sm:$0xf] %vm2323, %v2298
        %2342 = vst.msk [vmem:[#allocation3 + $0x48] sm:$0xf] %vm2323, %v2300
        %2343 = vst.msk [vmem:[#allocation3 + $0x4c] sm:$0xf] %vm2323, %v2302
        %v2344 = vld [vmem:[%s2222] sm:$0xf]
        %v2345 = vld [vmem:[%s2222 + $0x4] sm:$0xf]
        %v2346 = vld [vmem:[%s2222 + $0x8] sm:$0x1]
        %v2347 = vld [vmem:[%s2222 + $0xc] sm:$0xf]
        %v2348 = vld [vmem:[%s2222 + $0x10] sm:$0xf]
        %v2349 = vld [vmem:[%s2222 + $0x14] sm:$0x1]
        %v2350 = vld [vmem:[%s2222 + $0x18] sm:$0xf]
        %v2351 = vld [vmem:[%s2222 + $0x1c] sm:$0xf]
        %v2352 = vld [vmem:[%s2222 + $0x20] sm:$0x1]
        %v2353 = vld [vmem:[%s2222 + $0x24] sm:$0xf]
        %v2354 = vld [vmem:[%s2222 + $0x28] sm:$0xf]
        %v2355 = vld [vmem:[%s2222 + $0x2c] sm:$0x1]
        %v2356 = vld [vmem:[%s2222 + $0x30] sm:$0xf]
        %v2357 = vld [vmem:[%s2222 + $0x34] sm:$0xf]
        %v2358 = vld [vmem:[%s2222 + $0x38] sm:$0x1]
        %v2359 = vld [vmem:[%s2222 + $0x3c] sm:$0xf]
        %v2360 = vld [vmem:[%s2222 + $0x40] sm:$0xf]
        %v2361 = vld [vmem:[%s2222 + $0x44] sm:$0x1]
        %v2362 = vld [vmem:[%s2222 + $0x48] sm:$0xf]
        %v2363 = vld [vmem:[%s2222 + $0x4c] sm:$0xf]
        %v2364 = vld [vmem:[%s2222 + $0x50] sm:$0x1]
        %v2365 = vld [vmem:[%s2222 + $0x54] sm:$0xf]
        %v2366 = vld [vmem:[%s2222 + $0x58] sm:$0xf]
        %v2367 = vld [vmem:[%s2222 + $0x5c] sm:$0x1]
        %v2368 = vld [vmem:[%s2222 + $0x60] sm:$0xf]
        %v2369 = vld [vmem:[%s2222 + $0x64] sm:$0xf]
        %v2370 = vld [vmem:[%s2222 + $0x68] sm:$0x1]
        %v2371 = vld [vmem:[%s2222 + $0x6c] sm:$0xf]
        %v2372 = vld [vmem:[%s2222 + $0x70] sm:$0xf]
        %v2373 = vld [vmem:[%s2222 + $0x74] sm:$0x1]
        %v2375 = vshrl.u32 %v2344, 16
        %v2377 = vrot.slane %v2375, 4
        %v2378 = vshll.u32 %v2344, 16
        %v2380 = vrot.slane %v2378, 5
        %v2381 = vor.u32 %v2377, %v2380
        %v2382 = vrot.slane %v2381, 4
        %v2384 = vshll.u32 %v2345, 16
        %v2386 = vrot.slane %v2384, 5
        %v2387 = vsel %vm996, %v2382, %v2386
        %v2388 = vshrl.u32 %v2345, 16
        %v2390 = vrot.slane %v2388, 4
        %v2391 = vor.u32 %v2390, %v2386
        %v2392 = vrot.slane %v2391, 4
        %v2394 = vshll.u32 %v2346, 16
        %v2396 = vrot.slane %v2394, 5
        %v2397 = vsel %vm996, %v2392, %v2396
        %v2399 = vshrl.u32 %v2347, 16
        %v2401 = vrot.slane %v2399, 4
        %v2402 = vshll.u32 %v2347, 16
        %v2404 = vrot.slane %v2402, 5
        %v2405 = vor.u32 %v2401, %v2404
        %v2406 = vrot.slane %v2405, 4
        %v2408 = vshll.u32 %v2348, 16
        %v2410 = vrot.slane %v2408, 5
        %v2411 = vsel %vm996, %v2406, %v2410
        %v2412 = vshrl.u32 %v2348, 16
        %v2414 = vrot.slane %v2412, 4
        %v2415 = vor.u32 %v2414, %v2410
        %v2416 = vrot.slane %v2415, 4
        %v2418 = vshll.u32 %v2349, 16
        %v2420 = vrot.slane %v2418, 5
        %v2421 = vsel %vm996, %v2416, %v2420
        %v2423 = vshrl.u32 %v2350, 16
        %v2425 = vrot.slane %v2423, 4
        %v2426 = vshll.u32 %v2350, 16
        %v2428 = vrot.slane %v2426, 5
        %v2429 = vor.u32 %v2425, %v2428
        %v2430 = vrot.slane %v2429, 4
        %v2432 = vshll.u32 %v2351, 16
        %v2434 = vrot.slane %v2432, 5
        %v2435 = vsel %vm996, %v2430, %v2434
        %v2436 = vshrl.u32 %v2351, 16
        %v2438 = vrot.slane %v2436, 4
        %v2439 = vor.u32 %v2438, %v2434
        %v2440 = vrot.slane %v2439, 4
        %v2442 = vshll.u32 %v2352, 16
        %v2444 = vrot.slane %v2442, 5
        %v2445 = vsel %vm996, %v2440, %v2444
        %v2447 = vshrl.u32 %v2353, 16
        %v2449 = vrot.slane %v2447, 4
        %v2450 = vshll.u32 %v2353, 16
        %v2452 = vrot.slane %v2450, 5
        %v2453 = vor.u32 %v2449, %v2452
        %v2454 = vrot.slane %v2453, 4
        %v2456 = vshll.u32 %v2354, 16
        %v2458 = vrot.slane %v2456, 5
        %v2459 = vsel %vm996, %v2454, %v2458
        %v2460 = vshrl.u32 %v2354, 16
        %v2462 = vrot.slane %v2460, 4
        %v2463 = vor.u32 %v2462, %v2458
        %v2464 = vrot.slane %v2463, 4
        %v2466 = vshll.u32 %v2355, 16
        %v2468 = vrot.slane %v2466, 5
        %v2469 = vsel %vm996, %v2464, %v2468
        %v2471 = vshrl.u32 %v2356, 16
        %v2473 = vrot.slane %v2471, 4
        %v2474 = vshll.u32 %v2356, 16
        %v2476 = vrot.slane %v2474, 5
        %v2477 = vor.u32 %v2473, %v2476
        %v2478 = vrot.slane %v2477, 4
        %v2480 = vshll.u32 %v2357, 16
        %v2482 = vrot.slane %v2480, 5
        %v2483 = vsel %vm996, %v2478, %v2482
        %v2484 = vshrl.u32 %v2357, 16
        %v2486 = vrot.slane %v2484, 4
        %v2487 = vor.u32 %v2486, %v2482
        %v2488 = vrot.slane %v2487, 4
        %v2490 = vshll.u32 %v2358, 16
        %v2492 = vrot.slane %v2490, 5
        %v2493 = vsel %vm996, %v2488, %v2492
        %v2495 = vshrl.u32 %v2359, 16
        %v2497 = vrot.slane %v2495, 4
        %v2498 = vshll.u32 %v2359, 16
        %v2500 = vrot.slane %v2498, 5
        %v2501 = vor.u32 %v2497, %v2500
        %v2502 = vrot.slane %v2501, 4
        %v2504 = vshll.u32 %v2360, 16
        %v2506 = vrot.slane %v2504, 5
        %v2507 = vsel %vm996, %v2502, %v2506
        %v2508 = vshrl.u32 %v2360, 16
        %v2510 = vrot.slane %v2508, 4
        %v2511 = vor.u32 %v2510, %v2506
        %v2512 = vrot.slane %v2511, 4
        %v2514 = vshll.u32 %v2361, 16
        %v2516 = vrot.slane %v2514, 5
        %v2517 = vsel %vm996, %v2512, %v2516
        %v2519 = vshrl.u32 %v2362, 16
        %v2521 = vrot.slane %v2519, 4
        %v2522 = vshll.u32 %v2362, 16
        %v2524 = vrot.slane %v2522, 5
        %v2525 = vor.u32 %v2521, %v2524
        %v2526 = vrot.slane %v2525, 4
        %v2528 = vshll.u32 %v2363, 16
        %v2530 = vrot.slane %v2528, 5
        %v2531 = vsel %vm996, %v2526, %v2530
        %v2532 = vshrl.u32 %v2363, 16
        %v2534 = vrot.slane %v2532, 4
        %v2535 = vor.u32 %v2534, %v2530
        %v2536 = vrot.slane %v2535, 4
        %v2538 = vshll.u32 %v2364, 16
        %v2540 = vrot.slane %v2538, 5
        %v2541 = vsel %vm996, %v2536, %v2540
        %v2543 = vshrl.u32 %v2365, 16
        %v2545 = vrot.slane %v2543, 4
        %v2546 = vshll.u32 %v2365, 16
        %v2548 = vrot.slane %v2546, 5
        %v2549 = vor.u32 %v2545, %v2548
        %v2550 = vrot.slane %v2549, 4
        %v2552 = vshll.u32 %v2366, 16
        %v2554 = vrot.slane %v2552, 5
        %v2555 = vsel %vm996, %v2550, %v2554
        %v2556 = vshrl.u32 %v2366, 16
        %v2558 = vrot.slane %v2556, 4
        %v2559 = vor.u32 %v2558, %v2554
        %v2560 = vrot.slane %v2559, 4
        %v2562 = vshll.u32 %v2367, 16
        %v2564 = vrot.slane %v2562, 5
        %v2565 = vsel %vm996, %v2560, %v2564
        %v2567 = vshrl.u32 %v2368, 16
        %v2569 = vrot.slane %v2567, 4
        %v2570 = vshll.u32 %v2368, 16
        %v2572 = vrot.slane %v2570, 5
        %v2573 = vor.u32 %v2569, %v2572
        %v2574 = vrot.slane %v2573, 4
        %v2576 = vshll.u32 %v2369, 16
        %v2578 = vrot.slane %v2576, 5
        %v2579 = vsel %vm996, %v2574, %v2578
        %v2580 = vshrl.u32 %v2369, 16
        %v2582 = vrot.slane %v2580, 4
        %v2583 = vor.u32 %v2582, %v2578
        %v2584 = vrot.slane %v2583, 4
        %v2586 = vshll.u32 %v2370, 16
        %v2588 = vrot.slane %v2586, 5
        %v2589 = vsel %vm996, %v2584, %v2588
        %v2591 = vshrl.u32 %v2371, 16
        %v2593 = vrot.slane %v2591, 4
        %v2594 = vshll.u32 %v2371, 16
        %v2596 = vrot.slane %v2594, 5
        %v2597 = vor.u32 %v2593, %v2596
        %v2598 = vrot.slane %v2597, 4
        %v2600 = vshll.u32 %v2372, 16
        %v2602 = vrot.slane %v2600, 5
        %v2603 = vsel %vm996, %v2598, %v2602
        %v2604 = vshrl.u32 %v2372, 16
        %v2606 = vrot.slane %v2604, 4
        %v2607 = vor.u32 %v2606, %v2602
        %v2608 = vrot.slane %v2607, 4
        %v2610 = vshll.u32 %v2373, 16
        %v2612 = vrot.slane %v2610, 5
        %v2613 = vsel %vm996, %v2608, %v2612
        %2614 = vrot.lane.b32.xlu0 %v2387, 28
        %v2615 = vpop.permute.xlu0 %2614
        %2616 = vrot.lane.b32.xlu0 %v2397, 28
        %v2617 = vpop.permute.xlu0 %2616
        %2618 = vrot.lane.b32.xlu0 %v2411, 28
        %v2619 = vpop.permute.xlu0 %2618
        %2620 = vrot.lane.b32.xlu0 %v2421, 28
        %v2621 = vpop.permute.xlu0 %2620
        %2622 = vrot.lane.b32.xlu0 %v2435, 28
        %v2623 = vpop.permute.xlu0 %2622
        %2624 = vrot.lane.b32.xlu0 %v2445, 28
        %v2625 = vpop.permute.xlu0 %2624
        %2626 = vrot.lane.b32.xlu0 %v2459, 28
        %v2627 = vpop.permute.xlu0 %2626
        %2628 = vrot.lane.b32.xlu0 %v2469, 28
        %v2629 = vpop.permute.xlu0 %2628
        %2630 = vrot.lane.b32.xlu0 %v2483, 28
        %v2631 = vpop.permute.xlu0 %2630
        %2632 = vrot.lane.b32.xlu0 %v2493, 28
        %v2633 = vpop.permute.xlu0 %2632
        %2634 = vrot.lane.b32.xlu0 %v2507, 28
        %v2635 = vpop.permute.xlu0 %2634
        %2636 = vrot.lane.b32.xlu0 %v2517, 28
        %v2637 = vpop.permute.xlu0 %2636
        %2638 = vrot.lane.b32.xlu0 %v2531, 28
        %v2639 = vpop.permute.xlu0 %2638
        %2640 = vrot.lane.b32.xlu0 %v2541, 28
        %v2641 = vpop.permute.xlu0 %2640
        %2642 = vrot.lane.b32.xlu0 %v2555, 28
        %v2643 = vpop.permute.xlu0 %2642
        %2644 = vrot.lane.b32.xlu0 %v2565, 28
        %v2645 = vpop.permute.xlu0 %2644
        %2646 = vrot.lane.b32.xlu0 %v2579, 28
        %v2647 = vpop.permute.xlu0 %2646
        %2648 = vrot.lane.b32.xlu0 %v2589, 28
        %v2649 = vpop.permute.xlu0 %2648
        %2650 = vrot.lane.b32.xlu0 %v2603, 28
        %v2651 = vpop.permute.xlu0 %2650
        %2652 = vrot.lane.b32.xlu0 %v2613, 28
        %v2653 = vpop.permute.xlu0 %2652
        %vm2674 = vcmask 257248
        %2675 = vst.msk [vmem:[#allocation3] sm:$0xf] %vm2674, %v2615
        %2676 = vst.msk [vmem:[#allocation3 + $0x4] sm:$0xf] %vm2674, %v2617
        %2677 = vst.msk [vmem:[#allocation3 + $0x8] sm:$0xf] %vm2674, %v2619
        %2678 = vst.msk [vmem:[#allocation3 + $0xc] sm:$0xf] %vm2674, %v2621
        %2679 = vst.msk [vmem:[#allocation3 + $0x10] sm:$0xf] %vm2674, %v2623
        %2680 = vst.msk [vmem:[#allocation3 + $0x14] sm:$0xf] %vm2674, %v2625
        %2681 = vst.msk [vmem:[#allocation3 + $0x18] sm:$0xf] %vm2674, %v2627
        %2682 = vst.msk [vmem:[#allocation3 + $0x1c] sm:$0xf] %vm2674, %v2629
        %2683 = vst.msk [vmem:[#allocation3 + $0x20] sm:$0xf] %vm2674, %v2631
        %2684 = vst.msk [vmem:[#allocation3 + $0x24] sm:$0xf] %vm2674, %v2633
        %2685 = vst.msk [vmem:[#allocation3 + $0x28] sm:$0xf] %vm2674, %v2635
        %2686 = vst.msk [vmem:[#allocation3 + $0x2c] sm:$0xf] %vm2674, %v2637
        %2687 = vst.msk [vmem:[#allocation3 + $0x30] sm:$0xf] %vm2674, %v2639
        %2688 = vst.msk [vmem:[#allocation3 + $0x34] sm:$0xf] %vm2674, %v2641
        %2689 = vst.msk [vmem:[#allocation3 + $0x38] sm:$0xf] %vm2674, %v2643
        %2690 = vst.msk [vmem:[#allocation3 + $0x3c] sm:$0xf] %vm2674, %v2645
        %2691 = vst.msk [vmem:[#allocation3 + $0x40] sm:$0xf] %vm2674, %v2647
        %2692 = vst.msk [vmem:[#allocation3 + $0x44] sm:$0xf] %vm2674, %v2649
        %2693 = vst.msk [vmem:[#allocation3 + $0x48] sm:$0xf] %vm2674, %v2651
        %2694 = vst.msk [vmem:[#allocation3 + $0x4c] sm:$0xf] %vm2674, %v2653
        %v2695 = vld [vmem:[%s2222] sm:$0xe]
        %v2696 = vld [vmem:[%s2222 + $0x4] sm:$0xf]
        %v2697 = vld [vmem:[%s2222 + $0x8] sm:$0x1]
        %v2698 = vld [vmem:[%s2222 + $0xc] sm:$0xe]
        %v2699 = vld [vmem:[%s2222 + $0x10] sm:$0xf]
        %v2700 = vld [vmem:[%s2222 + $0x14] sm:$0x1]
        %v2701 = vld [vmem:[%s2222 + $0x18] sm:$0xe]
        %v2702 = vld [vmem:[%s2222 + $0x1c] sm:$0xf]
        %v2703 = vld [vmem:[%s2222 + $0x20] sm:$0x1]
        %v2704 = vld [vmem:[%s2222 + $0x24] sm:$0xe]
        %v2705 = vld [vmem:[%s2222 + $0x28] sm:$0xf]
        %v2706 = vld [vmem:[%s2222 + $0x2c] sm:$0x1]
        %v2707 = vld [vmem:[%s2222 + $0x30] sm:$0xe]
        %v2708 = vld [vmem:[%s2222 + $0x34] sm:$0xf]
        %v2709 = vld [vmem:[%s2222 + $0x38] sm:$0x1]
        %v2710 = vld [vmem:[%s2222 + $0x3c] sm:$0xe]
        %v2711 = vld [vmem:[%s2222 + $0x40] sm:$0xf]
        %v2712 = vld [vmem:[%s2222 + $0x44] sm:$0x1]
        %v2713 = vld [vmem:[%s2222 + $0x48] sm:$0xe]
        %v2714 = vld [vmem:[%s2222 + $0x4c] sm:$0xf]
        %v2715 = vld [vmem:[%s2222 + $0x50] sm:$0x1]
        %v2716 = vld [vmem:[%s2222 + $0x54] sm:$0xe]
        %v2717 = vld [vmem:[%s2222 + $0x58] sm:$0xf]
        %v2718 = vld [vmem:[%s2222 + $0x5c] sm:$0x1]
        %v2719 = vld [vmem:[%s2222 + $0x60] sm:$0xe]
        %v2720 = vld [vmem:[%s2222 + $0x64] sm:$0xf]
        %v2721 = vld [vmem:[%s2222 + $0x68] sm:$0x1]
        %v2722 = vld [vmem:[%s2222 + $0x6c] sm:$0xe]
        %v2723 = vld [vmem:[%s2222 + $0x70] sm:$0xf]
        %v2724 = vld [vmem:[%s2222 + $0x74] sm:$0x1]
        %v2755 = vrot.slane %v2695, 5
        %v2756 = vrot.slane %v2755, 4
        %v2757 = vrot.slane %v2696, 5
        %v2758 = vsel %vm1380, %v2756, %v2757
        %v2759 = vrot.slane %v2757, 4
        %v2760 = vrot.slane %v2697, 5
        %v2761 = vsel %vm1380, %v2759, %v2760
        %v2762 = vrot.slane %v2698, 5
        %v2763 = vrot.slane %v2762, 4
        %v2764 = vrot.slane %v2699, 5
        %v2765 = vsel %vm1380, %v2763, %v2764
        %v2766 = vrot.slane %v2764, 4
        %v2767 = vrot.slane %v2700, 5
        %v2768 = vsel %vm1380, %v2766, %v2767
        %v2769 = vrot.slane %v2701, 5
        %v2770 = vrot.slane %v2769, 4
        %v2771 = vrot.slane %v2702, 5
        %v2772 = vsel %vm1380, %v2770, %v2771
        %v2773 = vrot.slane %v2771, 4
        %v2774 = vrot.slane %v2703, 5
        %v2775 = vsel %vm1380, %v2773, %v2774
        %v2776 = vrot.slane %v2704, 5
        %v2777 = vrot.slane %v2776, 4
        %v2778 = vrot.slane %v2705, 5
        %v2779 = vsel %vm1380, %v2777, %v2778
        %v2780 = vrot.slane %v2778, 4
        %v2781 = vrot.slane %v2706, 5
        %v2782 = vsel %vm1380, %v2780, %v2781
        %v2783 = vrot.slane %v2707, 5
        %v2784 = vrot.slane %v2783, 4
        %v2785 = vrot.slane %v2708, 5
        %v2786 = vsel %vm1380, %v2784, %v2785
        %v2787 = vrot.slane %v2785, 4
        %v2788 = vrot.slane %v2709, 5
        %v2789 = vsel %vm1380, %v2787, %v2788
        %v2790 = vrot.slane %v2710, 5
        %v2791 = vrot.slane %v2790, 4
        %v2792 = vrot.slane %v2711, 5
        %v2793 = vsel %vm1380, %v2791, %v2792
        %v2794 = vrot.slane %v2792, 4
        %v2795 = vrot.slane %v2712, 5
        %v2796 = vsel %vm1380, %v2794, %v2795
        %v2797 = vrot.slane %v2713, 5
        %v2798 = vrot.slane %v2797, 4
        %v2799 = vrot.slane %v2714, 5
        %v2800 = vsel %vm1380, %v2798, %v2799
        %v2801 = vrot.slane %v2799, 4
        %v2802 = vrot.slane %v2715, 5
        %v2803 = vsel %vm1380, %v2801, %v2802
        %v2804 = vrot.slane %v2716, 5
        %v2805 = vrot.slane %v2804, 4
        %v2806 = vrot.slane %v2717, 5
        %v2807 = vsel %vm1380, %v2805, %v2806
        %v2808 = vrot.slane %v2806, 4
        %v2809 = vrot.slane %v2718, 5
        %v2810 = vsel %vm1380, %v2808, %v2809
        %v2811 = vrot.slane %v2719, 5
        %v2812 = vrot.slane %v2811, 4
        %v2813 = vrot.slane %v2720, 5
        %v2814 = vsel %vm1380, %v2812, %v2813
        %v2815 = vrot.slane %v2813, 4
        %v2816 = vrot.slane %v2721, 5
        %v2817 = vsel %vm1380, %v2815, %v2816
        %v2818 = vrot.slane %v2722, 5
        %v2819 = vrot.slane %v2818, 4
        %v2820 = vrot.slane %v2723, 5
        %v2821 = vsel %vm1380, %v2819, %v2820
        %v2822 = vrot.slane %v2820, 4
        %v2823 = vrot.slane %v2724, 5
        %v2824 = vsel %vm1380, %v2822, %v2823
        %2825 = vrot.lane.b32.xlu0 %v2758, 32
        %v2826 = vpop.permute.xlu0 %2825
        %2827 = vrot.lane.b32.xlu0 %v2761, 32
        %v2828 = vpop.permute.xlu0 %2827
        %2829 = vrot.lane.b32.xlu0 %v2765, 32
        %v2830 = vpop.permute.xlu0 %2829
        %2831 = vrot.lane.b32.xlu0 %v2768, 32
        %v2832 = vpop.permute.xlu0 %2831
        %2833 = vrot.lane.b32.xlu0 %v2772, 32
        %v2834 = vpop.permute.xlu0 %2833
        %2835 = vrot.lane.b32.xlu0 %v2775, 32
        %v2836 = vpop.permute.xlu0 %2835
        %2837 = vrot.lane.b32.xlu0 %v2779, 32
        %v2838 = vpop.permute.xlu0 %2837
        %2839 = vrot.lane.b32.xlu0 %v2782, 32
        %v2840 = vpop.permute.xlu0 %2839
        %2841 = vrot.lane.b32.xlu0 %v2786, 32
        %v2842 = vpop.permute.xlu0 %2841
        %2843 = vrot.lane.b32.xlu0 %v2789, 32
        %v2844 = vpop.permute.xlu0 %2843
        %2845 = vrot.lane.b32.xlu0 %v2793, 32
        %v2846 = vpop.permute.xlu0 %2845
        %2847 = vrot.lane.b32.xlu0 %v2796, 32
        %v2848 = vpop.permute.xlu0 %2847
        %2849 = vrot.lane.b32.xlu0 %v2800, 32
        %v2850 = vpop.permute.xlu0 %2849
        %2851 = vrot.lane.b32.xlu0 %v2803, 32
        %v2852 = vpop.permute.xlu0 %2851
        %2853 = vrot.lane.b32.xlu0 %v2807, 32
        %v2854 = vpop.permute.xlu0 %2853
        %2855 = vrot.lane.b32.xlu0 %v2810, 32
        %v2856 = vpop.permute.xlu0 %2855
        %2857 = vrot.lane.b32.xlu0 %v2814, 32
        %v2858 = vpop.permute.xlu0 %2857
        %2859 = vrot.lane.b32.xlu0 %v2817, 32
        %v2860 = vpop.permute.xlu0 %2859
        %2861 = vrot.lane.b32.xlu0 %v2821, 32
        %v2862 = vpop.permute.xlu0 %2861
        %2863 = vrot.lane.b32.xlu0 %v2824, 32
        %v2864 = vpop.permute.xlu0 %2863
        %vm2885 = vcmask 290048
        %2886 = vst.msk [vmem:[#allocation3] sm:$0xf] %vm2885, %v2826
        %2887 = vst.msk [vmem:[#allocation3 + $0x4] sm:$0xf] %vm2885, %v2828
        %2888 = vst.msk [vmem:[#allocation3 + $0x8] sm:$0xf] %vm2885, %v2830
        %2889 = vst.msk [vmem:[#allocation3 + $0xc] sm:$0xf] %vm2885, %v2832
        %2890 = vst.msk [vmem:[#allocation3 + $0x10] sm:$0xf] %vm2885, %v2834
        %2891 = vst.msk [vmem:[#allocation3 + $0x14] sm:$0xf] %vm2885, %v2836
        %2892 = vst.msk [vmem:[#allocation3 + $0x18] sm:$0xf] %vm2885, %v2838
        %2893 = vst.msk [vmem:[#allocation3 + $0x1c] sm:$0xf] %vm2885, %v2840
        %2894 = vst.msk [vmem:[#allocation3 + $0x20] sm:$0xf] %vm2885, %v2842
        %2895 = vst.msk [vmem:[#allocation3 + $0x24] sm:$0xf] %vm2885, %v2844
        %2896 = vst.msk [vmem:[#allocation3 + $0x28] sm:$0xf] %vm2885, %v2846
        %2897 = vst.msk [vmem:[#allocation3 + $0x2c] sm:$0xf] %vm2885, %v2848
        %2898 = vst.msk [vmem:[#allocation3 + $0x30] sm:$0xf] %vm2885, %v2850
        %2899 = vst.msk [vmem:[#allocation3 + $0x34] sm:$0xf] %vm2885, %v2852
        %2900 = vst.msk [vmem:[#allocation3 + $0x38] sm:$0xf] %vm2885, %v2854
        %2901 = vst.msk [vmem:[#allocation3 + $0x3c] sm:$0xf] %vm2885, %v2856
        %2902 = vst.msk [vmem:[#allocation3 + $0x40] sm:$0xf] %vm2885, %v2858
        %2903 = vst.msk [vmem:[#allocation3 + $0x44] sm:$0xf] %vm2885, %v2860
        %2904 = vst.msk [vmem:[#allocation3 + $0x48] sm:$0xf] %vm2885, %v2862
        %2905 = vst.msk [vmem:[#allocation3 + $0x4c] sm:$0xf] %vm2885, %v2864
        %v2906 = vld [vmem:[#allocation3] sm:$0xf]
        %v2907 = vld [vmem:[#allocation3 + $0x4] sm:$0xf]
        %v2908 = vld [vmem:[#allocation3 + $0x8] sm:$0xf]
        %v2909 = vld [vmem:[#allocation3 + $0xc] sm:$0xf]
        %v2910 = vld [vmem:[#allocation3 + $0x10] sm:$0xf]
        %v2911 = vld [vmem:[#allocation3 + $0x14] sm:$0xf]
        %v2912 = vld [vmem:[#allocation3 + $0x18] sm:$0xf]
        %v2913 = vld [vmem:[#allocation3 + $0x1c] sm:$0xf]
        %v2914 = vld [vmem:[#allocation3 + $0x20] sm:$0xf]
        %v2915 = vld [vmem:[#allocation3 + $0x24] sm:$0xf]
        %v2916 = vld [vmem:[#allocation3 + $0x28] sm:$0xf]
        %v2917 = vld [vmem:[#allocation3 + $0x2c] sm:$0xf]
        %v2918 = vld [vmem:[#allocation3 + $0x30] sm:$0xf]
        %v2919 = vld [vmem:[#allocation3 + $0x34] sm:$0xf]
        %v2920 = vld [vmem:[#allocation3 + $0x38] sm:$0xf]
        %v2921 = vld [vmem:[#allocation3 + $0x3c] sm:$0xf]
        %v2922 = vld [vmem:[#allocation3 + $0x40] sm:$0xf]
        %v2923 = vld [vmem:[#allocation3 + $0x44] sm:$0xf]
        %v2924 = vld [vmem:[#allocation3 + $0x48] sm:$0xf]
        %v2925 = vld [vmem:[#allocation3 + $0x4c] sm:$0xf]
        %v2926 = vld [vmem:[%s1] sm:$0xf]
        %v2927 = vld [vmem:[%s1 + $0x4] sm:$0xf]
        %v2928 = vld [vmem:[%s1 + $0x8] sm:$0xf]
        %v2929 = vld [vmem:[%s1 + $0xc] sm:$0xf]
        %v2930 = vld [vmem:[%s1 + $0x10] sm:$0x3]
        %v2931 = vld [vmem:[%s2] sm:$0x1]
        %v2933 = vperm.slane %v2931, 0
        %v2955 = vunpack.c.l.b16 %v2906
        %v2956 = vunpack.c.l.b16 %v2907
        %v2957 = vunpack.c.l.b16 %v2908
        %v2958 = vunpack.c.l.b16 %v2909
        %v2959 = vunpack.c.l.b16 %v2910
        %v2960 = vunpack.c.l.b16 %v2911
        %v2961 = vunpack.c.l.b16 %v2912
        %v2962 = vunpack.c.l.b16 %v2913
        %v2963 = vunpack.c.l.b16 %v2914
        %v2964 = vunpack.c.l.b16 %v2915
        %v2965 = vunpack.c.l.b16 %v2916
        %v2966 = vunpack.c.l.b16 %v2917
        %v2967 = vunpack.c.l.b16 %v2918
        %v2968 = vunpack.c.l.b16 %v2919
        %v2969 = vunpack.c.l.b16 %v2920
        %v2970 = vunpack.c.l.b16 %v2921
        %v2971 = vunpack.c.l.b16 %v2922
        %v2972 = vunpack.c.l.b16 %v2923
        %v2973 = vunpack.c.l.b16 %v2924
        %v2974 = vunpack.c.l.b16 %v2925
        %v2975 = vpack.c.b16 %v2956, %v2955
        %v2976 = vpack.c.b16 %v2958, %v2957
        %v2977 = vpack.c.b16 %v2960, %v2959
        %v2978 = vpack.c.b16 %v2962, %v2961
        %v2979 = vpack.c.b16 %v2964, %v2963
        %v2980 = vpack.c.b16 %v2966, %v2965
        %v2981 = vpack.c.b16 %v2968, %v2967
        %v2982 = vpack.c.b16 %v2970, %v2969
        %v2983 = vpack.c.b16 %v2972, %v2971
        %v2984 = vpack.c.b16 %v2974, %v2973
        %v2990 = vunpack.c.l.b16 %v2926
        %v2991 = vunpack.c.l.b16 %v2927
        %v2992 = vunpack.c.l.b16 %v2928
        %v2993 = vunpack.c.l.b16 %v2929
        %v2994 = vunpack.c.l.b16 %v2930
        %v2995 = vpack.c.b16 %v2991, %v2990
        %v2996 = vpack.c.b16 %v2993, %v2992
        %v2997 = vpack.c.b16 %v2994, %v2994
        %vm3000 = vcmask 293888
        %v3002 = vsel %vm3000, %v2975, 0
        %v3005 = vsel %vm3000, %v2976, 0
        %v3008 = vsel %vm3000, %v2977, 0
        %v3011 = vsel %vm3000, %v2978, 0
        %v3014 = vsel %vm3000, %v2979, 0
        %v3017 = vsel %vm3000, %v2980, 0
        %v3020 = vsel %vm3000, %v2981, 0
        %v3023 = vsel %vm3000, %v2982, 0
        %v3026 = vsel %vm3000, %v2983, 0
        %v3029 = vsel %vm3000, %v2984, 0
        %vm3031 = vcmask 1041408
        %v3033 = vsel %vm3031, %v2997, 0
        %3035 = vmatpush.bf16.msra.mxu0 0
        %3036 = vmatpush.bf16.msra.mxu0 0
        %3037 = vmatpush.bf16.msra.mxu0 0
        %3038 = vmatpush.bf16.msra.mxu0 0
        %3039 = vmatpush.bf16.msra.mxu0 0
        %3040 = vmatpush.bf16.msra.mxu0 %v3033
        %3041 = vmatpush.bf16.msra.mxu0 %v2996
        %3042 = vmatpush.bf16.msra.mxu0 %v2995
        %3043 = vmatmul.bf16.gmra.mxu0 %v3002
        %v3044 = vpop.f32.mrf.mxu0
        %v3045 = vadd.f32 %v2933, %v3044
        %v3046 = vpop.f32.mrf.mxu0
        %v3047 = vadd.f32 %v2933, %v3046
        %3048 = vmatmul.bf16.gmra.mxu0 %v3005
        %v3049 = vpop.f32.mrf.mxu0
        %v3050 = vadd.f32 %v2933, %v3049
        %v3051 = vpop.f32.mrf.mxu0
        %v3052 = vadd.f32 %v2933, %v3051
        %3053 = vmatmul.bf16.gmra.mxu0 %v3008
        %v3054 = vpop.f32.mrf.mxu0
        %v3055 = vadd.f32 %v2933, %v3054
        %v3056 = vpop.f32.mrf.mxu0
        %v3057 = vadd.f32 %v2933, %v3056
        %3058 = vmatmul.bf16.gmra.mxu0 %v3011
        %v3059 = vpop.f32.mrf.mxu0
        %v3060 = vadd.f32 %v2933, %v3059
        %v3061 = vpop.f32.mrf.mxu0
        %v3062 = vadd.f32 %v2933, %v3061
        %3063 = vmatmul.bf16.gmra.mxu0 %v3014
        %v3064 = vpop.f32.mrf.mxu0
        %v3065 = vadd.f32 %v2933, %v3064
        %v3066 = vpop.f32.mrf.mxu0
        %v3067 = vadd.f32 %v2933, %v3066
        %3068 = vmatmul.bf16.gmra.mxu0 %v3017
        %v3069 = vpop.f32.mrf.mxu0
        %v3070 = vadd.f32 %v2933, %v3069
        %v3071 = vpop.f32.mrf.mxu0
        %v3072 = vadd.f32 %v2933, %v3071
        %3073 = vmatmul.bf16.gmra.mxu0 %v3020
        %v3074 = vpop.f32.mrf.mxu0
        %v3075 = vadd.f32 %v2933, %v3074
        %v3076 = vpop.f32.mrf.mxu0
        %v3077 = vadd.f32 %v2933, %v3076
        %3078 = vmatmul.bf16.gmra.mxu0 %v3023
        %v3079 = vpop.f32.mrf.mxu0
        %v3080 = vadd.f32 %v2933, %v3079
        %v3081 = vpop.f32.mrf.mxu0
        %v3082 = vadd.f32 %v2933, %v3081
        %3083 = vmatmul.bf16.gmra.mxu0 %v3026
        %v3084 = vpop.f32.mrf.mxu0
        %v3085 = vadd.f32 %v2933, %v3084
        %v3086 = vpop.f32.mrf.mxu0
        %v3087 = vadd.f32 %v2933, %v3086
        %3088 = vmatmul.bf16.gmra.mxu0 %v3029
        %v3089 = vpop.f32.mrf.mxu0
        %v3090 = vadd.f32 %v2933, %v3089
        %v3091 = vpop.f32.mrf.mxu0
        %v3092 = vadd.f32 %v2933, %v3091
        %3093 = vdwg.mxu0
        %v3094 = vxor.u32 %v3045, 2147483648
        %v3095 = vxor.u32 %v3047, 2147483648
        %v3096 = vxor.u32 %v3050, 2147483648
        %v3097 = vxor.u32 %v3052, 2147483648
        %v3098 = vxor.u32 %v3055, 2147483648
        %v3099 = vxor.u32 %v3057, 2147483648
        %v3100 = vxor.u32 %v3060, 2147483648
        %v3101 = vxor.u32 %v3062, 2147483648
        %v3102 = vxor.u32 %v3065, 2147483648
        %v3103 = vxor.u32 %v3067, 2147483648
        %v3104 = vxor.u32 %v3070, 2147483648
        %v3105 = vxor.u32 %v3072, 2147483648
        %v3106 = vxor.u32 %v3075, 2147483648
        %v3107 = vxor.u32 %v3077, 2147483648
        %v3108 = vxor.u32 %v3080, 2147483648
        %v3109 = vxor.u32 %v3082, 2147483648
        %v3110 = vxor.u32 %v3085, 2147483648
        %v3111 = vxor.u32 %v3087, 2147483648
        %v3112 = vxor.u32 %v3090, 2147483648
        %v3113 = vxor.u32 %v3092, 2147483648
        %v3114 = vmul.f32 %v3094, 1.442695
        %v3115 = vpow.pop %v3114
        %v3116 = vmul.f32 %v3095, 1.442695
        %v3117 = vpow.pop %v3116
        %v3118 = vmul.f32 %v3096, 1.442695
        %v3119 = vpow.pop %v3118
        %v3120 = vmul.f32 %v3097, 1.442695
        %v3121 = vpow.pop %v3120
        %v3122 = vmul.f32 %v3098, 1.442695
        %v3123 = vpow.pop %v3122
        %v3124 = vmul.f32 %v3099, 1.442695
        %v3125 = vpow.pop %v3124
        %v3126 = vmul.f32 %v3100, 1.442695
        %v3127 = vpow.pop %v3126
        %v3128 = vmul.f32 %v3101, 1.442695
        %v3129 = vpow.pop %v3128
        %v3130 = vmul.f32 %v3102, 1.442695
        %v3131 = vpow.pop %v3130
        %v3132 = vmul.f32 %v3103, 1.442695
        %v3133 = vpow.pop %v3132
        %v3134 = vmul.f32 %v3104, 1.442695
        %v3135 = vpow.pop %v3134
        %v3136 = vmul.f32 %v3105, 1.442695
        %v3137 = vpow.pop %v3136
        %v3138 = vmul.f32 %v3106, 1.442695
        %v3139 = vpow.pop %v3138
        %v3140 = vmul.f32 %v3107, 1.442695
        %v3141 = vpow.pop %v3140
        %v3142 = vmul.f32 %v3108, 1.442695
        %v3143 = vpow.pop %v3142
        %v3144 = vmul.f32 %v3109, 1.442695
        %v3145 = vpow.pop %v3144
        %v3146 = vmul.f32 %v3110, 1.442695
        %v3147 = vpow.pop %v3146
        %v3148 = vmul.f32 %v3111, 1.442695
        %v3149 = vpow.pop %v3148
        %v3150 = vmul.f32 %v3112, 1.442695
        %v3151 = vpow.pop %v3150
        %v3152 = vmul.f32 %v3113, 1.442695
        %v3153 = vpow.pop %v3152
        %v3154 = vadd.f32 %v3115, 1.0
        %v3155 = vadd.f32 %v3117, 1.0
        %v3156 = vadd.f32 %v3119, 1.0
        %v3157 = vadd.f32 %v3121, 1.0
        %v3158 = vadd.f32 %v3123, 1.0
        %v3159 = vadd.f32 %v3125, 1.0
        %v3160 = vadd.f32 %v3127, 1.0
        %v3161 = vadd.f32 %v3129, 1.0
        %v3162 = vadd.f32 %v3131, 1.0
        %v3163 = vadd.f32 %v3133, 1.0
        %v3164 = vadd.f32 %v3135, 1.0
        %v3165 = vadd.f32 %v3137, 1.0
        %v3166 = vadd.f32 %v3139, 1.0
        %v3167 = vadd.f32 %v3141, 1.0
        %v3168 = vadd.f32 %v3143, 1.0
        %v3169 = vadd.f32 %v3145, 1.0
        %v3170 = vadd.f32 %v3147, 1.0
        %v3171 = vadd.f32 %v3149, 1.0
        %v3172 = vadd.f32 %v3151, 1.0
        %v3173 = vadd.f32 %v3153, 1.0
        %v3174 = vrcp.pop %v3154
        %v3175 = vmul.f32 %v3154, %v3174
        %v3176 = vsub.f32 1.0, %v3175
        %v3177 = vmul.f32 %v3174, %v3176
        %v3178 = vadd.f32 %v3174, %v3177
        %vm3179 = vweird.f32 %v3154
        %vm3180 = vweird.f32 %v3174
        %vm3181 = vmor %vm3179, %vm3180
        %v3182 = vsel %vm3181, %v3174, %v3178
        %v3183 = vand.u32 2147483647, %v3154
        %vm3184 = vcmp.eq.f32.partialorder %v3183, 8.507059e+37
        %v3185 = vand.u32 %v3154, 2147483648
        %v3186 = vor.u32 1.1754944e-38, %v3185
        %v3187 = vsel %vm3184, %v3186, %v3182
        %v3188 = vmul.f32 1.0, %v3187
        %v3189 = vrcp.pop %v3155
        %v3190 = vmul.f32 %v3155, %v3189
        %v3191 = vsub.f32 1.0, %v3190
        %v3192 = vmul.f32 %v3189, %v3191
        %v3193 = vadd.f32 %v3189, %v3192
        %vm3194 = vweird.f32 %v3155
        %vm3195 = vweird.f32 %v3189
        %vm3196 = vmor %vm3194, %vm3195
        %v3197 = vsel %vm3196, %v3189, %v3193
        %v3198 = vand.u32 2147483647, %v3155
        %vm3199 = vcmp.eq.f32.partialorder %v3198, 8.507059e+37
        %v3200 = vand.u32 %v3155, 2147483648
        %v3201 = vor.u32 1.1754944e-38, %v3200
        %v3202 = vsel %vm3199, %v3201, %v3197
        %v3203 = vmul.f32 1.0, %v3202
        %v3204 = vrcp.pop %v3156
        %v3205 = vmul.f32 %v3156, %v3204
        %v3206 = vsub.f32 1.0, %v3205
        %v3207 = vmul.f32 %v3204, %v3206
        %v3208 = vadd.f32 %v3204, %v3207
        %vm3209 = vweird.f32 %v3156
        %vm3210 = vweird.f32 %v3204
        %vm3211 = vmor %vm3209, %vm3210
        %v3212 = vsel %vm3211, %v3204, %v3208
        %v3213 = vand.u32 2147483647, %v3156
        %vm3214 = vcmp.eq.f32.partialorder %v3213, 8.507059e+37
        %v3215 = vand.u32 %v3156, 2147483648
        %v3216 = vor.u32 1.1754944e-38, %v3215
        %v3217 = vsel %vm3214, %v3216, %v3212
        %v3218 = vmul.f32 1.0, %v3217
        %v3219 = vrcp.pop %v3157
        %v3220 = vmul.f32 %v3157, %v3219
        %v3221 = vsub.f32 1.0, %v3220
        %v3222 = vmul.f32 %v3219, %v3221
        %v3223 = vadd.f32 %v3219, %v3222
        %vm3224 = vweird.f32 %v3157
        %vm3225 = vweird.f32 %v3219
        %vm3226 = vmor %vm3224, %vm3225
        %v3227 = vsel %vm3226, %v3219, %v3223
        %v3228 = vand.u32 2147483647, %v3157
        %vm3229 = vcmp.eq.f32.partialorder %v3228, 8.507059e+37
        %v3230 = vand.u32 %v3157, 2147483648
        %v3231 = vor.u32 1.1754944e-38, %v3230
        %v3232 = vsel %vm3229, %v3231, %v3227
        %v3233 = vmul.f32 1.0, %v3232
        %v3234 = vrcp.pop %v3158
        %v3235 = vmul.f32 %v3158, %v3234
        %v3236 = vsub.f32 1.0, %v3235
        %v3237 = vmul.f32 %v3234, %v3236
        %v3238 = vadd.f32 %v3234, %v3237
        %vm3239 = vweird.f32 %v3158
        %vm3240 = vweird.f32 %v3234
        %vm3241 = vmor %vm3239, %vm3240
        %v3242 = vsel %vm3241, %v3234, %v3238
        %v3243 = vand.u32 2147483647, %v3158
        %vm3244 = vcmp.eq.f32.partialorder %v3243, 8.507059e+37
        %v3245 = vand.u32 %v3158, 2147483648
        %v3246 = vor.u32 1.1754944e-38, %v3245
        %v3247 = vsel %vm3244, %v3246, %v3242
        %v3248 = vmul.f32 1.0, %v3247
        %v3249 = vrcp.pop %v3159
        %v3250 = vmul.f32 %v3159, %v3249
        %v3251 = vsub.f32 1.0, %v3250
        %v3252 = vmul.f32 %v3249, %v3251
        %v3253 = vadd.f32 %v3249, %v3252
        %vm3254 = vweird.f32 %v3159
        %vm3255 = vweird.f32 %v3249
        %vm3256 = vmor %vm3254, %vm3255
        %v3257 = vsel %vm3256, %v3249, %v3253
        %v3258 = vand.u32 2147483647, %v3159
        %vm3259 = vcmp.eq.f32.partialorder %v3258, 8.507059e+37
        %v3260 = vand.u32 %v3159, 2147483648
        %v3261 = vor.u32 1.1754944e-38, %v3260
        %v3262 = vsel %vm3259, %v3261, %v3257
        %v3263 = vmul.f32 1.0, %v3262
        %v3264 = vrcp.pop %v3160
        %v3265 = vmul.f32 %v3160, %v3264
        %v3266 = vsub.f32 1.0, %v3265
        %v3267 = vmul.f32 %v3264, %v3266
        %v3268 = vadd.f32 %v3264, %v3267
        %vm3269 = vweird.f32 %v3160
        %vm3270 = vweird.f32 %v3264
        %vm3271 = vmor %vm3269, %vm3270
        %v3272 = vsel %vm3271, %v3264, %v3268
        %v3273 = vand.u32 2147483647, %v3160
        %vm3274 = vcmp.eq.f32.partialorder %v3273, 8.507059e+37
        %v3275 = vand.u32 %v3160, 2147483648
        %v3276 = vor.u32 1.1754944e-38, %v3275
        %v3277 = vsel %vm3274, %v3276, %v3272
        %v3278 = vmul.f32 1.0, %v3277
        %v3279 = vrcp.pop %v3161
        %v3280 = vmul.f32 %v3161, %v3279
        %v3281 = vsub.f32 1.0, %v3280
        %v3282 = vmul.f32 %v3279, %v3281
        %v3283 = vadd.f32 %v3279, %v3282
        %vm3284 = vweird.f32 %v3161
        %vm3285 = vweird.f32 %v3279
        %vm3286 = vmor %vm3284, %vm3285
        %v3287 = vsel %vm3286, %v3279, %v3283
        %v3288 = vand.u32 2147483647, %v3161
        %vm3289 = vcmp.eq.f32.partialorder %v3288, 8.507059e+37
        %v3290 = vand.u32 %v3161, 2147483648
        %v3291 = vor.u32 1.1754944e-38, %v3290
        %v3292 = vsel %vm3289, %v3291, %v3287
        %v3293 = vmul.f32 1.0, %v3292
        %v3294 = vrcp.pop %v3162
        %v3295 = vmul.f32 %v3162, %v3294
        %v3296 = vsub.f32 1.0, %v3295
        %v3297 = vmul.f32 %v3294, %v3296
        %v3298 = vadd.f32 %v3294, %v3297
        %vm3299 = vweird.f32 %v3162
        %vm3300 = vweird.f32 %v3294
        %vm3301 = vmor %vm3299, %vm3300
        %v3302 = vsel %vm3301, %v3294, %v3298
        %v3303 = vand.u32 2147483647, %v3162
        %vm3304 = vcmp.eq.f32.partialorder %v3303, 8.507059e+37
        %v3305 = vand.u32 %v3162, 2147483648
        %v3306 = vor.u32 1.1754944e-38, %v3305
        %v3307 = vsel %vm3304, %v3306, %v3302
        %v3308 = vmul.f32 1.0, %v3307
        %v3309 = vrcp.pop %v3163
        %v3310 = vmul.f32 %v3163, %v3309
        %v3311 = vsub.f32 1.0, %v3310
        %v3312 = vmul.f32 %v3309, %v3311
        %v3313 = vadd.f32 %v3309, %v3312
        %vm3314 = vweird.f32 %v3163
        %vm3315 = vweird.f32 %v3309
        %vm3316 = vmor %vm3314, %vm3315
        %v3317 = vsel %vm3316, %v3309, %v3313
        %v3318 = vand.u32 2147483647, %v3163
        %vm3319 = vcmp.eq.f32.partialorder %v3318, 8.507059e+37
        %v3320 = vand.u32 %v3163, 2147483648
        %v3321 = vor.u32 1.1754944e-38, %v3320
        %v3322 = vsel %vm3319, %v3321, %v3317
        %v3323 = vmul.f32 1.0, %v3322
        %v3324 = vrcp.pop %v3164
        %v3325 = vmul.f32 %v3164, %v3324
        %v3326 = vsub.f32 1.0, %v3325
        %v3327 = vmul.f32 %v3324, %v3326
        %v3328 = vadd.f32 %v3324, %v3327
        %vm3329 = vweird.f32 %v3164
        %vm3330 = vweird.f32 %v3324
        %vm3331 = vmor %vm3329, %vm3330
        %v3332 = vsel %vm3331, %v3324, %v3328
        %v3333 = vand.u32 2147483647, %v3164
        %vm3334 = vcmp.eq.f32.partialorder %v3333, 8.507059e+37
        %v3335 = vand.u32 %v3164, 2147483648
        %v3336 = vor.u32 1.1754944e-38, %v3335
        %v3337 = vsel %vm3334, %v3336, %v3332
        %v3338 = vmul.f32 1.0, %v3337
        %v3339 = vrcp.pop %v3165
        %v3340 = vmul.f32 %v3165, %v3339
        %v3341 = vsub.f32 1.0, %v3340
        %v3342 = vmul.f32 %v3339, %v3341
        %v3343 = vadd.f32 %v3339, %v3342
        %vm3344 = vweird.f32 %v3165
        %vm3345 = vweird.f32 %v3339
        %vm3346 = vmor %vm3344, %vm3345
        %v3347 = vsel %vm3346, %v3339, %v3343
        %v3348 = vand.u32 2147483647, %v3165
        %vm3349 = vcmp.eq.f32.partialorder %v3348, 8.507059e+37
        %v3350 = vand.u32 %v3165, 2147483648
        %v3351 = vor.u32 1.1754944e-38, %v3350
        %v3352 = vsel %vm3349, %v3351, %v3347
        %v3353 = vmul.f32 1.0, %v3352
        %v3354 = vrcp.pop %v3166
        %v3355 = vmul.f32 %v3166, %v3354
        %v3356 = vsub.f32 1.0, %v3355
        %v3357 = vmul.f32 %v3354, %v3356
        %v3358 = vadd.f32 %v3354, %v3357
        %vm3359 = vweird.f32 %v3166
        %vm3360 = vweird.f32 %v3354
        %vm3361 = vmor %vm3359, %vm3360
        %v3362 = vsel %vm3361, %v3354, %v3358
        %v3363 = vand.u32 2147483647, %v3166
        %vm3364 = vcmp.eq.f32.partialorder %v3363, 8.507059e+37
        %v3365 = vand.u32 %v3166, 2147483648
        %v3366 = vor.u32 1.1754944e-38, %v3365
        %v3367 = vsel %vm3364, %v3366, %v3362
        %v3368 = vmul.f32 1.0, %v3367
        %v3369 = vrcp.pop %v3167
        %v3370 = vmul.f32 %v3167, %v3369
        %v3371 = vsub.f32 1.0, %v3370
        %v3372 = vmul.f32 %v3369, %v3371
        %v3373 = vadd.f32 %v3369, %v3372
        %vm3374 = vweird.f32 %v3167
        %vm3375 = vweird.f32 %v3369
        %vm3376 = vmor %vm3374, %vm3375
        %v3377 = vsel %vm3376, %v3369, %v3373
        %v3378 = vand.u32 2147483647, %v3167
        %vm3379 = vcmp.eq.f32.partialorder %v3378, 8.507059e+37
        %v3380 = vand.u32 %v3167, 2147483648
        %v3381 = vor.u32 1.1754944e-38, %v3380
        %v3382 = vsel %vm3379, %v3381, %v3377
        %v3383 = vmul.f32 1.0, %v3382
        %v3384 = vrcp.pop %v3168
        %v3385 = vmul.f32 %v3168, %v3384
        %v3386 = vsub.f32 1.0, %v3385
        %v3387 = vmul.f32 %v3384, %v3386
        %v3388 = vadd.f32 %v3384, %v3387
        %vm3389 = vweird.f32 %v3168
        %vm3390 = vweird.f32 %v3384
        %vm3391 = vmor %vm3389, %vm3390
        %v3392 = vsel %vm3391, %v3384, %v3388
        %v3393 = vand.u32 2147483647, %v3168
        %vm3394 = vcmp.eq.f32.partialorder %v3393, 8.507059e+37
        %v3395 = vand.u32 %v3168, 2147483648
        %v3396 = vor.u32 1.1754944e-38, %v3395
        %v3397 = vsel %vm3394, %v3396, %v3392
        %v3398 = vmul.f32 1.0, %v3397
        %v3399 = vrcp.pop %v3169
        %v3400 = vmul.f32 %v3169, %v3399
        %v3401 = vsub.f32 1.0, %v3400
        %v3402 = vmul.f32 %v3399, %v3401
        %v3403 = vadd.f32 %v3399, %v3402
        %vm3404 = vweird.f32 %v3169
        %vm3405 = vweird.f32 %v3399
        %vm3406 = vmor %vm3404, %vm3405
        %v3407 = vsel %vm3406, %v3399, %v3403
        %v3408 = vand.u32 2147483647, %v3169
        %vm3409 = vcmp.eq.f32.partialorder %v3408, 8.507059e+37
        %v3410 = vand.u32 %v3169, 2147483648
        %v3411 = vor.u32 1.1754944e-38, %v3410
        %v3412 = vsel %vm3409, %v3411, %v3407
        %v3413 = vmul.f32 1.0, %v3412
        %v3414 = vrcp.pop %v3170
        %v3415 = vmul.f32 %v3170, %v3414
        %v3416 = vsub.f32 1.0, %v3415
        %v3417 = vmul.f32 %v3414, %v3416
        %v3418 = vadd.f32 %v3414, %v3417
        %vm3419 = vweird.f32 %v3170
        %vm3420 = vweird.f32 %v3414
        %vm3421 = vmor %vm3419, %vm3420
        %v3422 = vsel %vm3421, %v3414, %v3418
        %v3423 = vand.u32 2147483647, %v3170
        %vm3424 = vcmp.eq.f32.partialorder %v3423, 8.507059e+37
        %v3425 = vand.u32 %v3170, 2147483648
        %v3426 = vor.u32 1.1754944e-38, %v3425
        %v3427 = vsel %vm3424, %v3426, %v3422
        %v3428 = vmul.f32 1.0, %v3427
        %v3429 = vrcp.pop %v3171
        %v3430 = vmul.f32 %v3171, %v3429
        %v3431 = vsub.f32 1.0, %v3430
        %v3432 = vmul.f32 %v3429, %v3431
        %v3433 = vadd.f32 %v3429, %v3432
        %vm3434 = vweird.f32 %v3171
        %vm3435 = vweird.f32 %v3429
        %vm3436 = vmor %vm3434, %vm3435
        %v3437 = vsel %vm3436, %v3429, %v3433
        %v3438 = vand.u32 2147483647, %v3171
        %vm3439 = vcmp.eq.f32.partialorder %v3438, 8.507059e+37
        %v3440 = vand.u32 %v3171, 2147483648
        %v3441 = vor.u32 1.1754944e-38, %v3440
        %v3442 = vsel %vm3439, %v3441, %v3437
        %v3443 = vmul.f32 1.0, %v3442
        %v3444 = vrcp.pop %v3172
        %v3445 = vmul.f32 %v3172, %v3444
        %v3446 = vsub.f32 1.0, %v3445
        %v3447 = vmul.f32 %v3444, %v3446
        %v3448 = vadd.f32 %v3444, %v3447
        %vm3449 = vweird.f32 %v3172
        %vm3450 = vweird.f32 %v3444
        %vm3451 = vmor %vm3449, %vm3450
        %v3452 = vsel %vm3451, %v3444, %v3448
        %v3453 = vand.u32 2147483647, %v3172
        %vm3454 = vcmp.eq.f32.partialorder %v3453, 8.507059e+37
        %v3455 = vand.u32 %v3172, 2147483648
        %v3456 = vor.u32 1.1754944e-38, %v3455
        %v3457 = vsel %vm3454, %v3456, %v3452
        %v3458 = vmul.f32 1.0, %v3457
        %v3459 = vrcp.pop %v3173
        %v3460 = vmul.f32 %v3173, %v3459
        %v3461 = vsub.f32 1.0, %v3460
        %v3462 = vmul.f32 %v3459, %v3461
        %v3463 = vadd.f32 %v3459, %v3462
        %vm3464 = vweird.f32 %v3173
        %vm3465 = vweird.f32 %v3459
        %vm3466 = vmor %vm3464, %vm3465
        %v3467 = vsel %vm3466, %v3459, %v3463
        %v3468 = vand.u32 2147483647, %v3173
        %vm3469 = vcmp.eq.f32.partialorder %v3468, 8.507059e+37
        %v3470 = vand.u32 %v3173, 2147483648
        %v3471 = vor.u32 1.1754944e-38, %v3470
        %v3472 = vsel %vm3469, %v3471, %v3467
        %v3473 = vmul.f32 1.0, %v3472
        %v3474 = vmul.f32 %v3045, %v3188
        %v3475 = vmul.f32 %v3047, %v3203
        %v3476 = vmul.f32 %v3050, %v3218
        %v3477 = vmul.f32 %v3052, %v3233
        %v3478 = vmul.f32 %v3055, %v3248
        %v3479 = vmul.f32 %v3057, %v3263
        %v3480 = vmul.f32 %v3060, %v3278
        %v3481 = vmul.f32 %v3062, %v3293
        %v3482 = vmul.f32 %v3065, %v3308
        %v3483 = vmul.f32 %v3067, %v3323
        %v3484 = vmul.f32 %v3070, %v3338
        %v3485 = vmul.f32 %v3072, %v3353
        %v3486 = vmul.f32 %v3075, %v3368
        %v3487 = vmul.f32 %v3077, %v3383
        %v3488 = vmul.f32 %v3080, %v3398
        %v3489 = vmul.f32 %v3082, %v3413
        %v3490 = vmul.f32 %v3085, %v3428
        %v3491 = vmul.f32 %v3087, %v3443
        %v3492 = vmul.f32 %v3090, %v3458
        %v3493 = vmul.f32 %v3092, %v3473
        %v3494 = vpack.c.bf16 %v3474, %v3474
        %v3495 = vpack.c.bf16 %v3475, %v3475
        %v3496 = vpack.c.bf16 %v3476, %v3476
        %v3497 = vpack.c.bf16 %v3477, %v3477
        %v3498 = vpack.c.bf16 %v3478, %v3478
        %v3499 = vpack.c.bf16 %v3479, %v3479
        %v3500 = vpack.c.bf16 %v3480, %v3480
        %v3501 = vpack.c.bf16 %v3481, %v3481
        %v3502 = vpack.c.bf16 %v3482, %v3482
        %v3503 = vpack.c.bf16 %v3483, %v3483
        %v3504 = vpack.c.bf16 %v3484, %v3484
        %v3505 = vpack.c.bf16 %v3485, %v3485
        %v3506 = vpack.c.bf16 %v3486, %v3486
        %v3507 = vpack.c.bf16 %v3487, %v3487
        %v3508 = vpack.c.bf16 %v3488, %v3488
        %v3509 = vpack.c.bf16 %v3489, %v3489
        %v3510 = vpack.c.bf16 %v3490, %v3490
        %v3511 = vpack.c.bf16 %v3491, %v3491
        %v3512 = vpack.c.bf16 %v3492, %v3492
        %v3513 = vpack.c.bf16 %v3493, %v3493
        %vm3514 = vsmask.f32 256
        %vm3515 = vsmask.f32 4368
        %vm3516 = vmor %vm3514, %vm3515
        %v3518 = vshrl.u32 %v3494, 16
        %v3520 = vrot.slane %v3518, 7
        %v3521 = vshll.u32 %v3494, 16
        %v3523 = vor.u32 %v3520, %v3521
        %v3524 = vrot.slane %v3520, 4
        %v3526 = vshrl.u32 %v3495, 16
        %v3528 = vrot.slane %v3526, 7
        %v3529 = vshll.u32 %v3495, 16
        %v3531 = vor.u32 %v3528, %v3529
        %v3532 = vsel %vm3516, %v3524, %v3531
        %v3533 = vrot.slane %v3528, 4
        %v3535 = vshrl.u32 %v3496, 16
        %v3537 = vrot.slane %v3535, 7
        %v3538 = vshll.u32 %v3496, 16
        %v3540 = vor.u32 %v3537, %v3538
        %v3541 = vrot.slane %v3537, 4
        %v3543 = vshrl.u32 %v3497, 16
        %v3545 = vrot.slane %v3543, 7
        %v3546 = vshll.u32 %v3497, 16
        %v3548 = vor.u32 %v3545, %v3546
        %v3549 = vsel %vm3516, %v3541, %v3548
        %v3550 = vrot.slane %v3545, 4
        %v3552 = vshrl.u32 %v3498, 16
        %v3554 = vrot.slane %v3552, 7
        %v3555 = vshll.u32 %v3498, 16
        %v3557 = vor.u32 %v3554, %v3555
        %v3558 = vrot.slane %v3554, 4
        %v3560 = vshrl.u32 %v3499, 16
        %v3562 = vrot.slane %v3560, 7
        %v3563 = vshll.u32 %v3499, 16
        %v3565 = vor.u32 %v3562, %v3563
        %v3566 = vsel %vm3516, %v3558, %v3565
        %v3567 = vrot.slane %v3562, 4
        %v3569 = vshrl.u32 %v3500, 16
        %v3571 = vrot.slane %v3569, 7
        %v3572 = vshll.u32 %v3500, 16
        %v3574 = vor.u32 %v3571, %v3572
        %v3575 = vrot.slane %v3571, 4
        %v3577 = vshrl.u32 %v3501, 16
        %v3579 = vrot.slane %v3577, 7
        %v3580 = vshll.u32 %v3501, 16
        %v3582 = vor.u32 %v3579, %v3580
        %v3583 = vsel %vm3516, %v3575, %v3582
        %v3584 = vrot.slane %v3579, 4
        %v3586 = vshrl.u32 %v3502, 16
        %v3588 = vrot.slane %v3586, 7
        %v3589 = vshll.u32 %v3502, 16
        %v3591 = vor.u32 %v3588, %v3589
        %v3592 = vrot.slane %v3588, 4
        %v3594 = vshrl.u32 %v3503, 16
        %v3596 = vrot.slane %v3594, 7
        %v3597 = vshll.u32 %v3503, 16
        %v3599 = vor.u32 %v3596, %v3597
        %v3600 = vsel %vm3516, %v3592, %v3599
        %v3601 = vrot.slane %v3596, 4
        %v3603 = vshrl.u32 %v3504, 16
        %v3605 = vrot.slane %v3603, 7
        %v3606 = vshll.u32 %v3504, 16
        %v3608 = vor.u32 %v3605, %v3606
        %v3609 = vrot.slane %v3605, 4
        %v3611 = vshrl.u32 %v3505, 16
        %v3613 = vrot.slane %v3611, 7
        %v3614 = vshll.u32 %v3505, 16
        %v3616 = vor.u32 %v3613, %v3614
        %v3617 = vsel %vm3516, %v3609, %v3616
        %v3618 = vrot.slane %v3613, 4
        %v3620 = vshrl.u32 %v3506, 16
        %v3622 = vrot.slane %v3620, 7
        %v3623 = vshll.u32 %v3506, 16
        %v3625 = vor.u32 %v3622, %v3623
        %v3626 = vrot.slane %v3622, 4
        %v3628 = vshrl.u32 %v3507, 16
        %v3630 = vrot.slane %v3628, 7
        %v3631 = vshll.u32 %v3507, 16
        %v3633 = vor.u32 %v3630, %v3631
        %v3634 = vsel %vm3516, %v3626, %v3633
        %v3635 = vrot.slane %v3630, 4
        %v3637 = vshrl.u32 %v3508, 16
        %v3639 = vrot.slane %v3637, 7
        %v3640 = vshll.u32 %v3508, 16
        %v3642 = vor.u32 %v3639, %v3640
        %v3643 = vrot.slane %v3639, 4
        %v3645 = vshrl.u32 %v3509, 16
        %v3647 = vrot.slane %v3645, 7
        %v3648 = vshll.u32 %v3509, 16
        %v3650 = vor.u32 %v3647, %v3648
        %v3651 = vsel %vm3516, %v3643, %v3650
        %v3652 = vrot.slane %v3647, 4
        %v3654 = vshrl.u32 %v3510, 16
        %v3656 = vrot.slane %v3654, 7
        %v3657 = vshll.u32 %v3510, 16
        %v3659 = vor.u32 %v3656, %v3657
        %v3660 = vrot.slane %v3656, 4
        %v3662 = vshrl.u32 %v3511, 16
        %v3664 = vrot.slane %v3662, 7
        %v3665 = vshll.u32 %v3511, 16
        %v3667 = vor.u32 %v3664, %v3665
        %v3668 = vsel %vm3516, %v3660, %v3667
        %v3669 = vrot.slane %v3664, 4
        %v3671 = vshrl.u32 %v3512, 16
        %v3673 = vrot.slane %v3671, 7
        %v3674 = vshll.u32 %v3512, 16
        %v3676 = vor.u32 %v3673, %v3674
        %v3677 = vrot.slane %v3673, 4
        %v3679 = vshrl.u32 %v3513, 16
        %v3681 = vrot.slane %v3679, 7
        %v3682 = vshll.u32 %v3513, 16
        %v3684 = vor.u32 %v3681, %v3682
        %v3685 = vsel %vm3516, %v3677, %v3684
        %v3686 = vrot.slane %v3681, 4
        %vm3717 = vcmask 27648
        %vm3718 = vsmask.f32 7938
        %vm3719 = vmand %vm3717, %vm3718
        %v3720 = vld [vmem:[#allocation4] sm:$0xf]
        %v3721 = vsel %vm3719, %v3523, %v3720
        %3722 = vst [vmem:[#allocation4] sm:$0xf] %v3721
        %3723 = vst.msk [vmem:[#allocation4 + $0x4] sm:$0xf] %vm943, %v3532
        %vm3724 = vcmask 24576
        %vm3725 = vmand %vm3724, %vm3514
        %v3726 = vld [vmem:[#allocation4 + $0x8] sm:$0x1]
        %v3727 = vsel %vm3725, %v3533, %v3726
        %3728 = vst [vmem:[#allocation4 + $0x8] sm:$0x1] %v3727
        %v3729 = vld [vmem:[#allocation4 + $0xc] sm:$0xf]
        %v3730 = vsel %vm3719, %v3540, %v3729
        %3731 = vst [vmem:[#allocation4 + $0xc] sm:$0xf] %v3730
        %3732 = vst.msk [vmem:[#allocation4 + $0x10] sm:$0xf] %vm943, %v3549
        %v3733 = vld [vmem:[#allocation4 + $0x14] sm:$0x1]
        %v3734 = vsel %vm3725, %v3550, %v3733
        %3735 = vst [vmem:[#allocation4 + $0x14] sm:$0x1] %v3734
        %v3736 = vld [vmem:[#allocation4 + $0x18] sm:$0xf]
        %v3737 = vsel %vm3719, %v3557, %v3736
        %3738 = vst [vmem:[#allocation4 + $0x18] sm:$0xf] %v3737
        %3739 = vst.msk [vmem:[#allocation4 + $0x1c] sm:$0xf] %vm943, %v3566
        %v3740 = vld [vmem:[#allocation4 + $0x20] sm:$0x1]
        %v3741 = vsel %vm3725, %v3567, %v3740
        %3742 = vst [vmem:[#allocation4 + $0x20] sm:$0x1] %v3741
        %v3743 = vld [vmem:[#allocation4 + $0x24] sm:$0xf]
        %v3744 = vsel %vm3719, %v3574, %v3743
        %3745 = vst [vmem:[#allocation4 + $0x24] sm:$0xf] %v3744
        %3746 = vst.msk [vmem:[#allocation4 + $0x28] sm:$0xf] %vm943, %v3583
        %v3747 = vld [vmem:[#allocation4 + $0x2c] sm:$0x1]
        %v3748 = vsel %vm3725, %v3584, %v3747
        %3749 = vst [vmem:[#allocation4 + $0x2c] sm:$0x1] %v3748
        %v3750 = vld [vmem:[#allocation4 + $0x30] sm:$0xf]
        %v3751 = vsel %vm3719, %v3591, %v3750
        %3752 = vst [vmem:[#allocation4 + $0x30] sm:$0xf] %v3751
        %3753 = vst.msk [vmem:[#allocation4 + $0x34] sm:$0xf] %vm943, %v3600
        %v3754 = vld [vmem:[#allocation4 + $0x38] sm:$0x1]
        %v3755 = vsel %vm3725, %v3601, %v3754
        %3756 = vst [vmem:[#allocation4 + $0x38] sm:$0x1] %v3755
        %v3757 = vld [vmem:[#allocation4 + $0x3c] sm:$0xf]
        %v3758 = vsel %vm3719, %v3608, %v3757
        %3759 = vst [vmem:[#allocation4 + $0x3c] sm:$0xf] %v3758
        %3760 = vst.msk [vmem:[#allocation4 + $0x40] sm:$0xf] %vm943, %v3617
        %v3761 = vld [vmem:[#allocation4 + $0x44] sm:$0x1]
        %v3762 = vsel %vm3725, %v3618, %v3761
        %3763 = vst [vmem:[#allocation4 + $0x44] sm:$0x1] %v3762
        %v3764 = vld [vmem:[#allocation4 + $0x48] sm:$0xf]
        %v3765 = vsel %vm3719, %v3625, %v3764
        %3766 = vst [vmem:[#allocation4 + $0x48] sm:$0xf] %v3765
        %3767 = vst.msk [vmem:[#allocation4 + $0x4c] sm:$0xf] %vm943, %v3634
        %v3768 = vld [vmem:[#allocation4 + $0x50] sm:$0x1]
        %v3769 = vsel %vm3725, %v3635, %v3768
        %3770 = vst [vmem:[#allocation4 + $0x50] sm:$0x1] %v3769
        %v3771 = vld [vmem:[#allocation4 + $0x54] sm:$0xf]
        %v3772 = vsel %vm3719, %v3642, %v3771
        %3773 = vst [vmem:[#allocation4 + $0x54] sm:$0xf] %v3772
        %3774 = vst.msk [vmem:[#allocation4 + $0x58] sm:$0xf] %vm943, %v3651
        %v3775 = vld [vmem:[#allocation4 + $0x5c] sm:$0x1]
        %v3776 = vsel %vm3725, %v3652, %v3775
        %3777 = vst [vmem:[#allocation4 + $0x5c] sm:$0x1] %v3776
        %v3778 = vld [vmem:[#allocation4 + $0x60] sm:$0xf]
        %v3779 = vsel %vm3719, %v3659, %v3778
        %3780 = vst [vmem:[#allocation4 + $0x60] sm:$0xf] %v3779
        %3781 = vst.msk [vmem:[#allocation4 + $0x64] sm:$0xf] %vm943, %v3668
        %v3782 = vld [vmem:[#allocation4 + $0x68] sm:$0x1]
        %v3783 = vsel %vm3725, %v3669, %v3782
        %3784 = vst [vmem:[#allocation4 + $0x68] sm:$0x1] %v3783
        %v3785 = vld [vmem:[#allocation4 + $0x6c] sm:$0xf]
        %v3786 = vsel %vm3719, %v3676, %v3785
        %3787 = vst [vmem:[#allocation4 + $0x6c] sm:$0xf] %v3786
        %3788 = vst.msk [vmem:[#allocation4 + $0x70] sm:$0xf] %vm943, %v3685
        %v3789 = vld [vmem:[#allocation4 + $0x74] sm:$0x1]
        %v3790 = vsel %vm3725, %v3686, %v3789
        %3791 = vst [vmem:[#allocation4 + $0x74] sm:$0x1] %v3790
        // Predicated region
        $region45: #{tpu_custom_call.1} parent=39 // pred_check
          %p3792 = pneg %p239
        $region46: #{tpu_custom_call.1} parent=39 // pred_check_branch
          %3794 = sbr.rel (%p3792) target = $region48
        $region47: #{tpu_custom_call.1} parent=39 // pred_region
          %v3795 = vld [vmem:[#allocation4] sm:$0xf]
          %v3796 = vsel %vm3719, 0, %v3795
          %3797 = vst [vmem:[#allocation4] sm:$0xf] %v3796
          %3798 = vst.msk [vmem:[#allocation4 + $0x4] sm:$0xf] %vm943, 0
          %v3799 = vld [vmem:[#allocation4 + $0x8] sm:$0x1]
          %v3800 = vsel %vm3725, 0, %v3799
          %3801 = vst [vmem:[#allocation4 + $0x8] sm:$0x1] %v3800
        $region48: #{tpu_custom_call.1} parent=39 // pred_fallthru
          _
        %p3802 = scmp.eq.s32.totalorder %s24, 1
        // Predicated region
        $region49: #{tpu_custom_call.1} parent=39 // pred_check
          %p3803 = pneg %p3802
        $region50: #{tpu_custom_call.1} parent=39 // pred_check_branch
          %3805 = sbr.rel (%p3803) target = $region52
        $region51: #{tpu_custom_call.1} parent=39 // pred_region
          %s3806 = scalar_lea.vmem [#allocation4], 108
          %v3807 = vld [vmem:[%s3806] sm:$0xf]
          %v3808 = vsel %vm3719, 0, %v3807
          %3809 = vst [vmem:[%s3806] sm:$0xf] %v3808
          %3810 = vst.msk [vmem:[%s3806 + $0x4] sm:$0xf] %vm943, 0
          %v3811 = vld [vmem:[%s3806 + $0x8] sm:$0x1]
          %v3812 = vsel %vm3725, 0, %v3811
          %3813 = vst [vmem:[%s3806 + $0x8] sm:$0x1] %v3812
        $region52: #{tpu_custom_call.1} parent=39 // pred_fallthru
          _
        %v3814 = vld [vmem:[#allocation4] sm:$0xf]
        %v3815 = vld [vmem:[#allocation4 + $0x4] sm:$0xf]
        %v3816 = vld [vmem:[#allocation4 + $0xc] sm:$0xf]
        %v3817 = vld [vmem:[#allocation4 + $0x10] sm:$0xf]
        %v3818 = vld [vmem:[#allocation4 + $0x18] sm:$0xf]
        %v3819 = vld [vmem:[#allocation4 + $0x1c] sm:$0xf]
        %v3820 = vld [vmem:[#allocation4 + $0x24] sm:$0xf]
        %v3821 = vld [vmem:[#allocation4 + $0x28] sm:$0xf]
        %v3822 = vld [vmem:[#allocation4 + $0x30] sm:$0xf]
        %v3823 = vld [vmem:[#allocation4 + $0x34] sm:$0xf]
        %v3824 = vld [vmem:[#allocation4 + $0x3c] sm:$0xf]
        %v3825 = vld [vmem:[#allocation4 + $0x40] sm:$0xf]
        %v3826 = vld [vmem:[#allocation4 + $0x48] sm:$0xf]
        %v3827 = vld [vmem:[#allocation4 + $0x4c] sm:$0xf]
        %v3828 = vld [vmem:[#allocation4 + $0x54] sm:$0xf]
        %v3829 = vld [vmem:[#allocation4 + $0x58] sm:$0xf]
        %3830 = vst.msk [vmem:[#allocation5] sm:$0xf] %vm943, %v3814
        %3831 = vst.msk [vmem:[#allocation5 + $0x4] sm:$0xf] %vm943, %v3815
        %3832 = vst.msk [vmem:[#allocation5 + $0x8] sm:$0xf] %vm943, %v3816
        %3833 = vst.msk [vmem:[#allocation5 + $0xc] sm:$0xf] %vm943, %v3817
        %3834 = vst.msk [vmem:[#allocation5 + $0x10] sm:$0xf] %vm943, %v3818
        %3835 = vst.msk [vmem:[#allocation5 + $0x14] sm:$0xf] %vm943, %v3819
        %3836 = vst.msk [vmem:[#allocation5 + $0x18] sm:$0xf] %vm943, %v3820
        %3837 = vst.msk [vmem:[#allocation5 + $0x1c] sm:$0xf] %vm943, %v3821
        %3838 = vst.msk [vmem:[#allocation5 + $0x20] sm:$0xf] %vm943, %v3822
        %3839 = vst.msk [vmem:[#allocation5 + $0x24] sm:$0xf] %vm943, %v3823
        %3840 = vst.msk [vmem:[#allocation5 + $0x28] sm:$0xf] %vm943, %v3824
        %3841 = vst.msk [vmem:[#allocation5 + $0x2c] sm:$0xf] %vm943, %v3825
        %3842 = vst.msk [vmem:[#allocation5 + $0x30] sm:$0xf] %vm943, %v3826
        %3843 = vst.msk [vmem:[#allocation5 + $0x34] sm:$0xf] %vm943, %v3827
        %3844 = vst.msk [vmem:[#allocation5 + $0x38] sm:$0xf] %vm943, %v3828
        %3845 = vst.msk [vmem:[#allocation5 + $0x3c] sm:$0xf] %vm943, %v3829
        %v3846 = vld [vmem:[#allocation4] sm:$0xf]
        %v3847 = vld [vmem:[#allocation4 + $0x4] sm:$0xf]
        %v3848 = vld [vmem:[#allocation4 + $0x8] sm:$0x1]
        %v3849 = vld [vmem:[#allocation4 + $0xc] sm:$0xf]
        %v3850 = vld [vmem:[#allocation4 + $0x10] sm:$0xf]
        %v3851 = vld [vmem:[#allocation4 + $0x14] sm:$0x1]
        %v3852 = vld [vmem:[#allocation4 + $0x18] sm:$0xf]
        %v3853 = vld [vmem:[#allocation4 + $0x1c] sm:$0xf]
        %v3854 = vld [vmem:[#allocation4 + $0x20] sm:$0x1]
        %v3855 = vld [vmem:[#allocation4 + $0x24] sm:$0xf]
        %v3856 = vld [vmem:[#allocation4 + $0x28] sm:$0xf]
        %v3857 = vld [vmem:[#allocation4 + $0x2c] sm:$0x1]
        %v3858 = vld [vmem:[#allocation4 + $0x30] sm:$0xf]
        %v3859 = vld [vmem:[#allocation4 + $0x34] sm:$0xf]
        %v3860 = vld [vmem:[#allocation4 + $0x38] sm:$0x1]
        %v3861 = vld [vmem:[#allocation4 + $0x3c] sm:$0xf]
        %v3862 = vld [vmem:[#allocation4 + $0x40] sm:$0xf]
        %v3863 = vld [vmem:[#allocation4 + $0x44] sm:$0x1]
        %v3864 = vld [vmem:[#allocation4 + $0x48] sm:$0xf]
        %v3865 = vld [vmem:[#allocation4 + $0x4c] sm:$0xf]
        %v3866 = vld [vmem:[#allocation4 + $0x50] sm:$0x1]
        %v3867 = vld [vmem:[#allocation4 + $0x54] sm:$0xf]
        %v3868 = vld [vmem:[#allocation4 + $0x58] sm:$0xf]
        %v3869 = vld [vmem:[#allocation4 + $0x5c] sm:$0x1]
        %v3871 = vshrl.u32 %v3846, 16
        %v3873 = vrot.slane %v3871, 4
        %v3874 = vshll.u32 %v3846, 16
        %v3876 = vrot.slane %v3874, 5
        %v3877 = vor.u32 %v3873, %v3876
        %v3878 = vrot.slane %v3877, 4
        %v3880 = vshll.u32 %v3847, 16
        %v3882 = vrot.slane %v3880, 5
        %v3883 = vsel %vm996, %v3878, %v3882
        %v3884 = vshrl.u32 %v3847, 16
        %v3886 = vrot.slane %v3884, 4
        %v3887 = vor.u32 %v3886, %v3882
        %v3888 = vrot.slane %v3887, 4
        %v3890 = vshll.u32 %v3848, 16
        %v3892 = vrot.slane %v3890, 5
        %v3893 = vsel %vm996, %v3888, %v3892
        %v3895 = vshrl.u32 %v3849, 16
        %v3897 = vrot.slane %v3895, 4
        %v3898 = vshll.u32 %v3849, 16
        %v3900 = vrot.slane %v3898, 5
        %v3901 = vor.u32 %v3897, %v3900
        %v3902 = vrot.slane %v3901, 4
        %v3904 = vshll.u32 %v3850, 16
        %v3906 = vrot.slane %v3904, 5
        %v3907 = vsel %vm996, %v3902, %v3906
        %v3908 = vshrl.u32 %v3850, 16
        %v3910 = vrot.slane %v3908, 4
        %v3911 = vor.u32 %v3910, %v3906
        %v3912 = vrot.slane %v3911, 4
        %v3914 = vshll.u32 %v3851, 16
        %v3916 = vrot.slane %v3914, 5
        %v3917 = vsel %vm996, %v3912, %v3916
        %v3919 = vshrl.u32 %v3852, 16
        %v3921 = vrot.slane %v3919, 4
        %v3922 = vshll.u32 %v3852, 16
        %v3924 = vrot.slane %v3922, 5
        %v3925 = vor.u32 %v3921, %v3924
        %v3926 = vrot.slane %v3925, 4
        %v3928 = vshll.u32 %v3853, 16
        %v3930 = vrot.slane %v3928, 5
        %v3931 = vsel %vm996, %v3926, %v3930
        %v3932 = vshrl.u32 %v3853, 16
        %v3934 = vrot.slane %v3932, 4
        %v3935 = vor.u32 %v3934, %v3930
        %v3936 = vrot.slane %v3935, 4
        %v3938 = vshll.u32 %v3854, 16
        %v3940 = vrot.slane %v3938, 5
        %v3941 = vsel %vm996, %v3936, %v3940
        %v3943 = vshrl.u32 %v3855, 16
        %v3945 = vrot.slane %v3943, 4
        %v3946 = vshll.u32 %v3855, 16
        %v3948 = vrot.slane %v3946, 5
        %v3949 = vor.u32 %v3945, %v3948
        %v3950 = vrot.slane %v3949, 4
        %v3952 = vshll.u32 %v3856, 16
        %v3954 = vrot.slane %v3952, 5
        %v3955 = vsel %vm996, %v3950, %v3954
        %v3956 = vshrl.u32 %v3856, 16
        %v3958 = vrot.slane %v3956, 4
        %v3959 = vor.u32 %v3958, %v3954
        %v3960 = vrot.slane %v3959, 4
        %v3962 = vshll.u32 %v3857, 16
        %v3964 = vrot.slane %v3962, 5
        %v3965 = vsel %vm996, %v3960, %v3964
        %v3967 = vshrl.u32 %v3858, 16
        %v3969 = vrot.slane %v3967, 4
        %v3970 = vshll.u32 %v3858, 16
        %v3972 = vrot.slane %v3970, 5
        %v3973 = vor.u32 %v3969, %v3972
        %v3974 = vrot.slane %v3973, 4
        %v3976 = vshll.u32 %v3859, 16
        %v3978 = vrot.slane %v3976, 5
        %v3979 = vsel %vm996, %v3974, %v3978
        %v3980 = vshrl.u32 %v3859, 16
        %v3982 = vrot.slane %v3980, 4
        %v3983 = vor.u32 %v3982, %v3978
        %v3984 = vrot.slane %v3983, 4
        %v3986 = vshll.u32 %v3860, 16
        %v3988 = vrot.slane %v3986, 5
        %v3989 = vsel %vm996, %v3984, %v3988
        %v3991 = vshrl.u32 %v3861, 16
        %v3993 = vrot.slane %v3991, 4
        %v3994 = vshll.u32 %v3861, 16
        %v3996 = vrot.slane %v3994, 5
        %v3997 = vor.u32 %v3993, %v3996
        %v3998 = vrot.slane %v3997, 4
        %v4000 = vshll.u32 %v3862, 16
        %v4002 = vrot.slane %v4000, 5
        %v4003 = vsel %vm996, %v3998, %v4002
        %v4004 = vshrl.u32 %v3862, 16
        %v4006 = vrot.slane %v4004, 4
        %v4007 = vor.u32 %v4006, %v4002
        %v4008 = vrot.slane %v4007, 4
        %v4010 = vshll.u32 %v3863, 16
        %v4012 = vrot.slane %v4010, 5
        %v4013 = vsel %vm996, %v4008, %v4012
        %v4015 = vshrl.u32 %v3864, 16
        %v4017 = vrot.slane %v4015, 4
        %v4018 = vshll.u32 %v3864, 16
        %v4020 = vrot.slane %v4018, 5
        %v4021 = vor.u32 %v4017, %v4020
        %v4022 = vrot.slane %v4021, 4
        %v4024 = vshll.u32 %v3865, 16
        %v4026 = vrot.slane %v4024, 5
        %v4027 = vsel %vm996, %v4022, %v4026
        %v4028 = vshrl.u32 %v3865, 16
        %v4030 = vrot.slane %v4028, 4
        %v4031 = vor.u32 %v4030, %v4026
        %v4032 = vrot.slane %v4031, 4
        %v4034 = vshll.u32 %v3866, 16
        %v4036 = vrot.slane %v4034, 5
        %v4037 = vsel %vm996, %v4032, %v4036
        %v4039 = vshrl.u32 %v3867, 16
        %v4041 = vrot.slane %v4039, 4
        %v4042 = vshll.u32 %v3867, 16
        %v4044 = vrot.slane %v4042, 5
        %v4045 = vor.u32 %v4041, %v4044
        %v4046 = vrot.slane %v4045, 4
        %v4048 = vshll.u32 %v3868, 16
        %v4050 = vrot.slane %v4048, 5
        %v4051 = vsel %vm996, %v4046, %v4050
        %v4052 = vshrl.u32 %v3868, 16
        %v4054 = vrot.slane %v4052, 4
        %v4055 = vor.u32 %v4054, %v4050
        %v4056 = vrot.slane %v4055, 4
        %v4058 = vshll.u32 %v3869, 16
        %v4060 = vrot.slane %v4058, 5
        %v4061 = vsel %vm996, %v4056, %v4060
        %4062 = vrot.lane.b32.xlu0 %v3883, 4
        %v4063 = vpop.permute.xlu0 %4062
        %4064 = vrot.lane.b32.xlu0 %v3893, 4
        %v4065 = vpop.permute.xlu0 %4064
        %4066 = vrot.lane.b32.xlu0 %v3907, 4
        %v4067 = vpop.permute.xlu0 %4066
        %4068 = vrot.lane.b32.xlu0 %v3917, 4
        %v4069 = vpop.permute.xlu0 %4068
        %4070 = vrot.lane.b32.xlu0 %v3931, 4
        %v4071 = vpop.permute.xlu0 %4070
        %4072 = vrot.lane.b32.xlu0 %v3941, 4
        %v4073 = vpop.permute.xlu0 %4072
        %4074 = vrot.lane.b32.xlu0 %v3955, 4
        %v4075 = vpop.permute.xlu0 %4074
        %4076 = vrot.lane.b32.xlu0 %v3965, 4
        %v4077 = vpop.permute.xlu0 %4076
        %4078 = vrot.lane.b32.xlu0 %v3979, 4
        %v4079 = vpop.permute.xlu0 %4078
        %4080 = vrot.lane.b32.xlu0 %v3989, 4
        %v4081 = vpop.permute.xlu0 %4080
        %4082 = vrot.lane.b32.xlu0 %v4003, 4
        %v4083 = vpop.permute.xlu0 %4082
        %4084 = vrot.lane.b32.xlu0 %v4013, 4
        %v4085 = vpop.permute.xlu0 %4084
        %4086 = vrot.lane.b32.xlu0 %v4027, 4
        %v4087 = vpop.permute.xlu0 %4086
        %4088 = vrot.lane.b32.xlu0 %v4037, 4
        %v4089 = vpop.permute.xlu0 %4088
        %4090 = vrot.lane.b32.xlu0 %v4051, 4
        %v4091 = vpop.permute.xlu0 %4090
        %4092 = vrot.lane.b32.xlu0 %v4061, 4
        %v4093 = vpop.permute.xlu0 %4092
        %4110 = vst.msk [vmem:[#allocation5] sm:$0xf] %vm1297, %v4063
        %4111 = vst.msk [vmem:[#allocation5 + $0x4] sm:$0xf] %vm1297, %v4065
        %4112 = vst.msk [vmem:[#allocation5 + $0x8] sm:$0xf] %vm1297, %v4067
        %4113 = vst.msk [vmem:[#allocation5 + $0xc] sm:$0xf] %vm1297, %v4069
        %4114 = vst.msk [vmem:[#allocation5 + $0x10] sm:$0xf] %vm1297, %v4071
        %4115 = vst.msk [vmem:[#allocation5 + $0x14] sm:$0xf] %vm1297, %v4073
        %4116 = vst.msk [vmem:[#allocation5 + $0x18] sm:$0xf] %vm1297, %v4075
        %4117 = vst.msk [vmem:[#allocation5 + $0x1c] sm:$0xf] %vm1297, %v4077
        %4118 = vst.msk [vmem:[#allocation5 + $0x20] sm:$0xf] %vm1297, %v4079
        %4119 = vst.msk [vmem:[#allocation5 + $0x24] sm:$0xf] %vm1297, %v4081
        %4120 = vst.msk [vmem:[#allocation5 + $0x28] sm:$0xf] %vm1297, %v4083
        %4121 = vst.msk [vmem:[#allocation5 + $0x2c] sm:$0xf] %vm1297, %v4085
        %4122 = vst.msk [vmem:[#allocation5 + $0x30] sm:$0xf] %vm1297, %v4087
        %4123 = vst.msk [vmem:[#allocation5 + $0x34] sm:$0xf] %vm1297, %v4089
        %4124 = vst.msk [vmem:[#allocation5 + $0x38] sm:$0xf] %vm1297, %v4091
        %4125 = vst.msk [vmem:[#allocation5 + $0x3c] sm:$0xf] %vm1297, %v4093
        %v4126 = vld [vmem:[#allocation4] sm:$0xe]
        %v4127 = vld [vmem:[#allocation4 + $0x4] sm:$0xf]
        %v4128 = vld [vmem:[#allocation4 + $0x8] sm:$0x1]
        %v4129 = vld [vmem:[#allocation4 + $0xc] sm:$0xe]
        %v4130 = vld [vmem:[#allocation4 + $0x10] sm:$0xf]
        %v4131 = vld [vmem:[#allocation4 + $0x14] sm:$0x1]
        %v4132 = vld [vmem:[#allocation4 + $0x18] sm:$0xe]
        %v4133 = vld [vmem:[#allocation4 + $0x1c] sm:$0xf]
        %v4134 = vld [vmem:[#allocation4 + $0x20] sm:$0x1]
        %v4135 = vld [vmem:[#allocation4 + $0x24] sm:$0xe]
        %v4136 = vld [vmem:[#allocation4 + $0x28] sm:$0xf]
        %v4137 = vld [vmem:[#allocation4 + $0x2c] sm:$0x1]
        %v4138 = vld [vmem:[#allocation4 + $0x30] sm:$0xe]
        %v4139 = vld [vmem:[#allocation4 + $0x34] sm:$0xf]
        %v4140 = vld [vmem:[#allocation4 + $0x38] sm:$0x1]
        %v4141 = vld [vmem:[#allocation4 + $0x3c] sm:$0xe]
        %v4142 = vld [vmem:[#allocation4 + $0x40] sm:$0xf]
        %v4143 = vld [vmem:[#allocation4 + $0x44] sm:$0x1]
        %v4144 = vld [vmem:[#allocation4 + $0x48] sm:$0xe]
        %v4145 = vld [vmem:[#allocation4 + $0x4c] sm:$0xf]
        %v4146 = vld [vmem:[#allocation4 + $0x50] sm:$0x1]
        %v4147 = vld [vmem:[#allocation4 + $0x54] sm:$0xe]
        %v4148 = vld [vmem:[#allocation4 + $0x58] sm:$0xf]
        %v4149 = vld [vmem:[#allocation4 + $0x5c] sm:$0x1]
        %v4174 = vrot.slane %v4126, 5
        %v4175 = vrot.slane %v4174, 4
        %v4176 = vrot.slane %v4127, 5
        %v4177 = vsel %vm1380, %v4175, %v4176
        %v4178 = vrot.slane %v4176, 4
        %v4179 = vrot.slane %v4128, 5
        %v4180 = vsel %vm1380, %v4178, %v4179
        %v4181 = vrot.slane %v4129, 5
        %v4182 = vrot.slane %v4181, 4
        %v4183 = vrot.slane %v4130, 5
        %v4184 = vsel %vm1380, %v4182, %v4183
        %v4185 = vrot.slane %v4183, 4
        %v4186 = vrot.slane %v4131, 5
        %v4187 = vsel %vm1380, %v4185, %v4186
        %v4188 = vrot.slane %v4132, 5
        %v4189 = vrot.slane %v4188, 4
        %v4190 = vrot.slane %v4133, 5
        %v4191 = vsel %vm1380, %v4189, %v4190
        %v4192 = vrot.slane %v4190, 4
        %v4193 = vrot.slane %v4134, 5
        %v4194 = vsel %vm1380, %v4192, %v4193
        %v4195 = vrot.slane %v4135, 5
        %v4196 = vrot.slane %v4195, 4
        %v4197 = vrot.slane %v4136, 5
        %v4198 = vsel %vm1380, %v4196, %v4197
        %v4199 = vrot.slane %v4197, 4
        %v4200 = vrot.slane %v4137, 5
        %v4201 = vsel %vm1380, %v4199, %v4200
        %v4202 = vrot.slane %v4138, 5
        %v4203 = vrot.slane %v4202, 4
        %v4204 = vrot.slane %v4139, 5
        %v4205 = vsel %vm1380, %v4203, %v4204
        %v4206 = vrot.slane %v4204, 4
        %v4207 = vrot.slane %v4140, 5
        %v4208 = vsel %vm1380, %v4206, %v4207
        %v4209 = vrot.slane %v4141, 5
        %v4210 = vrot.slane %v4209, 4
        %v4211 = vrot.slane %v4142, 5
        %v4212 = vsel %vm1380, %v4210, %v4211
        %v4213 = vrot.slane %v4211, 4
        %v4214 = vrot.slane %v4143, 5
        %v4215 = vsel %vm1380, %v4213, %v4214
        %v4216 = vrot.slane %v4144, 5
        %v4217 = vrot.slane %v4216, 4
        %v4218 = vrot.slane %v4145, 5
        %v4219 = vsel %vm1380, %v4217, %v4218
        %v4220 = vrot.slane %v4218, 4
        %v4221 = vrot.slane %v4146, 5
        %v4222 = vsel %vm1380, %v4220, %v4221
        %v4223 = vrot.slane %v4147, 5
        %v4224 = vrot.slane %v4223, 4
        %v4225 = vrot.slane %v4148, 5
        %v4226 = vsel %vm1380, %v4224, %v4225
        %v4227 = vrot.slane %v4225, 4
        %v4228 = vrot.slane %v4149, 5
        %v4229 = vsel %vm1380, %v4227, %v4228
        %4230 = vrot.lane.b32.xlu0 %v4177, 8
        %v4231 = vpop.permute.xlu0 %4230
        %4232 = vrot.lane.b32.xlu0 %v4180, 8
        %v4233 = vpop.permute.xlu0 %4232
        %4234 = vrot.lane.b32.xlu0 %v4184, 8
        %v4235 = vpop.permute.xlu0 %4234
        %4236 = vrot.lane.b32.xlu0 %v4187, 8
        %v4237 = vpop.permute.xlu0 %4236
        %4238 = vrot.lane.b32.xlu0 %v4191, 8
        %v4239 = vpop.permute.xlu0 %4238
        %4240 = vrot.lane.b32.xlu0 %v4194, 8
        %v4241 = vpop.permute.xlu0 %4240
        %4242 = vrot.lane.b32.xlu0 %v4198, 8
        %v4243 = vpop.permute.xlu0 %4242
        %4244 = vrot.lane.b32.xlu0 %v4201, 8
        %v4245 = vpop.permute.xlu0 %4244
        %4246 = vrot.lane.b32.xlu0 %v4205, 8
        %v4247 = vpop.permute.xlu0 %4246
        %4248 = vrot.lane.b32.xlu0 %v4208, 8
        %v4249 = vpop.permute.xlu0 %4248
        %4250 = vrot.lane.b32.xlu0 %v4212, 8
        %v4251 = vpop.permute.xlu0 %4250
        %4252 = vrot.lane.b32.xlu0 %v4215, 8
        %v4253 = vpop.permute.xlu0 %4252
        %4254 = vrot.lane.b32.xlu0 %v4219, 8
        %v4255 = vpop.permute.xlu0 %4254
        %4256 = vrot.lane.b32.xlu0 %v4222, 8
        %v4257 = vpop.permute.xlu0 %4256
        %4258 = vrot.lane.b32.xlu0 %v4226, 8
        %v4259 = vpop.permute.xlu0 %4258
        %4260 = vrot.lane.b32.xlu0 %v4229, 8
        %v4261 = vpop.permute.xlu0 %4260
        %4278 = vst.msk [vmem:[#allocation5] sm:$0xf] %vm1511, %v4231
        %4279 = vst.msk [vmem:[#allocation5 + $0x4] sm:$0xf] %vm1511, %v4233
        %4280 = vst.msk [vmem:[#allocation5 + $0x8] sm:$0xf] %vm1511, %v4235
        %4281 = vst.msk [vmem:[#allocation5 + $0xc] sm:$0xf] %vm1511, %v4237
        %4282 = vst.msk [vmem:[#allocation5 + $0x10] sm:$0xf] %vm1511, %v4239
        %4283 = vst.msk [vmem:[#allocation5 + $0x14] sm:$0xf] %vm1511, %v4241
        %4284 = vst.msk [vmem:[#allocation5 + $0x18] sm:$0xf] %vm1511, %v4243
        %4285 = vst.msk [vmem:[#allocation5 + $0x1c] sm:$0xf] %vm1511, %v4245
        %4286 = vst.msk [vmem:[#allocation5 + $0x20] sm:$0xf] %vm1511, %v4247
        %4287 = vst.msk [vmem:[#allocation5 + $0x24] sm:$0xf] %vm1511, %v4249
        %4288 = vst.msk [vmem:[#allocation5 + $0x28] sm:$0xf] %vm1511, %v4251
        %4289 = vst.msk [vmem:[#allocation5 + $0x2c] sm:$0xf] %vm1511, %v4253
        %4290 = vst.msk [vmem:[#allocation5 + $0x30] sm:$0xf] %vm1511, %v4255
        %4291 = vst.msk [vmem:[#allocation5 + $0x34] sm:$0xf] %vm1511, %v4257
        %4292 = vst.msk [vmem:[#allocation5 + $0x38] sm:$0xf] %vm1511, %v4259
        %4293 = vst.msk [vmem:[#allocation5 + $0x3c] sm:$0xf] %vm1511, %v4261
        %s4294 = scalar_lea.vmem [#allocation4], 12
        %v4295 = vld [vmem:[%s4294] sm:$0xf]
        %v4296 = vld [vmem:[%s4294 + $0x4] sm:$0xf]
        %v4297 = vld [vmem:[%s4294 + $0xc] sm:$0xf]
        %v4298 = vld [vmem:[%s4294 + $0x10] sm:$0xf]
        %v4299 = vld [vmem:[%s4294 + $0x18] sm:$0xf]
        %v4300 = vld [vmem:[%s4294 + $0x1c] sm:$0xf]
        %v4301 = vld [vmem:[%s4294 + $0x24] sm:$0xf]
        %v4302 = vld [vmem:[%s4294 + $0x28] sm:$0xf]
        %v4303 = vld [vmem:[%s4294 + $0x30] sm:$0xf]
        %v4304 = vld [vmem:[%s4294 + $0x34] sm:$0xf]
        %v4305 = vld [vmem:[%s4294 + $0x3c] sm:$0xf]
        %v4306 = vld [vmem:[%s4294 + $0x40] sm:$0xf]
        %v4307 = vld [vmem:[%s4294 + $0x48] sm:$0xf]
        %v4308 = vld [vmem:[%s4294 + $0x4c] sm:$0xf]
        %v4309 = vld [vmem:[%s4294 + $0x54] sm:$0xf]
        %v4310 = vld [vmem:[%s4294 + $0x58] sm:$0xf]
        %4327 = vrot.lane.b32.xlu0 %v4295, 12
        %v4328 = vpop.permute.xlu0 %4327
        %4329 = vrot.lane.b32.xlu0 %v4296, 12
        %v4330 = vpop.permute.xlu0 %4329
        %4331 = vrot.lane.b32.xlu0 %v4297, 12
        %v4332 = vpop.permute.xlu0 %4331
        %4333 = vrot.lane.b32.xlu0 %v4298, 12
        %v4334 = vpop.permute.xlu0 %4333
        %4335 = vrot.lane.b32.xlu0 %v4299, 12
        %v4336 = vpop.permute.xlu0 %4335
        %4337 = vrot.lane.b32.xlu0 %v4300, 12
        %v4338 = vpop.permute.xlu0 %4337
        %4339 = vrot.lane.b32.xlu0 %v4301, 12
        %v4340 = vpop.permute.xlu0 %4339
        %4341 = vrot.lane.b32.xlu0 %v4302, 12
        %v4342 = vpop.permute.xlu0 %4341
        %4343 = vrot.lane.b32.xlu0 %v4303, 12
        %v4344 = vpop.permute.xlu0 %4343
        %4345 = vrot.lane.b32.xlu0 %v4304, 12
        %v4346 = vpop.permute.xlu0 %4345
        %4347 = vrot.lane.b32.xlu0 %v4305, 12
        %v4348 = vpop.permute.xlu0 %4347
        %4349 = vrot.lane.b32.xlu0 %v4306, 12
        %v4350 = vpop.permute.xlu0 %4349
        %4351 = vrot.lane.b32.xlu0 %v4307, 12
        %v4352 = vpop.permute.xlu0 %4351
        %4353 = vrot.lane.b32.xlu0 %v4308, 12
        %v4354 = vpop.permute.xlu0 %4353
        %4355 = vrot.lane.b32.xlu0 %v4309, 12
        %v4356 = vpop.permute.xlu0 %4355
        %4357 = vrot.lane.b32.xlu0 %v4310, 12
        %v4358 = vpop.permute.xlu0 %4357
        %4375 = vst.msk [vmem:[#allocation5] sm:$0xf] %vm1636, %v4328
        %4376 = vst.msk [vmem:[#allocation5 + $0x4] sm:$0xf] %vm1636, %v4330
        %4377 = vst.msk [vmem:[#allocation5 + $0x8] sm:$0xf] %vm1636, %v4332
        %4378 = vst.msk [vmem:[#allocation5 + $0xc] sm:$0xf] %vm1636, %v4334
        %4379 = vst.msk [vmem:[#allocation5 + $0x10] sm:$0xf] %vm1636, %v4336
        %4380 = vst.msk [vmem:[#allocation5 + $0x14] sm:$0xf] %vm1636, %v4338
        %4381 = vst.msk [vmem:[#allocation5 + $0x18] sm:$0xf] %vm1636, %v4340
        %4382 = vst.msk [vmem:[#allocation5 + $0x1c] sm:$0xf] %vm1636, %v4342
        %4383 = vst.msk [vmem:[#allocation5 + $0x20] sm:$0xf] %vm1636, %v4344
        %4384 = vst.msk [vmem:[#allocation5 + $0x24] sm:$0xf] %vm1636, %v4346
        %4385 = vst.msk [vmem:[#allocation5 + $0x28] sm:$0xf] %vm1636, %v4348
        %4386 = vst.msk [vmem:[#allocation5 + $0x2c] sm:$0xf] %vm1636, %v4350
        %4387 = vst.msk [vmem:[#allocation5 + $0x30] sm:$0xf] %vm1636, %v4352
        %4388 = vst.msk [vmem:[#allocation5 + $0x34] sm:$0xf] %vm1636, %v4354
        %4389 = vst.msk [vmem:[#allocation5 + $0x38] sm:$0xf] %vm1636, %v4356
        %4390 = vst.msk [vmem:[#allocation5 + $0x3c] sm:$0xf] %vm1636, %v4358
        %v4391 = vld [vmem:[%s4294] sm:$0xf]
        %v4392 = vld [vmem:[%s4294 + $0x4] sm:$0xf]
        %v4393 = vld [vmem:[%s4294 + $0x8] sm:$0x1]
        %v4394 = vld [vmem:[%s4294 + $0xc] sm:$0xf]
        %v4395 = vld [vmem:[%s4294 + $0x10] sm:$0xf]
        %v4396 = vld [vmem:[%s4294 + $0x14] sm:$0x1]
        %v4397 = vld [vmem:[%s4294 + $0x18] sm:$0xf]
        %v4398 = vld [vmem:[%s4294 + $0x1c] sm:$0xf]
        %v4399 = vld [vmem:[%s4294 + $0x20] sm:$0x1]
        %v4400 = vld [vmem:[%s4294 + $0x24] sm:$0xf]
        %v4401 = vld [vmem:[%s4294 + $0x28] sm:$0xf]
        %v4402 = vld [vmem:[%s4294 + $0x2c] sm:$0x1]
        %v4403 = vld [vmem:[%s4294 + $0x30] sm:$0xf]
        %v4404 = vld [vmem:[%s4294 + $0x34] sm:$0xf]
        %v4405 = vld [vmem:[%s4294 + $0x38] sm:$0x1]
        %v4406 = vld [vmem:[%s4294 + $0x3c] sm:$0xf]
        %v4407 = vld [vmem:[%s4294 + $0x40] sm:$0xf]
        %v4408 = vld [vmem:[%s4294 + $0x44] sm:$0x1]
        %v4409 = vld [vmem:[%s4294 + $0x48] sm:$0xf]
        %v4410 = vld [vmem:[%s4294 + $0x4c] sm:$0xf]
        %v4411 = vld [vmem:[%s4294 + $0x50] sm:$0x1]
        %v4412 = vld [vmem:[%s4294 + $0x54] sm:$0xf]
        %v4413 = vld [vmem:[%s4294 + $0x58] sm:$0xf]
        %v4414 = vld [vmem:[%s4294 + $0x5c] sm:$0x1]
        %v4416 = vshrl.u32 %v4391, 16
        %v4418 = vrot.slane %v4416, 4
        %v4419 = vshll.u32 %v4391, 16
        %v4421 = vrot.slane %v4419, 5
        %v4422 = vor.u32 %v4418, %v4421
        %v4423 = vrot.slane %v4422, 4
        %v4425 = vshll.u32 %v4392, 16
        %v4427 = vrot.slane %v4425, 5
        %v4428 = vsel %vm996, %v4423, %v4427
        %v4429 = vshrl.u32 %v4392, 16
        %v4431 = vrot.slane %v4429, 4
        %v4432 = vor.u32 %v4431, %v4427
        %v4433 = vrot.slane %v4432, 4
        %v4435 = vshll.u32 %v4393, 16
        %v4437 = vrot.slane %v4435, 5
        %v4438 = vsel %vm996, %v4433, %v4437
        %v4440 = vshrl.u32 %v4394, 16
        %v4442 = vrot.slane %v4440, 4
        %v4443 = vshll.u32 %v4394, 16
        %v4445 = vrot.slane %v4443, 5
        %v4446 = vor.u32 %v4442, %v4445
        %v4447 = vrot.slane %v4446, 4
        %v4449 = vshll.u32 %v4395, 16
        %v4451 = vrot.slane %v4449, 5
        %v4452 = vsel %vm996, %v4447, %v4451
        %v4453 = vshrl.u32 %v4395, 16
        %v4455 = vrot.slane %v4453, 4
        %v4456 = vor.u32 %v4455, %v4451
        %v4457 = vrot.slane %v4456, 4
        %v4459 = vshll.u32 %v4396, 16
        %v4461 = vrot.slane %v4459, 5
        %v4462 = vsel %vm996, %v4457, %v4461
        %v4464 = vshrl.u32 %v4397, 16
        %v4466 = vrot.slane %v4464, 4
        %v4467 = vshll.u32 %v4397, 16
        %v4469 = vrot.slane %v4467, 5
        %v4470 = vor.u32 %v4466, %v4469
        %v4471 = vrot.slane %v4470, 4
        %v4473 = vshll.u32 %v4398, 16
        %v4475 = vrot.slane %v4473, 5
        %v4476 = vsel %vm996, %v4471, %v4475
        %v4477 = vshrl.u32 %v4398, 16
        %v4479 = vrot.slane %v4477, 4
        %v4480 = vor.u32 %v4479, %v4475
        %v4481 = vrot.slane %v4480, 4
        %v4483 = vshll.u32 %v4399, 16
        %v4485 = vrot.slane %v4483, 5
        %v4486 = vsel %vm996, %v4481, %v4485
        %v4488 = vshrl.u32 %v4400, 16
        %v4490 = vrot.slane %v4488, 4
        %v4491 = vshll.u32 %v4400, 16
        %v4493 = vrot.slane %v4491, 5
        %v4494 = vor.u32 %v4490, %v4493
        %v4495 = vrot.slane %v4494, 4
        %v4497 = vshll.u32 %v4401, 16
        %v4499 = vrot.slane %v4497, 5
        %v4500 = vsel %vm996, %v4495, %v4499
        %v4501 = vshrl.u32 %v4401, 16
        %v4503 = vrot.slane %v4501, 4
        %v4504 = vor.u32 %v4503, %v4499
        %v4505 = vrot.slane %v4504, 4
        %v4507 = vshll.u32 %v4402, 16
        %v4509 = vrot.slane %v4507, 5
        %v4510 = vsel %vm996, %v4505, %v4509
        %v4512 = vshrl.u32 %v4403, 16
        %v4514 = vrot.slane %v4512, 4
        %v4515 = vshll.u32 %v4403, 16
        %v4517 = vrot.slane %v4515, 5
        %v4518 = vor.u32 %v4514, %v4517
        %v4519 = vrot.slane %v4518, 4
        %v4521 = vshll.u32 %v4404, 16
        %v4523 = vrot.slane %v4521, 5
        %v4524 = vsel %vm996, %v4519, %v4523
        %v4525 = vshrl.u32 %v4404, 16
        %v4527 = vrot.slane %v4525, 4
        %v4528 = vor.u32 %v4527, %v4523
        %v4529 = vrot.slane %v4528, 4
        %v4531 = vshll.u32 %v4405, 16
        %v4533 = vrot.slane %v4531, 5
        %v4534 = vsel %vm996, %v4529, %v4533
        %v4536 = vshrl.u32 %v4406, 16
        %v4538 = vrot.slane %v4536, 4
        %v4539 = vshll.u32 %v4406, 16
        %v4541 = vrot.slane %v4539, 5
        %v4542 = vor.u32 %v4538, %v4541
        %v4543 = vrot.slane %v4542, 4
        %v4545 = vshll.u32 %v4407, 16
        %v4547 = vrot.slane %v4545, 5
        %v4548 = vsel %vm996, %v4543, %v4547
        %v4549 = vshrl.u32 %v4407, 16
        %v4551 = vrot.slane %v4549, 4
        %v4552 = vor.u32 %v4551, %v4547
        %v4553 = vrot.slane %v4552, 4
        %v4555 = vshll.u32 %v4408, 16
        %v4557 = vrot.slane %v4555, 5
        %v4558 = vsel %vm996, %v4553, %v4557
        %v4560 = vshrl.u32 %v4409, 16
        %v4562 = vrot.slane %v4560, 4
        %v4563 = vshll.u32 %v4409, 16
        %v4565 = vrot.slane %v4563, 5
        %v4566 = vor.u32 %v4562, %v4565
        %v4567 = vrot.slane %v4566, 4
        %v4569 = vshll.u32 %v4410, 16
        %v4571 = vrot.slane %v4569, 5
        %v4572 = vsel %vm996, %v4567, %v4571
        %v4573 = vshrl.u32 %v4410, 16
        %v4575 = vrot.slane %v4573, 4
        %v4576 = vor.u32 %v4575, %v4571
        %v4577 = vrot.slane %v4576, 4
        %v4579 = vshll.u32 %v4411, 16
        %v4581 = vrot.slane %v4579, 5
        %v4582 = vsel %vm996, %v4577, %v4581
        %v4584 = vshrl.u32 %v4412, 16
        %v4586 = vrot.slane %v4584, 4
        %v4587 = vshll.u32 %v4412, 16
        %v4589 = vrot.slane %v4587, 5
        %v4590 = vor.u32 %v4586, %v4589
        %v4591 = vrot.slane %v4590, 4
        %v4593 = vshll.u32 %v4413, 16
        %v4595 = vrot.slane %v4593, 5
        %v4596 = vsel %vm996, %v4591, %v4595
        %v4597 = vshrl.u32 %v4413, 16
        %v4599 = vrot.slane %v4597, 4
        %v4600 = vor.u32 %v4599, %v4595
        %v4601 = vrot.slane %v4600, 4
        %v4603 = vshll.u32 %v4414, 16
        %v4605 = vrot.slane %v4603, 5
        %v4606 = vsel %vm996, %v4601, %v4605
        %4607 = vrot.lane.b32.xlu0 %v4428, 16
        %v4608 = vpop.permute.xlu0 %4607
        %4609 = vrot.lane.b32.xlu0 %v4438, 16
        %v4610 = vpop.permute.xlu0 %4609
        %4611 = vrot.lane.b32.xlu0 %v4452, 16
        %v4612 = vpop.permute.xlu0 %4611
        %4613 = vrot.lane.b32.xlu0 %v4462, 16
        %v4614 = vpop.permute.xlu0 %4613
        %4615 = vrot.lane.b32.xlu0 %v4476, 16
        %v4616 = vpop.permute.xlu0 %4615
        %4617 = vrot.lane.b32.xlu0 %v4486, 16
        %v4618 = vpop.permute.xlu0 %4617
        %4619 = vrot.lane.b32.xlu0 %v4500, 16
        %v4620 = vpop.permute.xlu0 %4619
        %4621 = vrot.lane.b32.xlu0 %v4510, 16
        %v4622 = vpop.permute.xlu0 %4621
        %4623 = vrot.lane.b32.xlu0 %v4524, 16
        %v4624 = vpop.permute.xlu0 %4623
        %4625 = vrot.lane.b32.xlu0 %v4534, 16
        %v4626 = vpop.permute.xlu0 %4625
        %4627 = vrot.lane.b32.xlu0 %v4548, 16
        %v4628 = vpop.permute.xlu0 %4627
        %4629 = vrot.lane.b32.xlu0 %v4558, 16
        %v4630 = vpop.permute.xlu0 %4629
        %4631 = vrot.lane.b32.xlu0 %v4572, 16
        %v4632 = vpop.permute.xlu0 %4631
        %4633 = vrot.lane.b32.xlu0 %v4582, 16
        %v4634 = vpop.permute.xlu0 %4633
        %4635 = vrot.lane.b32.xlu0 %v4596, 16
        %v4636 = vpop.permute.xlu0 %4635
        %4637 = vrot.lane.b32.xlu0 %v4606, 16
        %v4638 = vpop.permute.xlu0 %4637
        %4655 = vst.msk [vmem:[#allocation5] sm:$0xf] %vm1987, %v4608
        %4656 = vst.msk [vmem:[#allocation5 + $0x4] sm:$0xf] %vm1987, %v4610
        %4657 = vst.msk [vmem:[#allocation5 + $0x8] sm:$0xf] %vm1987, %v4612
        %4658 = vst.msk [vmem:[#allocation5 + $0xc] sm:$0xf] %vm1987, %v4614
        %4659 = vst.msk [vmem:[#allocation5 + $0x10] sm:$0xf] %vm1987, %v4616
        %4660 = vst.msk [vmem:[#allocation5 + $0x14] sm:$0xf] %vm1987, %v4618
        %4661 = vst.msk [vmem:[#allocation5 + $0x18] sm:$0xf] %vm1987, %v4620
        %4662 = vst.msk [vmem:[#allocation5 + $0x1c] sm:$0xf] %vm1987, %v4622
        %4663 = vst.msk [vmem:[#allocation5 + $0x20] sm:$0xf] %vm1987, %v4624
        %4664 = vst.msk [vmem:[#allocation5 + $0x24] sm:$0xf] %vm1987, %v4626
        %4665 = vst.msk [vmem:[#allocation5 + $0x28] sm:$0xf] %vm1987, %v4628
        %4666 = vst.msk [vmem:[#allocation5 + $0x2c] sm:$0xf] %vm1987, %v4630
        %4667 = vst.msk [vmem:[#allocation5 + $0x30] sm:$0xf] %vm1987, %v4632
        %4668 = vst.msk [vmem:[#allocation5 + $0x34] sm:$0xf] %vm1987, %v4634
        %4669 = vst.msk [vmem:[#allocation5 + $0x38] sm:$0xf] %vm1987, %v4636
        %4670 = vst.msk [vmem:[#allocation5 + $0x3c] sm:$0xf] %vm1987, %v4638
        %v4671 = vld [vmem:[%s4294] sm:$0xe]
        %v4672 = vld [vmem:[%s4294 + $0x4] sm:$0xf]
        %v4673 = vld [vmem:[%s4294 + $0x8] sm:$0x1]
        %v4674 = vld [vmem:[%s4294 + $0xc] sm:$0xe]
        %v4675 = vld [vmem:[%s4294 + $0x10] sm:$0xf]
        %v4676 = vld [vmem:[%s4294 + $0x14] sm:$0x1]
        %v4677 = vld [vmem:[%s4294 + $0x18] sm:$0xe]
        %v4678 = vld [vmem:[%s4294 + $0x1c] sm:$0xf]
        %v4679 = vld [vmem:[%s4294 + $0x20] sm:$0x1]
        %v4680 = vld [vmem:[%s4294 + $0x24] sm:$0xe]
        %v4681 = vld [vmem:[%s4294 + $0x28] sm:$0xf]
        %v4682 = vld [vmem:[%s4294 + $0x2c] sm:$0x1]
        %v4683 = vld [vmem:[%s4294 + $0x30] sm:$0xe]
        %v4684 = vld [vmem:[%s4294 + $0x34] sm:$0xf]
        %v4685 = vld [vmem:[%s4294 + $0x38] sm:$0x1]
        %v4686 = vld [vmem:[%s4294 + $0x3c] sm:$0xe]
        %v4687 = vld [vmem:[%s4294 + $0x40] sm:$0xf]
        %v4688 = vld [vmem:[%s4294 + $0x44] sm:$0x1]
        %v4689 = vld [vmem:[%s4294 + $0x48] sm:$0xe]
        %v4690 = vld [vmem:[%s4294 + $0x4c] sm:$0xf]
        %v4691 = vld [vmem:[%s4294 + $0x50] sm:$0x1]
        %v4692 = vld [vmem:[%s4294 + $0x54] sm:$0xe]
        %v4693 = vld [vmem:[%s4294 + $0x58] sm:$0xf]
        %v4694 = vld [vmem:[%s4294 + $0x5c] sm:$0x1]
        %v4719 = vrot.slane %v4671, 5
        %v4720 = vrot.slane %v4719, 4
        %v4721 = vrot.slane %v4672, 5
        %v4722 = vsel %vm1380, %v4720, %v4721
        %v4723 = vrot.slane %v4721, 4
        %v4724 = vrot.slane %v4673, 5
        %v4725 = vsel %vm1380, %v4723, %v4724
        %v4726 = vrot.slane %v4674, 5
        %v4727 = vrot.slane %v4726, 4
        %v4728 = vrot.slane %v4675, 5
        %v4729 = vsel %vm1380, %v4727, %v4728
        %v4730 = vrot.slane %v4728, 4
        %v4731 = vrot.slane %v4676, 5
        %v4732 = vsel %vm1380, %v4730, %v4731
        %v4733 = vrot.slane %v4677, 5
        %v4734 = vrot.slane %v4733, 4
        %v4735 = vrot.slane %v4678, 5
        %v4736 = vsel %vm1380, %v4734, %v4735
        %v4737 = vrot.slane %v4735, 4
        %v4738 = vrot.slane %v4679, 5
        %v4739 = vsel %vm1380, %v4737, %v4738
        %v4740 = vrot.slane %v4680, 5
        %v4741 = vrot.slane %v4740, 4
        %v4742 = vrot.slane %v4681, 5
        %v4743 = vsel %vm1380, %v4741, %v4742
        %v4744 = vrot.slane %v4742, 4
        %v4745 = vrot.slane %v4682, 5
        %v4746 = vsel %vm1380, %v4744, %v4745
        %v4747 = vrot.slane %v4683, 5
        %v4748 = vrot.slane %v4747, 4
        %v4749 = vrot.slane %v4684, 5
        %v4750 = vsel %vm1380, %v4748, %v4749
        %v4751 = vrot.slane %v4749, 4
        %v4752 = vrot.slane %v4685, 5
        %v4753 = vsel %vm1380, %v4751, %v4752
        %v4754 = vrot.slane %v4686, 5
        %v4755 = vrot.slane %v4754, 4
        %v4756 = vrot.slane %v4687, 5
        %v4757 = vsel %vm1380, %v4755, %v4756
        %v4758 = vrot.slane %v4756, 4
        %v4759 = vrot.slane %v4688, 5
        %v4760 = vsel %vm1380, %v4758, %v4759
        %v4761 = vrot.slane %v4689, 5
        %v4762 = vrot.slane %v4761, 4
        %v4763 = vrot.slane %v4690, 5
        %v4764 = vsel %vm1380, %v4762, %v4763
        %v4765 = vrot.slane %v4763, 4
        %v4766 = vrot.slane %v4691, 5
        %v4767 = vsel %vm1380, %v4765, %v4766
        %v4768 = vrot.slane %v4692, 5
        %v4769 = vrot.slane %v4768, 4
        %v4770 = vrot.slane %v4693, 5
        %v4771 = vsel %vm1380, %v4769, %v4770
        %v4772 = vrot.slane %v4770, 4
        %v4773 = vrot.slane %v4694, 5
        %v4774 = vsel %vm1380, %v4772, %v4773
        %4775 = vrot.lane.b32.xlu0 %v4722, 20
        %v4776 = vpop.permute.xlu0 %4775
        %4777 = vrot.lane.b32.xlu0 %v4725, 20
        %v4778 = vpop.permute.xlu0 %4777
        %4779 = vrot.lane.b32.xlu0 %v4729, 20
        %v4780 = vpop.permute.xlu0 %4779
        %4781 = vrot.lane.b32.xlu0 %v4732, 20
        %v4782 = vpop.permute.xlu0 %4781
        %4783 = vrot.lane.b32.xlu0 %v4736, 20
        %v4784 = vpop.permute.xlu0 %4783
        %4785 = vrot.lane.b32.xlu0 %v4739, 20
        %v4786 = vpop.permute.xlu0 %4785
        %4787 = vrot.lane.b32.xlu0 %v4743, 20
        %v4788 = vpop.permute.xlu0 %4787
        %4789 = vrot.lane.b32.xlu0 %v4746, 20
        %v4790 = vpop.permute.xlu0 %4789
        %4791 = vrot.lane.b32.xlu0 %v4750, 20
        %v4792 = vpop.permute.xlu0 %4791
        %4793 = vrot.lane.b32.xlu0 %v4753, 20
        %v4794 = vpop.permute.xlu0 %4793
        %4795 = vrot.lane.b32.xlu0 %v4757, 20
        %v4796 = vpop.permute.xlu0 %4795
        %4797 = vrot.lane.b32.xlu0 %v4760, 20
        %v4798 = vpop.permute.xlu0 %4797
        %4799 = vrot.lane.b32.xlu0 %v4764, 20
        %v4800 = vpop.permute.xlu0 %4799
        %4801 = vrot.lane.b32.xlu0 %v4767, 20
        %v4802 = vpop.permute.xlu0 %4801
        %4803 = vrot.lane.b32.xlu0 %v4771, 20
        %v4804 = vpop.permute.xlu0 %4803
        %4805 = vrot.lane.b32.xlu0 %v4774, 20
        %v4806 = vpop.permute.xlu0 %4805
        %4823 = vst.msk [vmem:[#allocation5] sm:$0xf] %vm2198, %v4776
        %4824 = vst.msk [vmem:[#allocation5 + $0x4] sm:$0xf] %vm2198, %v4778
        %4825 = vst.msk [vmem:[#allocation5 + $0x8] sm:$0xf] %vm2198, %v4780
        %4826 = vst.msk [vmem:[#allocation5 + $0xc] sm:$0xf] %vm2198, %v4782
        %4827 = vst.msk [vmem:[#allocation5 + $0x10] sm:$0xf] %vm2198, %v4784
        %4828 = vst.msk [vmem:[#allocation5 + $0x14] sm:$0xf] %vm2198, %v4786
        %4829 = vst.msk [vmem:[#allocation5 + $0x18] sm:$0xf] %vm2198, %v4788
        %4830 = vst.msk [vmem:[#allocation5 + $0x1c] sm:$0xf] %vm2198, %v4790
        %4831 = vst.msk [vmem:[#allocation5 + $0x20] sm:$0xf] %vm2198, %v4792
        %4832 = vst.msk [vmem:[#allocation5 + $0x24] sm:$0xf] %vm2198, %v4794
        %4833 = vst.msk [vmem:[#allocation5 + $0x28] sm:$0xf] %vm2198, %v4796
        %4834 = vst.msk [vmem:[#allocation5 + $0x2c] sm:$0xf] %vm2198, %v4798
        %4835 = vst.msk [vmem:[#allocation5 + $0x30] sm:$0xf] %vm2198, %v4800
        %4836 = vst.msk [vmem:[#allocation5 + $0x34] sm:$0xf] %vm2198, %v4802
        %4837 = vst.msk [vmem:[#allocation5 + $0x38] sm:$0xf] %vm2198, %v4804
        %4838 = vst.msk [vmem:[#allocation5 + $0x3c] sm:$0xf] %vm2198, %v4806
        %s4839 = scalar_lea.vmem [#allocation4], 24
        %v4840 = vld [vmem:[%s4839] sm:$0xf]
        %v4841 = vld [vmem:[%s4839 + $0x4] sm:$0xf]
        %v4842 = vld [vmem:[%s4839 + $0xc] sm:$0xf]
        %v4843 = vld [vmem:[%s4839 + $0x10] sm:$0xf]
        %v4844 = vld [vmem:[%s4839 + $0x18] sm:$0xf]
        %v4845 = vld [vmem:[%s4839 + $0x1c] sm:$0xf]
        %v4846 = vld [vmem:[%s4839 + $0x24] sm:$0xf]
        %v4847 = vld [vmem:[%s4839 + $0x28] sm:$0xf]
        %v4848 = vld [vmem:[%s4839 + $0x30] sm:$0xf]
        %v4849 = vld [vmem:[%s4839 + $0x34] sm:$0xf]
        %v4850 = vld [vmem:[%s4839 + $0x3c] sm:$0xf]
        %v4851 = vld [vmem:[%s4839 + $0x40] sm:$0xf]
        %v4852 = vld [vmem:[%s4839 + $0x48] sm:$0xf]
        %v4853 = vld [vmem:[%s4839 + $0x4c] sm:$0xf]
        %v4854 = vld [vmem:[%s4839 + $0x54] sm:$0xf]
        %v4855 = vld [vmem:[%s4839 + $0x58] sm:$0xf]
        %4872 = vrot.lane.b32.xlu0 %v4840, 24
        %v4873 = vpop.permute.xlu0 %4872
        %4874 = vrot.lane.b32.xlu0 %v4841, 24
        %v4875 = vpop.permute.xlu0 %4874
        %4876 = vrot.lane.b32.xlu0 %v4842, 24
        %v4877 = vpop.permute.xlu0 %4876
        %4878 = vrot.lane.b32.xlu0 %v4843, 24
        %v4879 = vpop.permute.xlu0 %4878
        %4880 = vrot.lane.b32.xlu0 %v4844, 24
        %v4881 = vpop.permute.xlu0 %4880
        %4882 = vrot.lane.b32.xlu0 %v4845, 24
        %v4883 = vpop.permute.xlu0 %4882
        %4884 = vrot.lane.b32.xlu0 %v4846, 24
        %v4885 = vpop.permute.xlu0 %4884
        %4886 = vrot.lane.b32.xlu0 %v4847, 24
        %v4887 = vpop.permute.xlu0 %4886
        %4888 = vrot.lane.b32.xlu0 %v4848, 24
        %v4889 = vpop.permute.xlu0 %4888
        %4890 = vrot.lane.b32.xlu0 %v4849, 24
        %v4891 = vpop.permute.xlu0 %4890
        %4892 = vrot.lane.b32.xlu0 %v4850, 24
        %v4893 = vpop.permute.xlu0 %4892
        %4894 = vrot.lane.b32.xlu0 %v4851, 24
        %v4895 = vpop.permute.xlu0 %4894
        %4896 = vrot.lane.b32.xlu0 %v4852, 24
        %v4897 = vpop.permute.xlu0 %4896
        %4898 = vrot.lane.b32.xlu0 %v4853, 24
        %v4899 = vpop.permute.xlu0 %4898
        %4900 = vrot.lane.b32.xlu0 %v4854, 24
        %v4901 = vpop.permute.xlu0 %4900
        %4902 = vrot.lane.b32.xlu0 %v4855, 24
        %v4903 = vpop.permute.xlu0 %4902
        %4920 = vst.msk [vmem:[#allocation5] sm:$0xf] %vm2323, %v4873
        %4921 = vst.msk [vmem:[#allocation5 + $0x4] sm:$0xf] %vm2323, %v4875
        %4922 = vst.msk [vmem:[#allocation5 + $0x8] sm:$0xf] %vm2323, %v4877
        %4923 = vst.msk [vmem:[#allocation5 + $0xc] sm:$0xf] %vm2323, %v4879
        %4924 = vst.msk [vmem:[#allocation5 + $0x10] sm:$0xf] %vm2323, %v4881
        %4925 = vst.msk [vmem:[#allocation5 + $0x14] sm:$0xf] %vm2323, %v4883
        %4926 = vst.msk [vmem:[#allocation5 + $0x18] sm:$0xf] %vm2323, %v4885
        %4927 = vst.msk [vmem:[#allocation5 + $0x1c] sm:$0xf] %vm2323, %v4887
        %4928 = vst.msk [vmem:[#allocation5 + $0x20] sm:$0xf] %vm2323, %v4889
        %4929 = vst.msk [vmem:[#allocation5 + $0x24] sm:$0xf] %vm2323, %v4891
        %4930 = vst.msk [vmem:[#allocation5 + $0x28] sm:$0xf] %vm2323, %v4893
        %4931 = vst.msk [vmem:[#allocation5 + $0x2c] sm:$0xf] %vm2323, %v4895
        %4932 = vst.msk [vmem:[#allocation5 + $0x30] sm:$0xf] %vm2323, %v4897
        %4933 = vst.msk [vmem:[#allocation5 + $0x34] sm:$0xf] %vm2323, %v4899
        %4934 = vst.msk [vmem:[#allocation5 + $0x38] sm:$0xf] %vm2323, %v4901
        %4935 = vst.msk [vmem:[#allocation5 + $0x3c] sm:$0xf] %vm2323, %v4903
        %v4936 = vld [vmem:[%s4839] sm:$0xf]
        %v4937 = vld [vmem:[%s4839 + $0x4] sm:$0xf]
        %v4938 = vld [vmem:[%s4839 + $0x8] sm:$0x1]
        %v4939 = vld [vmem:[%s4839 + $0xc] sm:$0xf]
        %v4940 = vld [vmem:[%s4839 + $0x10] sm:$0xf]
        %v4941 = vld [vmem:[%s4839 + $0x14] sm:$0x1]
        %v4942 = vld [vmem:[%s4839 + $0x18] sm:$0xf]
        %v4943 = vld [vmem:[%s4839 + $0x1c] sm:$0xf]
        %v4944 = vld [vmem:[%s4839 + $0x20] sm:$0x1]
        %v4945 = vld [vmem:[%s4839 + $0x24] sm:$0xf]
        %v4946 = vld [vmem:[%s4839 + $0x28] sm:$0xf]
        %v4947 = vld [vmem:[%s4839 + $0x2c] sm:$0x1]
        %v4948 = vld [vmem:[%s4839 + $0x30] sm:$0xf]
        %v4949 = vld [vmem:[%s4839 + $0x34] sm:$0xf]
        %v4950 = vld [vmem:[%s4839 + $0x38] sm:$0x1]
        %v4951 = vld [vmem:[%s4839 + $0x3c] sm:$0xf]
        %v4952 = vld [vmem:[%s4839 + $0x40] sm:$0xf]
        %v4953 = vld [vmem:[%s4839 + $0x44] sm:$0x1]
        %v4954 = vld [vmem:[%s4839 + $0x48] sm:$0xf]
        %v4955 = vld [vmem:[%s4839 + $0x4c] sm:$0xf]
        %v4956 = vld [vmem:[%s4839 + $0x50] sm:$0x1]
        %v4957 = vld [vmem:[%s4839 + $0x54] sm:$0xf]
        %v4958 = vld [vmem:[%s4839 + $0x58] sm:$0xf]
        %v4959 = vld [vmem:[%s4839 + $0x5c] sm:$0x1]
        %v4961 = vshrl.u32 %v4936, 16
        %v4963 = vrot.slane %v4961, 4
        %v4964 = vshll.u32 %v4936, 16
        %v4966 = vrot.slane %v4964, 5
        %v4967 = vor.u32 %v4963, %v4966
        %v4968 = vrot.slane %v4967, 4
        %v4970 = vshll.u32 %v4937, 16
        %v4972 = vrot.slane %v4970, 5
        %v4973 = vsel %vm996, %v4968, %v4972
        %v4974 = vshrl.u32 %v4937, 16
        %v4976 = vrot.slane %v4974, 4
        %v4977 = vor.u32 %v4976, %v4972
        %v4978 = vrot.slane %v4977, 4
        %v4980 = vshll.u32 %v4938, 16
        %v4982 = vrot.slane %v4980, 5
        %v4983 = vsel %vm996, %v4978, %v4982
        %v4985 = vshrl.u32 %v4939, 16
        %v4987 = vrot.slane %v4985, 4
        %v4988 = vshll.u32 %v4939, 16
        %v4990 = vrot.slane %v4988, 5
        %v4991 = vor.u32 %v4987, %v4990
        %v4992 = vrot.slane %v4991, 4
        %v4994 = vshll.u32 %v4940, 16
        %v4996 = vrot.slane %v4994, 5
        %v4997 = vsel %vm996, %v4992, %v4996
        %v4998 = vshrl.u32 %v4940, 16
        %v5000 = vrot.slane %v4998, 4
        %v5001 = vor.u32 %v5000, %v4996
        %v5002 = vrot.slane %v5001, 4
        %v5004 = vshll.u32 %v4941, 16
        %v5006 = vrot.slane %v5004, 5
        %v5007 = vsel %vm996, %v5002, %v5006
        %v5009 = vshrl.u32 %v4942, 16
        %v5011 = vrot.slane %v5009, 4
        %v5012 = vshll.u32 %v4942, 16
        %v5014 = vrot.slane %v5012, 5
        %v5015 = vor.u32 %v5011, %v5014
        %v5016 = vrot.slane %v5015, 4
        %v5018 = vshll.u32 %v4943, 16
        %v5020 = vrot.slane %v5018, 5
        %v5021 = vsel %vm996, %v5016, %v5020
        %v5022 = vshrl.u32 %v4943, 16
        %v5024 = vrot.slane %v5022, 4
        %v5025 = vor.u32 %v5024, %v5020
        %v5026 = vrot.slane %v5025, 4
        %v5028 = vshll.u32 %v4944, 16
        %v5030 = vrot.slane %v5028, 5
        %v5031 = vsel %vm996, %v5026, %v5030
        %v5033 = vshrl.u32 %v4945, 16
        %v5035 = vrot.slane %v5033, 4
        %v5036 = vshll.u32 %v4945, 16
        %v5038 = vrot.slane %v5036, 5
        %v5039 = vor.u32 %v5035, %v5038
        %v5040 = vrot.slane %v5039, 4
        %v5042 = vshll.u32 %v4946, 16
        %v5044 = vrot.slane %v5042, 5
        %v5045 = vsel %vm996, %v5040, %v5044
        %v5046 = vshrl.u32 %v4946, 16
        %v5048 = vrot.slane %v5046, 4
        %v5049 = vor.u32 %v5048, %v5044
        %v5050 = vrot.slane %v5049, 4
        %v5052 = vshll.u32 %v4947, 16
        %v5054 = vrot.slane %v5052, 5
        %v5055 = vsel %vm996, %v5050, %v5054
        %v5057 = vshrl.u32 %v4948, 16
        %v5059 = vrot.slane %v5057, 4
        %v5060 = vshll.u32 %v4948, 16
        %v5062 = vrot.slane %v5060, 5
        %v5063 = vor.u32 %v5059, %v5062
        %v5064 = vrot.slane %v5063, 4
        %v5066 = vshll.u32 %v4949, 16
        %v5068 = vrot.slane %v5066, 5
        %v5069 = vsel %vm996, %v5064, %v5068
        %v5070 = vshrl.u32 %v4949, 16
        %v5072 = vrot.slane %v5070, 4
        %v5073 = vor.u32 %v5072, %v5068
        %v5074 = vrot.slane %v5073, 4
        %v5076 = vshll.u32 %v4950, 16
        %v5078 = vrot.slane %v5076, 5
        %v5079 = vsel %vm996, %v5074, %v5078
        %v5081 = vshrl.u32 %v4951, 16
        %v5083 = vrot.slane %v5081, 4
        %v5084 = vshll.u32 %v4951, 16
        %v5086 = vrot.slane %v5084, 5
        %v5087 = vor.u32 %v5083, %v5086
        %v5088 = vrot.slane %v5087, 4
        %v5090 = vshll.u32 %v4952, 16
        %v5092 = vrot.slane %v5090, 5
        %v5093 = vsel %vm996, %v5088, %v5092
        %v5094 = vshrl.u32 %v4952, 16
        %v5096 = vrot.slane %v5094, 4
        %v5097 = vor.u32 %v5096, %v5092
        %v5098 = vrot.slane %v5097, 4
        %v5100 = vshll.u32 %v4953, 16
        %v5102 = vrot.slane %v5100, 5
        %v5103 = vsel %vm996, %v5098, %v5102
        %v5105 = vshrl.u32 %v4954, 16
        %v5107 = vrot.slane %v5105, 4
        %v5108 = vshll.u32 %v4954, 16
        %v5110 = vrot.slane %v5108, 5
        %v5111 = vor.u32 %v5107, %v5110
        %v5112 = vrot.slane %v5111, 4
        %v5114 = vshll.u32 %v4955, 16
        %v5116 = vrot.slane %v5114, 5
        %v5117 = vsel %vm996, %v5112, %v5116
        %v5118 = vshrl.u32 %v4955, 16
        %v5120 = vrot.slane %v5118, 4
        %v5121 = vor.u32 %v5120, %v5116
        %v5122 = vrot.slane %v5121, 4
        %v5124 = vshll.u32 %v4956, 16
        %v5126 = vrot.slane %v5124, 5
        %v5127 = vsel %vm996, %v5122, %v5126
        %v5129 = vshrl.u32 %v4957, 16
        %v5131 = vrot.slane %v5129, 4
        %v5132 = vshll.u32 %v4957, 16
        %v5134 = vrot.slane %v5132, 5
        %v5135 = vor.u32 %v5131, %v5134
        %v5136 = vrot.slane %v5135, 4
        %v5138 = vshll.u32 %v4958, 16
        %v5140 = vrot.slane %v5138, 5
        %v5141 = vsel %vm996, %v5136, %v5140
        %v5142 = vshrl.u32 %v4958, 16
        %v5144 = vrot.slane %v5142, 4
        %v5145 = vor.u32 %v5144, %v5140
        %v5146 = vrot.slane %v5145, 4
        %v5148 = vshll.u32 %v4959, 16
        %v5150 = vrot.slane %v5148, 5
        %v5151 = vsel %vm996, %v5146, %v5150
        %5152 = vrot.lane.b32.xlu0 %v4973, 28
        %v5153 = vpop.permute.xlu0 %5152
        %5154 = vrot.lane.b32.xlu0 %v4983, 28
        %v5155 = vpop.permute.xlu0 %5154
        %5156 = vrot.lane.b32.xlu0 %v4997, 28
        %v5157 = vpop.permute.xlu0 %5156
        %5158 = vrot.lane.b32.xlu0 %v5007, 28
        %v5159 = vpop.permute.xlu0 %5158
        %5160 = vrot.lane.b32.xlu0 %v5021, 28
        %v5161 = vpop.permute.xlu0 %5160
        %5162 = vrot.lane.b32.xlu0 %v5031, 28
        %v5163 = vpop.permute.xlu0 %5162
        %5164 = vrot.lane.b32.xlu0 %v5045, 28
        %v5165 = vpop.permute.xlu0 %5164
        %5166 = vrot.lane.b32.xlu0 %v5055, 28
        %v5167 = vpop.permute.xlu0 %5166
        %5168 = vrot.lane.b32.xlu0 %v5069, 28
        %v5169 = vpop.permute.xlu0 %5168
        %5170 = vrot.lane.b32.xlu0 %v5079, 28
        %v5171 = vpop.permute.xlu0 %5170
        %5172 = vrot.lane.b32.xlu0 %v5093, 28
        %v5173 = vpop.permute.xlu0 %5172
        %5174 = vrot.lane.b32.xlu0 %v5103, 28
        %v5175 = vpop.permute.xlu0 %5174
        %5176 = vrot.lane.b32.xlu0 %v5117, 28
        %v5177 = vpop.permute.xlu0 %5176
        %5178 = vrot.lane.b32.xlu0 %v5127, 28
        %v5179 = vpop.permute.xlu0 %5178
        %5180 = vrot.lane.b32.xlu0 %v5141, 28
        %v5181 = vpop.permute.xlu0 %5180
        %5182 = vrot.lane.b32.xlu0 %v5151, 28
        %v5183 = vpop.permute.xlu0 %5182
        %5200 = vst.msk [vmem:[#allocation5] sm:$0xf] %vm2674, %v5153
        %5201 = vst.msk [vmem:[#allocation5 + $0x4] sm:$0xf] %vm2674, %v5155
        %5202 = vst.msk [vmem:[#allocation5 + $0x8] sm:$0xf] %vm2674, %v5157
        %5203 = vst.msk [vmem:[#allocation5 + $0xc] sm:$0xf] %vm2674, %v5159
        %5204 = vst.msk [vmem:[#allocation5 + $0x10] sm:$0xf] %vm2674, %v5161
        %5205 = vst.msk [vmem:[#allocation5 + $0x14] sm:$0xf] %vm2674, %v5163
        %5206 = vst.msk [vmem:[#allocation5 + $0x18] sm:$0xf] %vm2674, %v5165
        %5207 = vst.msk [vmem:[#allocation5 + $0x1c] sm:$0xf] %vm2674, %v5167
        %5208 = vst.msk [vmem:[#allocation5 + $0x20] sm:$0xf] %vm2674, %v5169
        %5209 = vst.msk [vmem:[#allocation5 + $0x24] sm:$0xf] %vm2674, %v5171
        %5210 = vst.msk [vmem:[#allocation5 + $0x28] sm:$0xf] %vm2674, %v5173
        %5211 = vst.msk [vmem:[#allocation5 + $0x2c] sm:$0xf] %vm2674, %v5175
        %5212 = vst.msk [vmem:[#allocation5 + $0x30] sm:$0xf] %vm2674, %v5177
        %5213 = vst.msk [vmem:[#allocation5 + $0x34] sm:$0xf] %vm2674, %v5179
        %5214 = vst.msk [vmem:[#allocation5 + $0x38] sm:$0xf] %vm2674, %v5181
        %5215 = vst.msk [vmem:[#allocation5 + $0x3c] sm:$0xf] %vm2674, %v5183
        %v5216 = vld [vmem:[%s4839] sm:$0xe]
        %v5217 = vld [vmem:[%s4839 + $0x4] sm:$0xf]
        %v5218 = vld [vmem:[%s4839 + $0x8] sm:$0x1]
        %v5219 = vld [vmem:[%s4839 + $0xc] sm:$0xe]
        %v5220 = vld [vmem:[%s4839 + $0x10] sm:$0xf]
        %v5221 = vld [vmem:[%s4839 + $0x14] sm:$0x1]
        %v5222 = vld [vmem:[%s4839 + $0x18] sm:$0xe]
        %v5223 = vld [vmem:[%s4839 + $0x1c] sm:$0xf]
        %v5224 = vld [vmem:[%s4839 + $0x20] sm:$0x1]
        %v5225 = vld [vmem:[%s4839 + $0x24] sm:$0xe]
        %v5226 = vld [vmem:[%s4839 + $0x28] sm:$0xf]
        %v5227 = vld [vmem:[%s4839 + $0x2c] sm:$0x1]
        %v5228 = vld [vmem:[%s4839 + $0x30] sm:$0xe]
        %v5229 = vld [vmem:[%s4839 + $0x34] sm:$0xf]
        %v5230 = vld [vmem:[%s4839 + $0x38] sm:$0x1]
        %v5231 = vld [vmem:[%s4839 + $0x3c] sm:$0xe]
        %v5232 = vld [vmem:[%s4839 + $0x40] sm:$0xf]
        %v5233 = vld [vmem:[%s4839 + $0x44] sm:$0x1]
        %v5234 = vld [vmem:[%s4839 + $0x48] sm:$0xe]
        %v5235 = vld [vmem:[%s4839 + $0x4c] sm:$0xf]
        %v5236 = vld [vmem:[%s4839 + $0x50] sm:$0x1]
        %v5237 = vld [vmem:[%s4839 + $0x54] sm:$0xe]
        %v5238 = vld [vmem:[%s4839 + $0x58] sm:$0xf]
        %v5239 = vld [vmem:[%s4839 + $0x5c] sm:$0x1]
        %v5264 = vrot.slane %v5216, 5
        %v5265 = vrot.slane %v5264, 4
        %v5266 = vrot.slane %v5217, 5
        %v5267 = vsel %vm1380, %v5265, %v5266
        %v5268 = vrot.slane %v5266, 4
        %v5269 = vrot.slane %v5218, 5
        %v5270 = vsel %vm1380, %v5268, %v5269
        %v5271 = vrot.slane %v5219, 5
        %v5272 = vrot.slane %v5271, 4
        %v5273 = vrot.slane %v5220, 5
        %v5274 = vsel %vm1380, %v5272, %v5273
        %v5275 = vrot.slane %v5273, 4
        %v5276 = vrot.slane %v5221, 5
        %v5277 = vsel %vm1380, %v5275, %v5276
        %v5278 = vrot.slane %v5222, 5
        %v5279 = vrot.slane %v5278, 4
        %v5280 = vrot.slane %v5223, 5
        %v5281 = vsel %vm1380, %v5279, %v5280
        %v5282 = vrot.slane %v5280, 4
        %v5283 = vrot.slane %v5224, 5
        %v5284 = vsel %vm1380, %v5282, %v5283
        %v5285 = vrot.slane %v5225, 5
        %v5286 = vrot.slane %v5285, 4
        %v5287 = vrot.slane %v5226, 5
        %v5288 = vsel %vm1380, %v5286, %v5287
        %v5289 = vrot.slane %v5287, 4
        %v5290 = vrot.slane %v5227, 5
        %v5291 = vsel %vm1380, %v5289, %v5290
        %v5292 = vrot.slane %v5228, 5
        %v5293 = vrot.slane %v5292, 4
        %v5294 = vrot.slane %v5229, 5
        %v5295 = vsel %vm1380, %v5293, %v5294
        %v5296 = vrot.slane %v5294, 4
        %v5297 = vrot.slane %v5230, 5
        %v5298 = vsel %vm1380, %v5296, %v5297
        %v5299 = vrot.slane %v5231, 5
        %v5300 = vrot.slane %v5299, 4
        %v5301 = vrot.slane %v5232, 5
        %v5302 = vsel %vm1380, %v5300, %v5301
        %v5303 = vrot.slane %v5301, 4
        %v5304 = vrot.slane %v5233, 5
        %v5305 = vsel %vm1380, %v5303, %v5304
        %v5306 = vrot.slane %v5234, 5
        %v5307 = vrot.slane %v5306, 4
        %v5308 = vrot.slane %v5235, 5
        %v5309 = vsel %vm1380, %v5307, %v5308
        %v5310 = vrot.slane %v5308, 4
        %v5311 = vrot.slane %v5236, 5
        %v5312 = vsel %vm1380, %v5310, %v5311
        %v5313 = vrot.slane %v5237, 5
        %v5314 = vrot.slane %v5313, 4
        %v5315 = vrot.slane %v5238, 5
        %v5316 = vsel %vm1380, %v5314, %v5315
        %v5317 = vrot.slane %v5315, 4
        %v5318 = vrot.slane %v5239, 5
        %v5319 = vsel %vm1380, %v5317, %v5318
        %5320 = vrot.lane.b32.xlu0 %v5267, 32
        %v5321 = vpop.permute.xlu0 %5320
        %5322 = vrot.lane.b32.xlu0 %v5270, 32
        %v5323 = vpop.permute.xlu0 %5322
        %5324 = vrot.lane.b32.xlu0 %v5274, 32
        %v5325 = vpop.permute.xlu0 %5324
        %5326 = vrot.lane.b32.xlu0 %v5277, 32
        %v5327 = vpop.permute.xlu0 %5326
        %5328 = vrot.lane.b32.xlu0 %v5281, 32
        %v5329 = vpop.permute.xlu0 %5328
        %5330 = vrot.lane.b32.xlu0 %v5284, 32
        %v5331 = vpop.permute.xlu0 %5330
        %5332 = vrot.lane.b32.xlu0 %v5288, 32
        %v5333 = vpop.permute.xlu0 %5332
        %5334 = vrot.lane.b32.xlu0 %v5291, 32
        %v5335 = vpop.permute.xlu0 %5334
        %5336 = vrot.lane.b32.xlu0 %v5295, 32
        %v5337 = vpop.permute.xlu0 %5336
        %5338 = vrot.lane.b32.xlu0 %v5298, 32
        %v5339 = vpop.permute.xlu0 %5338
        %5340 = vrot.lane.b32.xlu0 %v5302, 32
        %v5341 = vpop.permute.xlu0 %5340
        %5342 = vrot.lane.b32.xlu0 %v5305, 32
        %v5343 = vpop.permute.xlu0 %5342
        %5344 = vrot.lane.b32.xlu0 %v5309, 32
        %v5345 = vpop.permute.xlu0 %5344
        %5346 = vrot.lane.b32.xlu0 %v5312, 32
        %v5347 = vpop.permute.xlu0 %5346
        %5348 = vrot.lane.b32.xlu0 %v5316, 32
        %v5349 = vpop.permute.xlu0 %5348
        %5350 = vrot.lane.b32.xlu0 %v5319, 32
        %v5351 = vpop.permute.xlu0 %5350
        %5368 = vst.msk [vmem:[#allocation5] sm:$0xf] %vm2885, %v5321
        %5369 = vst.msk [vmem:[#allocation5 + $0x4] sm:$0xf] %vm2885, %v5323
        %5370 = vst.msk [vmem:[#allocation5 + $0x8] sm:$0xf] %vm2885, %v5325
        %5371 = vst.msk [vmem:[#allocation5 + $0xc] sm:$0xf] %vm2885, %v5327
        %5372 = vst.msk [vmem:[#allocation5 + $0x10] sm:$0xf] %vm2885, %v5329
        %5373 = vst.msk [vmem:[#allocation5 + $0x14] sm:$0xf] %vm2885, %v5331
        %5374 = vst.msk [vmem:[#allocation5 + $0x18] sm:$0xf] %vm2885, %v5333
        %5375 = vst.msk [vmem:[#allocation5 + $0x1c] sm:$0xf] %vm2885, %v5335
        %5376 = vst.msk [vmem:[#allocation5 + $0x20] sm:$0xf] %vm2885, %v5337
        %5377 = vst.msk [vmem:[#allocation5 + $0x24] sm:$0xf] %vm2885, %v5339
        %5378 = vst.msk [vmem:[#allocation5 + $0x28] sm:$0xf] %vm2885, %v5341
        %5379 = vst.msk [vmem:[#allocation5 + $0x2c] sm:$0xf] %vm2885, %v5343
        %5380 = vst.msk [vmem:[#allocation5 + $0x30] sm:$0xf] %vm2885, %v5345
        %5381 = vst.msk [vmem:[#allocation5 + $0x34] sm:$0xf] %vm2885, %v5347
        %5382 = vst.msk [vmem:[#allocation5 + $0x38] sm:$0xf] %vm2885, %v5349
        %5383 = vst.msk [vmem:[#allocation5 + $0x3c] sm:$0xf] %vm2885, %v5351
        %v5384 = vld [vmem:[#allocation5] sm:$0xf]
        %v5385 = vld [vmem:[#allocation5 + $0x4] sm:$0xf]
        %v5386 = vld [vmem:[#allocation5 + $0x8] sm:$0xf]
        %v5387 = vld [vmem:[#allocation5 + $0xc] sm:$0xf]
        %v5388 = vld [vmem:[#allocation5 + $0x10] sm:$0xf]
        %v5389 = vld [vmem:[#allocation5 + $0x14] sm:$0xf]
        %v5390 = vld [vmem:[#allocation5 + $0x18] sm:$0xf]
        %v5391 = vld [vmem:[#allocation5 + $0x1c] sm:$0xf]
        %v5392 = vld [vmem:[#allocation5 + $0x20] sm:$0xf]
        %v5393 = vld [vmem:[#allocation5 + $0x24] sm:$0xf]
        %v5394 = vld [vmem:[#allocation5 + $0x28] sm:$0xf]
        %v5395 = vld [vmem:[#allocation5 + $0x2c] sm:$0xf]
        %v5396 = vld [vmem:[#allocation5 + $0x30] sm:$0xf]
        %v5397 = vld [vmem:[#allocation5 + $0x34] sm:$0xf]
        %v5398 = vld [vmem:[#allocation5 + $0x38] sm:$0xf]
        %v5399 = vld [vmem:[#allocation5 + $0x3c] sm:$0xf]
        %v5400 = vld [vmem:[%s3] sm:$0xf]
        %v5401 = vld [vmem:[%s3 + $0x4] sm:$0xf]
        %v5402 = vld [vmem:[%s3 + $0x8] sm:$0xf]
        %v5403 = vld [vmem:[%s3 + $0xc] sm:$0xf]
        %v5404 = vld [vmem:[%s3 + $0x10] sm:$0x3]
        %v5405 = vld [vmem:[%s4] sm:$0x1]
        %v5407 = vperm.slane %v5405, 0
        %v5425 = vunpack.c.l.b16 %v5384
        %v5426 = vunpack.c.l.b16 %v5385
        %v5427 = vunpack.c.l.b16 %v5386
        %v5428 = vunpack.c.l.b16 %v5387
        %v5429 = vunpack.c.l.b16 %v5388
        %v5430 = vunpack.c.l.b16 %v5389
        %v5431 = vunpack.c.l.b16 %v5390
        %v5432 = vunpack.c.l.b16 %v5391
        %v5433 = vunpack.c.l.b16 %v5392
        %v5434 = vunpack.c.l.b16 %v5393
        %v5435 = vunpack.c.l.b16 %v5394
        %v5436 = vunpack.c.l.b16 %v5395
        %v5437 = vunpack.c.l.b16 %v5396
        %v5438 = vunpack.c.l.b16 %v5397
        %v5439 = vunpack.c.l.b16 %v5398
        %v5440 = vunpack.c.l.b16 %v5399
        %v5441 = vpack.c.b16 %v5426, %v5425
        %v5442 = vpack.c.b16 %v5428, %v5427
        %v5443 = vpack.c.b16 %v5430, %v5429
        %v5444 = vpack.c.b16 %v5432, %v5431
        %v5445 = vpack.c.b16 %v5434, %v5433
        %v5446 = vpack.c.b16 %v5436, %v5435
        %v5447 = vpack.c.b16 %v5438, %v5437
        %v5448 = vpack.c.b16 %v5440, %v5439
        %v5454 = vunpack.c.l.b16 %v5400
        %v5455 = vunpack.c.l.b16 %v5401
        %v5456 = vunpack.c.l.b16 %v5402
        %v5457 = vunpack.c.l.b16 %v5403
        %v5458 = vunpack.c.l.b16 %v5404
        %v5459 = vpack.c.b16 %v5455, %v5454
        %v5460 = vpack.c.b16 %v5457, %v5456
        %v5461 = vpack.c.b16 %v5458, %v5458
        %v5465 = vsel %vm3000, %v5441, 0
        %v5468 = vsel %vm3000, %v5442, 0
        %v5471 = vsel %vm3000, %v5443, 0
        %v5474 = vsel %vm3000, %v5444, 0
        %v5477 = vsel %vm3000, %v5445, 0
        %v5480 = vsel %vm3000, %v5446, 0
        %v5483 = vsel %vm3000, %v5447, 0
        %v5486 = vsel %vm3000, %v5448, 0
        %v5489 = vsel %vm3031, %v5461, 0
        %5491 = vmatpush.bf16.msra.mxu0 0
        %5492 = vmatpush.bf16.msra.mxu0 0
        %5493 = vmatpush.bf16.msra.mxu0 0
        %5494 = vmatpush.bf16.msra.mxu0 0
        %5495 = vmatpush.bf16.msra.mxu0 0
        %5496 = vmatpush.bf16.msra.mxu0 %v5489
        %5497 = vmatpush.bf16.msra.mxu0 %v5460
        %5498 = vmatpush.bf16.msra.mxu0 %v5459
        %5499 = vmatmul.bf16.gmra.mxu0 %v5465
        %v5500 = vpop.f32.mrf.mxu0
        %v5501 = vadd.f32 %v5407, %v5500
        %v5502 = vpop.f32.mrf.mxu0
        %v5503 = vadd.f32 %v5407, %v5502
        %5504 = vmatmul.bf16.gmra.mxu0 %v5468
        %v5505 = vpop.f32.mrf.mxu0
        %v5506 = vadd.f32 %v5407, %v5505
        %v5507 = vpop.f32.mrf.mxu0
        %v5508 = vadd.f32 %v5407, %v5507
        %5509 = vmatmul.bf16.gmra.mxu0 %v5471
        %v5510 = vpop.f32.mrf.mxu0
        %v5511 = vadd.f32 %v5407, %v5510
        %v5512 = vpop.f32.mrf.mxu0
        %v5513 = vadd.f32 %v5407, %v5512
        %5514 = vmatmul.bf16.gmra.mxu0 %v5474
        %v5515 = vpop.f32.mrf.mxu0
        %v5516 = vadd.f32 %v5407, %v5515
        %v5517 = vpop.f32.mrf.mxu0
        %v5518 = vadd.f32 %v5407, %v5517
        %5519 = vmatmul.bf16.gmra.mxu0 %v5477
        %v5520 = vpop.f32.mrf.mxu0
        %v5521 = vadd.f32 %v5407, %v5520
        %v5522 = vpop.f32.mrf.mxu0
        %v5523 = vadd.f32 %v5407, %v5522
        %5524 = vmatmul.bf16.gmra.mxu0 %v5480
        %v5525 = vpop.f32.mrf.mxu0
        %v5526 = vadd.f32 %v5407, %v5525
        %v5527 = vpop.f32.mrf.mxu0
        %v5528 = vadd.f32 %v5407, %v5527
        %5529 = vmatmul.bf16.gmra.mxu0 %v5483
        %v5530 = vpop.f32.mrf.mxu0
        %v5531 = vadd.f32 %v5407, %v5530
        %v5532 = vpop.f32.mrf.mxu0
        %v5533 = vadd.f32 %v5407, %v5532
        %5534 = vmatmul.bf16.gmra.mxu0 %v5486
        %v5535 = vpop.f32.mrf.mxu0
        %v5536 = vadd.f32 %v5407, %v5535
        %v5537 = vpop.f32.mrf.mxu0
        %v5538 = vadd.f32 %v5407, %v5537
        %5539 = vdwg.mxu0
        %v5540 = vxor.u32 %v5501, 2147483648
        %v5541 = vxor.u32 %v5503, 2147483648
        %v5542 = vxor.u32 %v5506, 2147483648
        %v5543 = vxor.u32 %v5508, 2147483648
        %v5544 = vxor.u32 %v5511, 2147483648
        %v5545 = vxor.u32 %v5513, 2147483648
        %v5546 = vxor.u32 %v5516, 2147483648
        %v5547 = vxor.u32 %v5518, 2147483648
        %v5548 = vxor.u32 %v5521, 2147483648
        %v5549 = vxor.u32 %v5523, 2147483648
        %v5550 = vxor.u32 %v5526, 2147483648
        %v5551 = vxor.u32 %v5528, 2147483648
        %v5552 = vxor.u32 %v5531, 2147483648
        %v5553 = vxor.u32 %v5533, 2147483648
        %v5554 = vxor.u32 %v5536, 2147483648
        %v5555 = vxor.u32 %v5538, 2147483648
        %v5556 = vmul.f32 %v5540, 1.442695
        %v5557 = vpow.pop %v5556
        %v5558 = vmul.f32 %v5541, 1.442695
        %v5559 = vpow.pop %v5558
        %v5560 = vmul.f32 %v5542, 1.442695
        %v5561 = vpow.pop %v5560
        %v5562 = vmul.f32 %v5543, 1.442695
        %v5563 = vpow.pop %v5562
        %v5564 = vmul.f32 %v5544, 1.442695
        %v5565 = vpow.pop %v5564
        %v5566 = vmul.f32 %v5545, 1.442695
        %v5567 = vpow.pop %v5566
        %v5568 = vmul.f32 %v5546, 1.442695
        %v5569 = vpow.pop %v5568
        %v5570 = vmul.f32 %v5547, 1.442695
        %v5571 = vpow.pop %v5570
        %v5572 = vmul.f32 %v5548, 1.442695
        %v5573 = vpow.pop %v5572
        %v5574 = vmul.f32 %v5549, 1.442695
        %v5575 = vpow.pop %v5574
        %v5576 = vmul.f32 %v5550, 1.442695
        %v5577 = vpow.pop %v5576
        %v5578 = vmul.f32 %v5551, 1.442695
        %v5579 = vpow.pop %v5578
        %v5580 = vmul.f32 %v5552, 1.442695
        %v5581 = vpow.pop %v5580
        %v5582 = vmul.f32 %v5553, 1.442695
        %v5583 = vpow.pop %v5582
        %v5584 = vmul.f32 %v5554, 1.442695
        %v5585 = vpow.pop %v5584
        %v5586 = vmul.f32 %v5555, 1.442695
        %v5587 = vpow.pop %v5586
        %v5588 = vadd.f32 %v5557, 1.0
        %v5589 = vadd.f32 %v5559, 1.0
        %v5590 = vadd.f32 %v5561, 1.0
        %v5591 = vadd.f32 %v5563, 1.0
        %v5592 = vadd.f32 %v5565, 1.0
        %v5593 = vadd.f32 %v5567, 1.0
        %v5594 = vadd.f32 %v5569, 1.0
        %v5595 = vadd.f32 %v5571, 1.0
        %v5596 = vadd.f32 %v5573, 1.0
        %v5597 = vadd.f32 %v5575, 1.0
        %v5598 = vadd.f32 %v5577, 1.0
        %v5599 = vadd.f32 %v5579, 1.0
        %v5600 = vadd.f32 %v5581, 1.0
        %v5601 = vadd.f32 %v5583, 1.0
        %v5602 = vadd.f32 %v5585, 1.0
        %v5603 = vadd.f32 %v5587, 1.0
        %v5604 = vrcp.pop %v5588
        %v5605 = vmul.f32 %v5588, %v5604
        %v5606 = vsub.f32 1.0, %v5605
        %v5607 = vmul.f32 %v5604, %v5606
        %v5608 = vadd.f32 %v5604, %v5607
        %vm5609 = vweird.f32 %v5588
        %vm5610 = vweird.f32 %v5604
        %vm5611 = vmor %vm5609, %vm5610
        %v5612 = vsel %vm5611, %v5604, %v5608
        %v5613 = vand.u32 2147483647, %v5588
        %vm5614 = vcmp.eq.f32.partialorder %v5613, 8.507059e+37
        %v5615 = vand.u32 %v5588, 2147483648
        %v5616 = vor.u32 1.1754944e-38, %v5615
        %v5617 = vsel %vm5614, %v5616, %v5612
        %v5618 = vmul.f32 1.0, %v5617
        %v5619 = vrcp.pop %v5589
        %v5620 = vmul.f32 %v5589, %v5619
        %v5621 = vsub.f32 1.0, %v5620
        %v5622 = vmul.f32 %v5619, %v5621
        %v5623 = vadd.f32 %v5619, %v5622
        %vm5624 = vweird.f32 %v5589
        %vm5625 = vweird.f32 %v5619
        %vm5626 = vmor %vm5624, %vm5625
        %v5627 = vsel %vm5626, %v5619, %v5623
        %v5628 = vand.u32 2147483647, %v5589
        %vm5629 = vcmp.eq.f32.partialorder %v5628, 8.507059e+37
        %v5630 = vand.u32 %v5589, 2147483648
        %v5631 = vor.u32 1.1754944e-38, %v5630
        %v5632 = vsel %vm5629, %v5631, %v5627
        %v5633 = vmul.f32 1.0, %v5632
        %v5634 = vrcp.pop %v5590
        %v5635 = vmul.f32 %v5590, %v5634
        %v5636 = vsub.f32 1.0, %v5635
        %v5637 = vmul.f32 %v5634, %v5636
        %v5638 = vadd.f32 %v5634, %v5637
        %vm5639 = vweird.f32 %v5590
        %vm5640 = vweird.f32 %v5634
        %vm5641 = vmor %vm5639, %vm5640
        %v5642 = vsel %vm5641, %v5634, %v5638
        %v5643 = vand.u32 2147483647, %v5590
        %vm5644 = vcmp.eq.f32.partialorder %v5643, 8.507059e+37
        %v5645 = vand.u32 %v5590, 2147483648
        %v5646 = vor.u32 1.1754944e-38, %v5645
        %v5647 = vsel %vm5644, %v5646, %v5642
        %v5648 = vmul.f32 1.0, %v5647
        %v5649 = vrcp.pop %v5591
        %v5650 = vmul.f32 %v5591, %v5649
        %v5651 = vsub.f32 1.0, %v5650
        %v5652 = vmul.f32 %v5649, %v5651
        %v5653 = vadd.f32 %v5649, %v5652
        %vm5654 = vweird.f32 %v5591
        %vm5655 = vweird.f32 %v5649
        %vm5656 = vmor %vm5654, %vm5655
        %v5657 = vsel %vm5656, %v5649, %v5653
        %v5658 = vand.u32 2147483647, %v5591
        %vm5659 = vcmp.eq.f32.partialorder %v5658, 8.507059e+37
        %v5660 = vand.u32 %v5591, 2147483648
        %v5661 = vor.u32 1.1754944e-38, %v5660
        %v5662 = vsel %vm5659, %v5661, %v5657
        %v5663 = vmul.f32 1.0, %v5662
        %v5664 = vrcp.pop %v5592
        %v5665 = vmul.f32 %v5592, %v5664
        %v5666 = vsub.f32 1.0, %v5665
        %v5667 = vmul.f32 %v5664, %v5666
        %v5668 = vadd.f32 %v5664, %v5667
        %vm5669 = vweird.f32 %v5592
        %vm5670 = vweird.f32 %v5664
        %vm5671 = vmor %vm5669, %vm5670
        %v5672 = vsel %vm5671, %v5664, %v5668
        %v5673 = vand.u32 2147483647, %v5592
        %vm5674 = vcmp.eq.f32.partialorder %v5673, 8.507059e+37
        %v5675 = vand.u32 %v5592, 2147483648
        %v5676 = vor.u32 1.1754944e-38, %v5675
        %v5677 = vsel %vm5674, %v5676, %v5672
        %v5678 = vmul.f32 1.0, %v5677
        %v5679 = vrcp.pop %v5593
        %v5680 = vmul.f32 %v5593, %v5679
        %v5681 = vsub.f32 1.0, %v5680
        %v5682 = vmul.f32 %v5679, %v5681
        %v5683 = vadd.f32 %v5679, %v5682
        %vm5684 = vweird.f32 %v5593
        %vm5685 = vweird.f32 %v5679
        %vm5686 = vmor %vm5684, %vm5685
        %v5687 = vsel %vm5686, %v5679, %v5683
        %v5688 = vand.u32 2147483647, %v5593
        %vm5689 = vcmp.eq.f32.partialorder %v5688, 8.507059e+37
        %v5690 = vand.u32 %v5593, 2147483648
        %v5691 = vor.u32 1.1754944e-38, %v5690
        %v5692 = vsel %vm5689, %v5691, %v5687
        %v5693 = vmul.f32 1.0, %v5692
        %v5694 = vrcp.pop %v5594
        %v5695 = vmul.f32 %v5594, %v5694
        %v5696 = vsub.f32 1.0, %v5695
        %v5697 = vmul.f32 %v5694, %v5696
        %v5698 = vadd.f32 %v5694, %v5697
        %vm5699 = vweird.f32 %v5594
        %vm5700 = vweird.f32 %v5694
        %vm5701 = vmor %vm5699, %vm5700
        %v5702 = vsel %vm5701, %v5694, %v5698
        %v5703 = vand.u32 2147483647, %v5594
        %vm5704 = vcmp.eq.f32.partialorder %v5703, 8.507059e+37
        %v5705 = vand.u32 %v5594, 2147483648
        %v5706 = vor.u32 1.1754944e-38, %v5705
        %v5707 = vsel %vm5704, %v5706, %v5702
        %v5708 = vmul.f32 1.0, %v5707
        %v5709 = vrcp.pop %v5595
        %v5710 = vmul.f32 %v5595, %v5709
        %v5711 = vsub.f32 1.0, %v5710
        %v5712 = vmul.f32 %v5709, %v5711
        %v5713 = vadd.f32 %v5709, %v5712
        %vm5714 = vweird.f32 %v5595
        %vm5715 = vweird.f32 %v5709
        %vm5716 = vmor %vm5714, %vm5715
        %v5717 = vsel %vm5716, %v5709, %v5713
        %v5718 = vand.u32 2147483647, %v5595
        %vm5719 = vcmp.eq.f32.partialorder %v5718, 8.507059e+37
        %v5720 = vand.u32 %v5595, 2147483648
        %v5721 = vor.u32 1.1754944e-38, %v5720
        %v5722 = vsel %vm5719, %v5721, %v5717
        %v5723 = vmul.f32 1.0, %v5722
        %v5724 = vrcp.pop %v5596
        %v5725 = vmul.f32 %v5596, %v5724
        %v5726 = vsub.f32 1.0, %v5725
        %v5727 = vmul.f32 %v5724, %v5726
        %v5728 = vadd.f32 %v5724, %v5727
        %vm5729 = vweird.f32 %v5596
        %vm5730 = vweird.f32 %v5724
        %vm5731 = vmor %vm5729, %vm5730
        %v5732 = vsel %vm5731, %v5724, %v5728
        %v5733 = vand.u32 2147483647, %v5596
        %vm5734 = vcmp.eq.f32.partialorder %v5733, 8.507059e+37
        %v5735 = vand.u32 %v5596, 2147483648
        %v5736 = vor.u32 1.1754944e-38, %v5735
        %v5737 = vsel %vm5734, %v5736, %v5732
        %v5738 = vmul.f32 1.0, %v5737
        %v5739 = vrcp.pop %v5597
        %v5740 = vmul.f32 %v5597, %v5739
        %v5741 = vsub.f32 1.0, %v5740
        %v5742 = vmul.f32 %v5739, %v5741
        %v5743 = vadd.f32 %v5739, %v5742
        %vm5744 = vweird.f32 %v5597
        %vm5745 = vweird.f32 %v5739
        %vm5746 = vmor %vm5744, %vm5745
        %v5747 = vsel %vm5746, %v5739, %v5743
        %v5748 = vand.u32 2147483647, %v5597
        %vm5749 = vcmp.eq.f32.partialorder %v5748, 8.507059e+37
        %v5750 = vand.u32 %v5597, 2147483648
        %v5751 = vor.u32 1.1754944e-38, %v5750
        %v5752 = vsel %vm5749, %v5751, %v5747
        %v5753 = vmul.f32 1.0, %v5752
        %v5754 = vrcp.pop %v5598
        %v5755 = vmul.f32 %v5598, %v5754
        %v5756 = vsub.f32 1.0, %v5755
        %v5757 = vmul.f32 %v5754, %v5756
        %v5758 = vadd.f32 %v5754, %v5757
        %vm5759 = vweird.f32 %v5598
        %vm5760 = vweird.f32 %v5754
        %vm5761 = vmor %vm5759, %vm5760
        %v5762 = vsel %vm5761, %v5754, %v5758
        %v5763 = vand.u32 2147483647, %v5598
        %vm5764 = vcmp.eq.f32.partialorder %v5763, 8.507059e+37
        %v5765 = vand.u32 %v5598, 2147483648
        %v5766 = vor.u32 1.1754944e-38, %v5765
        %v5767 = vsel %vm5764, %v5766, %v5762
        %v5768 = vmul.f32 1.0, %v5767
        %v5769 = vrcp.pop %v5599
        %v5770 = vmul.f32 %v5599, %v5769
        %v5771 = vsub.f32 1.0, %v5770
        %v5772 = vmul.f32 %v5769, %v5771
        %v5773 = vadd.f32 %v5769, %v5772
        %vm5774 = vweird.f32 %v5599
        %vm5775 = vweird.f32 %v5769
        %vm5776 = vmor %vm5774, %vm5775
        %v5777 = vsel %vm5776, %v5769, %v5773
        %v5778 = vand.u32 2147483647, %v5599
        %vm5779 = vcmp.eq.f32.partialorder %v5778, 8.507059e+37
        %v5780 = vand.u32 %v5599, 2147483648
        %v5781 = vor.u32 1.1754944e-38, %v5780
        %v5782 = vsel %vm5779, %v5781, %v5777
        %v5783 = vmul.f32 1.0, %v5782
        %v5784 = vrcp.pop %v5600
        %v5785 = vmul.f32 %v5600, %v5784
        %v5786 = vsub.f32 1.0, %v5785
        %v5787 = vmul.f32 %v5784, %v5786
        %v5788 = vadd.f32 %v5784, %v5787
        %vm5789 = vweird.f32 %v5600
        %vm5790 = vweird.f32 %v5784
        %vm5791 = vmor %vm5789, %vm5790
        %v5792 = vsel %vm5791, %v5784, %v5788
        %v5793 = vand.u32 2147483647, %v5600
        %vm5794 = vcmp.eq.f32.partialorder %v5793, 8.507059e+37
        %v5795 = vand.u32 %v5600, 2147483648
        %v5796 = vor.u32 1.1754944e-38, %v5795
        %v5797 = vsel %vm5794, %v5796, %v5792
        %v5798 = vmul.f32 1.0, %v5797
        %v5799 = vrcp.pop %v5601
        %v5800 = vmul.f32 %v5601, %v5799
        %v5801 = vsub.f32 1.0, %v5800
        %v5802 = vmul.f32 %v5799, %v5801
        %v5803 = vadd.f32 %v5799, %v5802
        %vm5804 = vweird.f32 %v5601
        %vm5805 = vweird.f32 %v5799
        %vm5806 = vmor %vm5804, %vm5805
        %v5807 = vsel %vm5806, %v5799, %v5803
        %v5808 = vand.u32 2147483647, %v5601
        %vm5809 = vcmp.eq.f32.partialorder %v5808, 8.507059e+37
        %v5810 = vand.u32 %v5601, 2147483648
        %v5811 = vor.u32 1.1754944e-38, %v5810
        %v5812 = vsel %vm5809, %v5811, %v5807
        %v5813 = vmul.f32 1.0, %v5812
        %v5814 = vrcp.pop %v5602
        %v5815 = vmul.f32 %v5602, %v5814
        %v5816 = vsub.f32 1.0, %v5815
        %v5817 = vmul.f32 %v5814, %v5816
        %v5818 = vadd.f32 %v5814, %v5817
        %vm5819 = vweird.f32 %v5602
        %vm5820 = vweird.f32 %v5814
        %vm5821 = vmor %vm5819, %vm5820
        %v5822 = vsel %vm5821, %v5814, %v5818
        %v5823 = vand.u32 2147483647, %v5602
        %vm5824 = vcmp.eq.f32.partialorder %v5823, 8.507059e+37
        %v5825 = vand.u32 %v5602, 2147483648
        %v5826 = vor.u32 1.1754944e-38, %v5825
        %v5827 = vsel %vm5824, %v5826, %v5822
        %v5828 = vmul.f32 1.0, %v5827
        %v5829 = vrcp.pop %v5603
        %v5830 = vmul.f32 %v5603, %v5829
        %v5831 = vsub.f32 1.0, %v5830
        %v5832 = vmul.f32 %v5829, %v5831
        %v5833 = vadd.f32 %v5829, %v5832
        %vm5834 = vweird.f32 %v5603
        %vm5835 = vweird.f32 %v5829
        %vm5836 = vmor %vm5834, %vm5835
        %v5837 = vsel %vm5836, %v5829, %v5833
        %v5838 = vand.u32 2147483647, %v5603
        %vm5839 = vcmp.eq.f32.partialorder %v5838, 8.507059e+37
        %v5840 = vand.u32 %v5603, 2147483648
        %v5841 = vor.u32 1.1754944e-38, %v5840
        %v5842 = vsel %vm5839, %v5841, %v5837
        %v5843 = vmul.f32 1.0, %v5842
        %v5844 = vmul.f32 %v5501, %v5618
        %v5845 = vmul.f32 %v5503, %v5633
        %v5846 = vmul.f32 %v5506, %v5648
        %v5847 = vmul.f32 %v5508, %v5663
        %v5848 = vmul.f32 %v5511, %v5678
        %v5849 = vmul.f32 %v5513, %v5693
        %v5850 = vmul.f32 %v5516, %v5708
        %v5851 = vmul.f32 %v5518, %v5723
        %v5852 = vmul.f32 %v5521, %v5738
        %v5853 = vmul.f32 %v5523, %v5753
        %v5854 = vmul.f32 %v5526, %v5768
        %v5855 = vmul.f32 %v5528, %v5783
        %v5856 = vmul.f32 %v5531, %v5798
        %v5857 = vmul.f32 %v5533, %v5813
        %v5858 = vmul.f32 %v5536, %v5828
        %v5859 = vmul.f32 %v5538, %v5843
        %s5860 = smul.u32 %s238, 16
        %s5861 = scalar_lea.vmem %s236, %s5860
        %v5862 = vld [vmem:[%s5861] sm:$0xff]
        %v5863 = vld [vmem:[%s5861 + $0x8] sm:$0xff]
        %v5864 = vld [vmem:[%s5861 + $0x10] sm:$0xff]
        %v5865 = vld [vmem:[%s5861 + $0x18] sm:$0xff]
        %v5866 = vld [vmem:[%s5861 + $0x20] sm:$0xff]
        %v5867 = vld [vmem:[%s5861 + $0x28] sm:$0xff]
        %v5868 = vld [vmem:[%s5861 + $0x30] sm:$0xff]
        %v5869 = vld [vmem:[%s5861 + $0x38] sm:$0xff]
        %v5870 = vld [vmem:[%s5861 + $0x40] sm:$0xff]
        %v5871 = vld [vmem:[%s5861 + $0x48] sm:$0xff]
        %v5872 = vld [vmem:[%s5861 + $0x50] sm:$0xff]
        %v5873 = vld [vmem:[%s5861 + $0x58] sm:$0xff]
        %v5874 = vld [vmem:[%s5861 + $0x60] sm:$0xff]
        %v5875 = vld [vmem:[%s5861 + $0x68] sm:$0xff]
        %v5876 = vld [vmem:[%s5861 + $0x70] sm:$0xff]
        %v5877 = vld [vmem:[%s5861 + $0x78] sm:$0xff]
        %v5878 = vadd.f32 %v5844, %v5862
        %v5879 = vadd.f32 %v5845, %v5863
        %v5880 = vadd.f32 %v5846, %v5864
        %v5881 = vadd.f32 %v5847, %v5865
        %v5882 = vadd.f32 %v5848, %v5866
        %v5883 = vadd.f32 %v5849, %v5867
        %v5884 = vadd.f32 %v5850, %v5868
        %v5885 = vadd.f32 %v5851, %v5869
        %v5886 = vadd.f32 %v5852, %v5870
        %v5887 = vadd.f32 %v5853, %v5871
        %v5888 = vadd.f32 %v5854, %v5872
        %v5889 = vadd.f32 %v5855, %v5873
        %v5890 = vadd.f32 %v5856, %v5874
        %v5891 = vadd.f32 %v5857, %v5875
        %v5892 = vadd.f32 %v5858, %v5876
        %v5893 = vadd.f32 %v5859, %v5877
        %5894 = vxpose.xlu0.b32.start [1/16] %v5878, 128
        %5895 = vxpose.xlu0.b32.cont [2/16] %v5879, 128
        %5896 = vxpose.xlu0.b32.cont [3/16] %v5880, 128
        %5897 = vxpose.xlu0.b32.cont [4/16] %v5881, 128
        %5898 = vxpose.xlu0.b32.cont [5/16] %v5882, 128
        %5899 = vxpose.xlu0.b32.cont [6/16] %v5883, 128
        %5900 = vxpose.xlu0.b32.cont [7/16] %v5884, 128
        %5901 = vxpose.xlu0.b32.cont [8/16] %v5885, 128
        %5902 = vxpose.xlu0.b32.cont [9/16] %v5886, 128
        %5903 = vxpose.xlu0.b32.cont [10/16] %v5887, 128
        %5904 = vxpose.xlu0.b32.cont [11/16] %v5888, 128
        %5905 = vxpose.xlu0.b32.cont [12/16] %v5889, 128
        %5906 = vxpose.xlu0.b32.cont [13/16] %v5890, 128
        %5907 = vxpose.xlu0.b32.cont [14/16] %v5891, 128
        %5908 = vxpose.xlu0.b32.cont [15/16] %v5892, 128
        %5909 = vxpose.xlu0.b32.end [16/16] %v5893, 128
        %v5910 = vpop.trf.xlu0
        %v5911 = vpop.trf.xlu0
        %v5912 = vpop.trf.xlu0
        %v5913 = vpop.trf.xlu0
        %v5914 = vpop.trf.xlu0
        %v5915 = vpop.trf.xlu0
        %v5916 = vpop.trf.xlu0
        %v5917 = vpop.trf.xlu0
        %v5918 = vpop.trf.xlu0
        %v5919 = vpop.trf.xlu0
        %v5920 = vpop.trf.xlu0
        %v5921 = vpop.trf.xlu0
        %v5922 = vpop.trf.xlu0
        %v5923 = vpop.trf.xlu0
        %v5924 = vpop.trf.xlu0
        %v5925 = vpop.trf.xlu0
        %5926 = vst [vmem:[%s231] sm:$0xf] %v5910
        %s5927 = sand.u32 %s151, 1
        %s5928 = scalar_lea.sflag [#allocation7], %s5927
        %s5929 = sand.u32 %s151, 1
        %s5930 = smul.addr %s5929, 4
        %s5931 = scalar_lea.vmem [#allocation6], %s5930
        // Predicated region
        $region53: #{tpu_custom_call.1} parent=39 // pred_check
          %p5932 = pneg %p161
        $region54: #{tpu_custom_call.1} parent=39 // pred_check_branch
          %5934 = sbr.rel (%p5932) target = $region56
        $region55: #{tpu_custom_call.1} parent=39 // pred_region
          %5936 = vsyncadd %s5928, 0
          %s5937 = smul.addr %s23, 2
          %s5938 = sadd.s32 %s24, %s5937
          %s5939 = smul.addr %s5938, 4
          %s5940 = scalar_lea.hbm %s5, %s5939
          %s5942 = sshll.u32 %s5931, 4
          %s5943 = int_to_ptr.vmem [resolvable:$true] %s5942
          %s5944 = sshll.u32 %s5940, 4
          %s5945 = int_to_ptr.hbm [resolvable:$true] %s5944
          %5947 = dma.vmem_to_hbm [thread:$0]  %s5943, 64, %s5945, %s5928
        $region56: #{tpu_custom_call.1} parent=39 // pred_fallthru
          _
      $region40: #{tpu_custom_call.1} parent=5 // pred_fallthru
        _
      %p5948 = scmp.le.s32.totalorder 2, %s14
      // Predicated region
      $region57: #{tpu_custom_call.1} parent=5 // pred_check
        %p5949 = pneg %p5948
      $region58: #{tpu_custom_call.1} parent=5 // pred_check_branch
        %5951 = sbr.rel (%p5949) target = $region60
      $region59: #{tpu_custom_call.1} parent=5 // pred_region
        %s5952 = ssub.s32 %s14, 2
        // Predicated region
        $region61: #{tpu_custom_call.1} parent=59 // pred_check
          %p5953 = pneg %p167
        $region62: #{tpu_custom_call.1} parent=59 // pred_check_branch
          %5955 = sbr.rel (%p5953) target = $region64
        $region63: #{tpu_custom_call.1} parent=59 // pred_region
          %s5956 = sand.u32 %s152, 1
          %s5957 = scalar_lea.sflag [#allocation7], %s5956
          %s5958 = sand.u32 %s152, 1
          %s5959 = smul.addr %s5958, 4
          %s5960 = scalar_lea.vmem [#allocation6], %s5959
          %5962 = dma.done %s5957, 64
        $region64: #{tpu_custom_call.1} parent=59 // pred_fallthru
          _
      $region60: #{tpu_custom_call.1} parent=5 // pred_fallthru
        _
    $region6: #{tpu_custom_call.1} parent=1 // loop_footer
      %s18 = sadd.s32 1, %s14
    $region7: #{tpu_custom_call.1} parent=1 // loop_footer_branch
      %13 = sbr.rel target = $region3
    $region8: #{tpu_custom_call.1} parent=1 // loop_exit
      _
    %5963 = vsyncpa [#allocation7], 1
    %s5964 = scalar_lea.sflag [#allocation7], 1
    %5965 = vsyncpa %s5964, 1

</llo_original>
